<compile_context>
chip_gen: v6e
topology: v6e:2x2x1
jax: 0.10.0
libtpu: 0.0.40
codegen_flags: <defaults>
</compile_context>

<pallas_src>
import time
import functools

import jax
import jax.numpy as jnp
from jax import lax
from jax.experimental import pallas as pl
from jax.experimental.pallas import tpu as pltpu

CPAD = 64          # feature width (lanes) of the hidden conv layers
NLAYERS = 20       # conv layers per VDSR: 1->64, 18 x (64->64), 64->1
K3 = 3 * CPAD      # im2col contraction width (3 kw taps x 64 channels)


# ----------------------------------------------------------------------------
# Pallas kernel: full 20-layer VDSR forward (all batch elements at once,
# one weight branch per grid step).
# ----------------------------------------------------------------------------
def _vdsr_kernel(x_ref, w0_ref, wmid_ref, w19_ref, b_ref, o_ref,
                 x0pad, act, col, acc, *, N, H, W):
    """Refs (per grid step = one weight branch):
      x_ref   : (N, H, W, 1)             f32   VDSR input (single channel)
      w0_ref  : (1, 9, CPAD)             f32   conv1 weights [tap, cout]
      wmid_ref: (1, 54, K3, CPAD)        bf16  conv2 weights [(l*3+kh), kw*C+cin, cout]
      w19_ref : (1, 3, K3)               f32   conv3 weights [kh, kw*C+cin]
      b_ref   : (1, NLAYERS, 1, CPAD)    f32   biases (layer 19 uses lane 0 only)
      o_ref   : (1, N, H, W, 1)          f32   conv stack output + residual
    Scratch:
      x0pad   : (N, H+2, W+2, 1)         f32   zero-padded single-channel input
      act     : (N, H+2, W+2, CPAD)      bf16  zero-padded hidden activations
      col     : (N, H+2, W, K3)          bf16  partial im2col (kw taps in lanes)
      acc     : (N*H*W, CPAD)            f32   per-layer matmul accumulator
    """
    f32 = jnp.float32
    bf16 = jnp.bfloat16
    M = N * H * W

    # ---- zero only the 1-pixel halo borders (interiors are overwritten) ----
    x0pad[:, 0:1, :, :] = jnp.zeros((N, 1, W + 2, 1), f32)
    x0pad[:, H + 1:H + 2, :, :] = jnp.zeros((N, 1, W + 2, 1), f32)
    x0pad[:, :, 0:1, :] = jnp.zeros((N, H + 2, 1, 1), f32)
    x0pad[:, :, W + 1:W + 2, :] = jnp.zeros((N, H + 2, 1, 1), f32)
    act[:, 0:1, :, :] = jnp.zeros((N, 1, W + 2, CPAD), bf16)
    act[:, H + 1:H + 2, :, :] = jnp.zeros((N, 1, W + 2, CPAD), bf16)
    act[:, :, 0:1, :] = jnp.zeros((N, H + 2, 1, CPAD), bf16)
    act[:, :, W + 1:W + 2, :] = jnp.zeros((N, H + 2, 1, CPAD), bf16)

    # ---- stage the input into the padded single-channel buffer ----
    x0pad[:, 1:H + 1, 1:W + 1, :] = x_ref[...]

    # ---- layer 0: conv 1->64 + ReLU via VPU broadcast-FMA (no wasted matmul) ----
    w0 = w0_ref[0]                                    # (9, CPAD) f32
    for kh in range(3):
        part = None
        for kw in range(3):
            t = kh * 3 + kw
            patch = x0pad[:, kh:kh + H, kw:kw + W, :].reshape(M, 1)
            term = patch * w0[t:t + 1, :]             # (M, CPAD)
            part = term if part is None else part + term
        if kh == 0:
            acc[...] = part
        else:
            acc[...] += part
    h0 = jnp.maximum(acc[...] + b_ref[0, 0], 0.0)
    act[:, 1:H + 1, 1:W + 1, :] = h0.reshape(N, H, W, CPAD).astype(bf16)

    # ---- partial im2col: pack the 3 kw taps into the lane/contraction dim ----
    def build_col():
        for kw in range(3):
            col[:, :, :, kw * CPAD:(kw + 1) * CPAD] = act[:, :, kw:kw + W, :]

    # ---- layers 1..18: conv 64->64 + ReLU, 3 x (M,192)x(192,64) bf16 matmuls ----
    def layer_body(i, carry):
        build_col()
        for kh in range(3):
            lhs = col[:, kh:kh + H, :, :].reshape(M, K3)
            part = jnp.dot(lhs, wmid_ref[0, i * 3 + kh],
                           preferred_element_type=f32)
            if kh == 0:
                acc[...] = part
            else:
                acc[...] += part
        h = jnp.maximum(acc[...] + b_ref[0, i + 1], 0.0)
        act[:, 1:H + 1, 1:W + 1, :] = h.reshape(N, H, W, CPAD).astype(bf16)
        return carry

    lax.fori_loop(0, NLAYERS - 2, layer_body, 0)

    # ---- layer 19: conv 64->1, no activation (weighted lane reduction) ----
    build_col()
    y = jnp.zeros((M, 1), f32)
    for kh in range(3):
        lhs = col[:, kh:kh + H, :, :].reshape(M, K3).astype(f32)
        y = y + jnp.sum(lhs * w19_ref[0, kh:kh + 1, :], axis=1, keepdims=True)
    y = y + b_ref[0, NLAYERS - 1, :, 0:1]             # scalar bias (lane 0)

    # ---- VDSR residual connection ----
    o_ref[0] = y.reshape(N, H, W, 1) + x_ref[...]


def vdsr_apply(x, params):
    """Apply NB independent VDSR weight branches to x.

    x: (N, H, W) f32 single-channel input.
    params = (w0, wmid, w19, b) with a leading branch dim NB.
    Returns (NB, N, H, W) f32.
    """
    N, H, W = x.shape
    w0, wmid, w19, b = params
    NB = w0.shape[0]
    x4 = x.reshape(N, H, W, 1)
    kern = functools.partial(_vdsr_kernel, N=N, H=H, W=W)
    # TODO(synk): for large frames add row-strip spatial tiling with a 1-row
    # halo; this whole-frame-in-VMEM layout is sized for small SR stages.
    out = pl.pallas_call(
        kern,
        out_shape=jax.ShapeDtypeStruct((NB, N, H, W, 1), jnp.float32),
        grid_spec=pltpu.PrefetchScalarGridSpec(
            num_scalar_prefetch=0,
            grid=(NB,),
            in_specs=[
                pl.BlockSpec((N, H, W, 1), lambda nb: (0, 0, 0, 0)),
                pl.BlockSpec((1, 9, CPAD), lambda nb: (nb, 0, 0)),
                pl.BlockSpec((1, 3 * (NLAYERS - 2), K3, CPAD),
                             lambda nb: (nb, 0, 0, 0)),
                pl.BlockSpec((1, 3, K3), lambda nb: (nb, 0, 0)),
                pl.BlockSpec((1, NLAYERS, 1, CPAD), lambda nb: (nb, 0, 0, 0)),
            ],
            out_specs=pl.BlockSpec((1, N, H, W, 1),
                                   lambda nb: (nb, 0, 0, 0, 0)),
            scratch_shapes=[
                pltpu.VMEM((N, H + 2, W + 2, 1), jnp.float32),     # x0pad
                pltpu.VMEM((N, H + 2, W + 2, CPAD), jnp.bfloat16),  # act
                pltpu.VMEM((N, H + 2, W, K3), jnp.bfloat16),        # col
                pltpu.VMEM((N * H * W, CPAD), jnp.float32),         # acc
            ],
        ),
        compiler_params=pltpu.CompilerParams(
            dimension_semantics=("parallel",),   # weight branches are independent
            vmem_limit_bytes=64 * 1024 * 1024),
    )(x4, w0, wmid, w19, b)
    return out[..., 0]


# ----------------------------------------------------------------------------
# Deterministic parameter init (conv-layout, He-style) + packing to kernel layout
# ----------------------------------------------------------------------------
def init_vdsr_conv_params(key):
    """Random conv-layout VDSR params, mirroring the torch module's layer list."""
    ks = jax.random.split(key, 2 * NLAYERS)
    cins = [1] + [CPAD] * 18 + [CPAD]
    couts = [CPAD] * 19 + [1]
    params = []
    for l in range(NLAYERS):
        cin, cout = cins[l], couts[l]
        std = (2.0 / (9 * cin)) ** 0.5
        w = jax.random.normal(ks[2 * l], (cout, cin, 3, 3), jnp.float32) * std
        bb = jax.random.normal(ks[2 * l + 1], (cout,), jnp.float32) * 0.01
        params.append((w, bb))
    return params


def pack_vdsr_params(conv_params):
    """Pack conv-layout (cout, cin, kh, kw) weights into the kernel layout."""
    w1, b1 = conv_params[0]                               # (64, 1, 3, 3)
    w0 = jnp.transpose(w1[:, 0, :, :], (1, 2, 0)).reshape(9, CPAD)   # [t, cout]

    wm = []
    for l in range(1, NLAYERS - 1):
        w, _ = conv_params[l]                             # (64, 64, 3, 3)
        wl = jnp.transpose(w, (2, 3, 1, 0)).reshape(3, K3, CPAD)  # [kh, kw*C+cin, cout]
        wm.append(wl)
    wmid = jnp.stack(wm, axis=0).reshape(3 * (NLAYERS - 2), K3, CPAD)

    w3, b3 = conv_params[NLAYERS - 1]                     # (1, 64, 3, 3)
    w19 = jnp.transpose(w3[0], (1, 2, 0)).reshape(3, K3)  # [kh, kw*C+cin]

    b_all = jnp.zeros((NLAYERS, 1, CPAD), jnp.float32)
    b_all = b_all.at[0, 0, :].set(b1)
    for l in range(1, NLAYERS - 1):
        b_all = b_all.at[l, 0, :].set(conv_params[l][1])
    b_all = b_all.at[NLAYERS - 1, 0, 0].set(b3[0])

    return w0, wmid.astype(jnp.bfloat16), w19, b_all


def stack_branch_params(packed_list):
    """Stack per-VDSR packed params along a new leading branch axis."""
    return tuple(jnp.stack(ps, axis=0) for ps in zip(*packed_list))


# ----------------------------------------------------------------------------
# Glue: bicubic resize (PyTorch align_corners=True) and the 2x pixel shuffle
# ----------------------------------------------------------------------------
def _cubic_weights(t, a=-0.75):   # PyTorch bicubic kernel, A = -0.75
    def w(x):
        ax = jnp.abs(x)
        return jnp.where(
            ax <= 1.0, ((a + 2.0) * ax - (a + 3.0)) * ax * ax + 1.0,
            jnp.where(ax < 2.0, (((ax - 5.0) * ax + 8.0) * ax - 4.0) * a, 0.0))
    return jnp.stack([w(t + 1.0), w(t), w(t - 1.0), w(t - 2.0)], axis=-1)


def _interp_matrix(out_size, in_size):
    scale = 0.0 if out_size == 1 else (in_size - 1) / (out_size - 1)
    src = jnp.arange(out_size, dtype=jnp.float32) * scale
    i0 = jnp.floor(src)
    wts = _cubic_weights(src - i0)                                  # (out, 4)
    idx = jnp.clip(i0[:, None].astype(jnp.int32) + jnp.arange(-1, 3)[None, :],
                   0, in_size - 1)
    M = jnp.zeros((out_size, in_size), jnp.float32)
    return M.at[jnp.arange(out_size)[:, None], idx].add(wts)


def bicubic_resize_nhw(x, out_h, out_w):
    # TODO(synk): bicubic resize kept in plain JAX (separable interp matrices),
    # matching torch F.interpolate(mode='bicubic', align_corners=True).
    _, H, W = x.shape
    Ah = _interp_matrix(out_h, H)
    Aw = _interp_matrix(out_w, W)
    y = jnp.einsum('oh,nhw->now', Ah, x)
    return jnp.einsum('pw,now->nop', Aw, y)


def xong_sr(x, sr_params):
    """XongSR: dcnn1/dcnn2 VDSR branches + 2x pixel shuffle. x: (N,H,W)."""
    N, H, W = x.shape
    branches = vdsr_apply(x, sr_params)      # (2, N, H, W): [dcnn1, dcnn2]
    x1, x2 = branches[0], branches[1]
    # The torch forward calls dcnn2 three times on the same input -> x3 = x4 = x2.
    stacked = jnp.stack([x1, x2, x2, x2], axis=-1).reshape(N, H, W, 2, 2)
    out = stacked.transpose(0, 1, 3, 2, 4).reshape(N, 2 * H, 2 * W)
    return out


def xong_msr_forward(depth_lr, color_hr, params):
    """Mirrors XongMSR.forward. depth_lr: (N,1,H,W), color_hr: (N,c,OH,OW)."""
    ttt = time.time()
    out_h, out_w = color_hr.shape[-2], color_hr.shape[-1]
    list_coarse = []
    prev = depth_lr[:, 0, :, :].astype(jnp.float32)    # single channel (N,H,W)
    curr = None
    if color_hr.shape[-1] / depth_lr.shape[-1] > 1.0:
        for i in range(2):                             # len(self.dcnn) == 2
            if i == 0 or curr.shape[-1] < out_w:
                curr = xong_sr(prev, params['sr'])
                if i > 0:
                    up = bicubic_resize_nhw(prev, curr.shape[1], curr.shape[2])
                    curr = (curr + up) / 2.0
                prev = vdsr_apply(curr, params['dcnn'][i])[0]
                list_coarse.append(prev)
    output = prev
    # NOTE: `and` intentionally mirrors the torch guard exactly.
    if prev.shape[1] != out_h and prev.shape[2] != out_w:
        output = bicubic_resize_nhw(prev, out_h, out_w)
    jax.block_until_ready((output, list_coarse))
    elapsed = time.time() - ttt
    return (output[:, None, :, :],
            [c[:, None, :, :] for c in list_coarse],
            elapsed)


# ----------------------------------------------------------------------------
if __name__ == "__main__":
    key = jax.random.PRNGKey(0)
    k_in, k_col, k1, k2, k3, k4 = jax.random.split(key, 6)

    # Small shapes: depth 8x8 -> color 32x32 (x4 super-resolution path).
    depth_lr = jax.random.normal(k_in, (2, 1, 8, 8), jnp.float32)
    color_hr = jax.random.normal(k_col, (2, 3, 32, 32), jnp.float32)

    pack = lambda k: pack_vdsr_params(init_vdsr_conv_params(k))
    params = {
        # sr: dcnn1 + dcnn2 stacked on a leading branch axis and run in one
        # pallas_call (dcnn3/dcnn4 exist in the torch module but are unused).
        'sr': stack_branch_params([pack(k1), pack(k2)]),
        'dcnn': [stack_branch_params([pack(k3)]),    # dcnn_x2
                 stack_branch_params([pack(k4)])],   # dcnn_x4
    }

    output, coarse, elapsed = xong_msr_forward(depth_lr, color_hr, params)
    jax.block_until_ready(output)
    for c in coarse:
        jax.block_until_ready(c)

    assert output.shape == (2, 1, 32, 32), output.shape
    assert coarse[0].shape == (2, 1, 16, 16) and coarse[1].shape == (2, 1, 32, 32)
    assert bool(jnp.all(jnp.isfinite(output)))
    print("KERNEL_OK")
</pallas_src>

<mosaic_0001>
module attributes {stable_mosaic.version = 11 : i64} {
  func.func @_vdsr_kernel(%arg0: i32, %arg1: memref<2x8x8x1xf32, #tpu.memory_space<vmem>>, %arg2: memref<1x9x64xf32, #tpu.memory_space<vmem>>, %arg3: memref<1x54x192x64xbf16, #tpu.memory_space<vmem>>, %arg4: memref<1x3x192xf32, #tpu.memory_space<vmem>>, %arg5: memref<1x20x1x64xf32, #tpu.memory_space<vmem>>, %arg6: memref<1x2x8x8x1xf32, #tpu.memory_space<vmem>>, %arg7: memref<2x10x10x1xf32, #tpu.memory_space<vmem>>, %arg8: memref<2x10x10x64xbf16, #tpu.memory_space<vmem>>, %arg9: memref<2x10x8x192xbf16, #tpu.memory_space<vmem>>, %arg10: memref<128x64xf32, #tpu.memory_space<vmem>>) attributes {dimension_semantics = [#tpu.dimension_semantics<parallel>], iteration_bounds = array<i64: 2>, scalar_prefetch = 0 : i64, scratch_operands = 4 : i64, tpu.core_type = #tpu.core_type<tc>, window_params = [{pipeline_mode = #tpu.pipeline_mode<synchronous>, transform_indices = @transform_0, window_bounds = array<i64: 2, 8, 8, 1>}, {transform_indices = @transform_1, window_bounds = array<i64: 1, 9, 64>}, {transform_indices = @transform_2, window_bounds = array<i64: 1, 54, 192, 64>}, {transform_indices = @transform_3, window_bounds = array<i64: 1, 3, 192>}, {transform_indices = @transform_4, window_bounds = array<i64: 1, 20, 1, 64>}, {transform_indices = @transform_5, window_bounds = array<i64: 1, 2, 8, 8, 1>}]} {
    %cst = arith.constant 0.000000e+00 : f32
    %0 = vector.broadcast %cst : f32 to vector<2x1x10x1xf32>
    %c0 = arith.constant 0 : index
    %c0_0 = arith.constant 0 : index
    %c0_1 = arith.constant 0 : index
    %c0_2 = arith.constant 0 : index
    %1 = vector.load %arg7[%c0, %c0_0, %c0_1, %c0_2] : memref<2x10x10x1xf32, #tpu.memory_space<vmem>>, vector<2x1x10x1xf32>
    tpu.vector_store %arg7[%c0, %c0_0, %c0_1, %c0_2], %0 {strides = array<i32>} : memref<2x10x10x1xf32, #tpu.memory_space<vmem>>, vector<2x1x10x1xf32>,
    %cst_3 = arith.constant 0.000000e+00 : f32
    %2 = vector.broadcast %cst_3 : f32 to vector<2x1x10x1xf32>
    %c0_4 = arith.constant 0 : index
    %c9 = arith.constant 9 : index
    %c0_5 = arith.constant 0 : index
    %c0_6 = arith.constant 0 : index
    %3 = vector.load %arg7[%c0_4, %c9, %c0_5, %c0_6] : memref<2x10x10x1xf32, #tpu.memory_space<vmem>>, vector<2x1x10x1xf32>
    tpu.vector_store %arg7[%c0_4, %c9, %c0_5, %c0_6], %2 {strides = array<i32>} : memref<2x10x10x1xf32, #tpu.memory_space<vmem>>, vector<2x1x10x1xf32>,
    %cst_7 = arith.constant 0.000000e+00 : f32
    %4 = vector.broadcast %cst_7 : f32 to vector<2x10x1x1xf32>
    %c0_8 = arith.constant 0 : index
    %c0_9 = arith.constant 0 : index
    %c0_10 = arith.constant 0 : index
    %c0_11 = arith.constant 0 : index
    %5 = vector.load %arg7[%c0_8, %c0_9, %c0_10, %c0_11] : memref<2x10x10x1xf32, #tpu.memory_space<vmem>>, vector<2x10x1x1xf32>
    tpu.vector_store %arg7[%c0_8, %c0_9, %c0_10, %c0_11], %4 {strides = array<i32>} : memref<2x10x10x1xf32, #tpu.memory_space<vmem>>, vector<2x10x1x1xf32>,
    %cst_12 = arith.constant 0.000000e+00 : f32
    %6 = vector.broadcast %cst_12 : f32 to vector<2x10x1x1xf32>
    %c0_13 = arith.constant 0 : index
    %c0_14 = arith.constant 0 : index
    %c9_15 = arith.constant 9 : index
    %c0_16 = arith.constant 0 : index
    %7 = vector.load %arg7[%c0_13, %c0_14, %c9_15, %c0_16] : memref<2x10x10x1xf32, #tpu.memory_space<vmem>>, vector<2x10x1x1xf32>
    tpu.vector_store %arg7[%c0_13, %c0_14, %c9_15, %c0_16], %6 {strides = array<i32>} : memref<2x10x10x1xf32, #tpu.memory_space<vmem>>, vector<2x10x1x1xf32>,
    %cst_17 = arith.constant 0.000000e+00 : bf16
    %8 = vector.broadcast %cst_17 : bf16 to vector<2x1x10x64xbf16>
    %c0_18 = arith.constant 0 : index
    %c0_19 = arith.constant 0 : index
    %c0_20 = arith.constant 0 : index
    %c0_21 = arith.constant 0 : index
    %9 = vector.load %arg8[%c0_18, %c0_19, %c0_20, %c0_21] : memref<2x10x10x64xbf16, #tpu.memory_space<vmem>>, vector<2x1x10x64xbf16>
    tpu.vector_store %arg8[%c0_18, %c0_19, %c0_20, %c0_21], %8 {strides = array<i32>} : memref<2x10x10x64xbf16, #tpu.memory_space<vmem>>, vector<2x1x10x64xbf16>,
    %cst_22 = arith.constant 0.000000e+00 : bf16
    %10 = vector.broadcast %cst_22 : bf16 to vector<2x1x10x64xbf16>
    %c0_23 = arith.constant 0 : index
    %c9_24 = arith.constant 9 : index
    %c0_25 = arith.constant 0 : index
    %c0_26 = arith.constant 0 : index
    %11 = vector.load %arg8[%c0_23, %c9_24, %c0_25, %c0_26] : memref<2x10x10x64xbf16, #tpu.memory_space<vmem>>, vector<2x1x10x64xbf16>
    tpu.vector_store %arg8[%c0_23, %c9_24, %c0_25, %c0_26], %10 {strides = array<i32>} : memref<2x10x10x64xbf16, #tpu.memory_space<vmem>>, vector<2x1x10x64xbf16>,
    %cst_27 = arith.constant 0.000000e+00 : bf16
    %12 = vector.broadcast %cst_27 : bf16 to vector<2x10x1x64xbf16>
    %c0_28 = arith.constant 0 : index
    %c0_29 = arith.constant 0 : index
    %c0_30 = arith.constant 0 : index
    %c0_31 = arith.constant 0 : index
    %13 = vector.load %arg8[%c0_28, %c0_29, %c0_30, %c0_31] : memref<2x10x10x64xbf16, #tpu.memory_space<vmem>>, vector<2x10x1x64xbf16>
    tpu.vector_store %arg8[%c0_28, %c0_29, %c0_30, %c0_31], %12 {strides = array<i32>} : memref<2x10x10x64xbf16, #tpu.memory_space<vmem>>, vector<2x10x1x64xbf16>,
    %cst_32 = arith.constant 0.000000e+00 : bf16
    %14 = vector.broadcast %cst_32 : bf16 to vector<2x10x1x64xbf16>
    %c0_33 = arith.constant 0 : index
    %c0_34 = arith.constant 0 : index
    %c9_35 = arith.constant 9 : index
    %c0_36 = arith.constant 0 : index
    %15 = vector.load %arg8[%c0_33, %c0_34, %c9_35, %c0_36] : memref<2x10x10x64xbf16, #tpu.memory_space<vmem>>, vector<2x10x1x64xbf16>
    tpu.vector_store %arg8[%c0_33, %c0_34, %c9_35, %c0_36], %14 {strides = array<i32>} : memref<2x10x10x64xbf16, #tpu.memory_space<vmem>>, vector<2x10x1x64xbf16>,
    %c0_37 = arith.constant 0 : index
    %c0_38 = arith.constant 0 : index
    %c0_39 = arith.constant 0 : index
    %c0_40 = arith.constant 0 : index
    %16 = vector.load %arg1[%c0_37, %c0_38, %c0_39, %c0_40] : memref<2x8x8x1xf32, #tpu.memory_space<vmem>>, vector<2x8x8x1xf32>
    %c0_41 = arith.constant 0 : index
    %c1 = arith.constant 1 : index
    %c1_42 = arith.constant 1 : index
    %c0_43 = arith.constant 0 : index
    %17 = vector.load %arg7[%c0_41, %c1, %c1_42, %c0_43] : memref<2x10x10x1xf32, #tpu.memory_space<vmem>>, vector<2x8x8x1xf32>
    tpu.vector_store %arg7[%c0_41, %c1, %c1_42, %c0_43], %16 {strides = array<i32>} : memref<2x10x10x1xf32, #tpu.memory_space<vmem>>, vector<2x8x8x1xf32>,
    %c0_44 = arith.constant 0 : index
    %c0_45 = arith.constant 0 : index
    %c0_46 = arith.constant 0 : index
    %18 = vector.load %arg2[%c0_44, %c0_45, %c0_46] : memref<1x9x64xf32, #tpu.memory_space<vmem>>, vector<1x9x64xf32>
    %19 = vector.shape_cast %18 : vector<1x9x64xf32> to vector<9x64xf32>
    %c0_47 = arith.constant 0 : index
    %c0_48 = arith.constant 0 : index
    %c0_49 = arith.constant 0 : index
    %c0_50 = arith.constant 0 : index
    %20 = vector.load %arg7[%c0_47, %c0_48, %c0_49, %c0_50] : memref<2x10x10x1xf32, #tpu.memory_space<vmem>>, vector<2x8x8x1xf32>
    %21 = vector.shape_cast %20 : vector<2x8x8x1xf32> to vector<128x1xf32>
    %22 = vector.extract_strided_slice %19 {offsets = [0, 0], sizes = [1, 64], strides = [1, 1]} : vector<9x64xf32> to vector<1x64xf32>
    %23 = vector.broadcast %21 : vector<128x1xf32> to vector<128x64xf32>
    %24 = vector.broadcast %22 : vector<1x64xf32> to vector<128x64xf32>
    %25 = arith.mulf %23, %24 : vector<128x64xf32>
    %c0_51 = arith.constant 0 : index
    %c0_52 = arith.constant 0 : index
    %c1_53 = arith.constant 1 : index
    %c0_54 = arith.constant 0 : index
    %26 = vector.load %arg7[%c0_51, %c0_52, %c1_53, %c0_54] : memref<2x10x10x1xf32, #tpu.memory_space<vmem>>, vector<2x8x8x1xf32>
    %27 = vector.shape_cast %26 : vector<2x8x8x1xf32> to vector<128x1xf32>
    %28 = vector.extract_strided_slice %19 {offsets = [1, 0], sizes = [1, 64], strides = [1, 1]} : vector<9x64xf32> to vector<1x64xf32>
    %29 = vector.broadcast %27 : vector<128x1xf32> to vector<128x64xf32>
    %30 = vector.broadcast %28 : vector<1x64xf32> to vector<128x64xf32>
    %31 = arith.mulf %29, %30 : vector<128x64xf32>
    %32 = arith.addf %25, %31 : vector<128x64xf32>
    %c0_55 = arith.constant 0 : index
    %c0_56 = arith.constant 0 : index
    %c2 = arith.constant 2 : index
    %c0_57 = arith.constant 0 : index
    %33 = vector.load %arg7[%c0_55, %c0_56, %c2, %c0_57] : memref<2x10x10x1xf32, #tpu.memory_space<vmem>>, vector<2x8x8x1xf32>
    %34 = vector.shape_cast %33 : vector<2x8x8x1xf32> to vector<128x1xf32>
    %35 = vector.extract_strided_slice %19 {offsets = [2, 0], sizes = [1, 64], strides = [1, 1]} : vector<9x64xf32> to vector<1x64xf32>
    %36 = vector.broadcast %34 : vector<128x1xf32> to vector<128x64xf32>
    %37 = vector.broadcast %35 : vector<1x64xf32> to vector<128x64xf32>
    %38 = arith.mulf %36, %37 : vector<128x64xf32>
    %39 = arith.addf %32, %38 : vector<128x64xf32>
    %c0_58 = arith.constant 0 : index
    %c0_59 = arith.constant 0 : index
    %40 = vector.load %arg10[%c0_58, %c0_59] : memref<128x64xf32, #tpu.memory_space<vmem>>, vector<128x64xf32>
    tpu.vector_store %arg10[%c0_58, %c0_59], %39 {strides = array<i32>} : memref<128x64xf32, #tpu.memory_space<vmem>>, vector<128x64xf32>,
    %c0_60 = arith.constant 0 : index
    %c1_61 = arith.constant 1 : index
    %c0_62 = arith.constant 0 : index
    %c0_63 = arith.constant 0 : index
    %41 = vector.load %arg7[%c0_60, %c1_61, %c0_62, %c0_63] : memref<2x10x10x1xf32, #tpu.memory_space<vmem>>, vector<2x8x8x1xf32>
    %42 = vector.shape_cast %41 : vector<2x8x8x1xf32> to vector<128x1xf32>
    %43 = vector.extract_strided_slice %19 {offsets = [3, 0], sizes = [1, 64], strides = [1, 1]} : vector<9x64xf32> to vector<1x64xf32>
    %44 = vector.broadcast %42 : vector<128x1xf32> to vector<128x64xf32>
    %45 = vector.broadcast %43 : vector<1x64xf32> to vector<128x64xf32>
    %46 = arith.mulf %44, %45 : vector<128x64xf32>
    %c0_64 = arith.constant 0 : index
    %c1_65 = arith.constant 1 : index
    %c1_66 = arith.constant 1 : index
    %c0_67 = arith.constant 0 : index
    %47 = vector.load %arg7[%c0_64, %c1_65, %c1_66, %c0_67] : memref<2x10x10x1xf32, #tpu.memory_space<vmem>>, vector<2x8x8x1xf32>
    %48 = vector.shape_cast %47 : vector<2x8x8x1xf32> to vector<128x1xf32>
    %49 = vector.extract_strided_slice %19 {offsets = [4, 0], sizes = [1, 64], strides = [1, 1]} : vector<9x64xf32> to vector<1x64xf32>
    %50 = vector.broadcast %48 : vector<128x1xf32> to vector<128x64xf32>
    %51 = vector.broadcast %49 : vector<1x64xf32> to vector<128x64xf32>
    %52 = arith.mulf %50, %51 : vector<128x64xf32>
    %53 = arith.addf %46, %52 : vector<128x64xf32>
    %c0_68 = arith.constant 0 : index
    %c1_69 = arith.constant 1 : index
    %c2_70 = arith.constant 2 : index
    %c0_71 = arith.constant 0 : index
    %54 = vector.load %arg7[%c0_68, %c1_69, %c2_70, %c0_71] : memref<2x10x10x1xf32, #tpu.memory_space<vmem>>, vector<2x8x8x1xf32>
    %55 = vector.shape_cast %54 : vector<2x8x8x1xf32> to vector<128x1xf32>
    %56 = vector.extract_strided_slice %19 {offsets = [5, 0], sizes = [1, 64], strides = [1, 1]} : vector<9x64xf32> to vector<1x64xf32>
    %57 = vector.broadcast %55 : vector<128x1xf32> to vector<128x64xf32>
    %58 = vector.broadcast %56 : vector<1x64xf32> to vector<128x64xf32>
    %59 = arith.mulf %57, %58 : vector<128x64xf32>
    %60 = arith.addf %53, %59 : vector<128x64xf32>
    %c0_72 = arith.constant 0 : index
    %c0_73 = arith.constant 0 : index
    %61 = vector.load %arg10[%c0_72, %c0_73] : memref<128x64xf32, #tpu.memory_space<vmem>>, vector<128x64xf32>
    %62 = arith.addf %61, %60 : vector<128x64xf32>
    %c0_74 = arith.constant 0 : index
    %c0_75 = arith.constant 0 : index
    %63 = vector.load %arg10[%c0_74, %c0_75] : memref<128x64xf32, #tpu.memory_space<vmem>>, vector<128x64xf32>
    tpu.vector_store %arg10[%c0_74, %c0_75], %62 {strides = array<i32>} : memref<128x64xf32, #tpu.memory_space<vmem>>, vector<128x64xf32>,
    %c0_76 = arith.constant 0 : index
    %c2_77 = arith.constant 2 : index
    %c0_78 = arith.constant 0 : index
    %c0_79 = arith.constant 0 : index
    %64 = vector.load %arg7[%c0_76, %c2_77, %c0_78, %c0_79] : memref<2x10x10x1xf32, #tpu.memory_space<vmem>>, vector<2x8x8x1xf32>
    %65 = vector.shape_cast %64 : vector<2x8x8x1xf32> to vector<128x1xf32>
    %66 = vector.extract_strided_slice %19 {offsets = [6, 0], sizes = [1, 64], strides = [1, 1]} : vector<9x64xf32> to vector<1x64xf32>
    %67 = vector.broadcast %65 : vector<128x1xf32> to vector<128x64xf32>
    %68 = vector.broadcast %66 : vector<1x64xf32> to vector<128x64xf32>
    %69 = arith.mulf %67, %68 : vector<128x64xf32>
    %c0_80 = arith.constant 0 : index
    %c2_81 = arith.constant 2 : index
    %c1_82 = arith.constant 1 : index
    %c0_83 = arith.constant 0 : index
    %70 = vector.load %arg7[%c0_80, %c2_81, %c1_82, %c0_83] : memref<2x10x10x1xf32, #tpu.memory_space<vmem>>, vector<2x8x8x1xf32>
    %71 = vector.shape_cast %70 : vector<2x8x8x1xf32> to vector<128x1xf32>
    %72 = vector.extract_strided_slice %19 {offsets = [7, 0], sizes = [1, 64], strides = [1, 1]} : vector<9x64xf32> to vector<1x64xf32>
    %73 = vector.broadcast %71 : vector<128x1xf32> to vector<128x64xf32>
    %74 = vector.broadcast %72 : vector<1x64xf32> to vector<128x64xf32>
    %75 = arith.mulf %73, %74 : vector<128x64xf32>
    %76 = arith.addf %69, %75 : vector<128x64xf32>
    %c0_84 = arith.constant 0 : index
    %c2_85 = arith.constant 2 : index
    %c2_86 = arith.constant 2 : index
    %c0_87 = arith.constant 0 : index
    %77 = vector.load %arg7[%c0_84, %c2_85, %c2_86, %c0_87] : memref<2x10x10x1xf32, #tpu.memory_space<vmem>>, vector<2x8x8x1xf32>
    %78 = vector.shape_cast %77 : vector<2x8x8x1xf32> to vector<128x1xf32>
    %79 = vector.extract_strided_slice %19 {offsets = [8, 0], sizes = [1, 64], strides = [1, 1]} : vector<9x64xf32> to vector<1x64xf32>
    %80 = vector.broadcast %78 : vector<128x1xf32> to vector<128x64xf32>
    %81 = vector.broadcast %79 : vector<1x64xf32> to vector<128x64xf32>
    %82 = arith.mulf %80, %81 : vector<128x64xf32>
    %83 = arith.addf %76, %82 : vector<128x64xf32>
    %c0_88 = arith.constant 0 : index
    %c0_89 = arith.constant 0 : index
    %84 = vector.load %arg10[%c0_88, %c0_89] : memref<128x64xf32, #tpu.memory_space<vmem>>, vector<128x64xf32>
    %85 = arith.addf %84, %83 : vector<128x64xf32>
    %c0_90 = arith.constant 0 : index
    %c0_91 = arith.constant 0 : index
    %86 = vector.load %arg10[%c0_90, %c0_91] : memref<128x64xf32, #tpu.memory_space<vmem>>, vector<128x64xf32>
    tpu.vector_store %arg10[%c0_90, %c0_91], %85 {strides = array<i32>} : memref<128x64xf32, #tpu.memory_space<vmem>>, vector<128x64xf32>,
    %c0_92 = arith.constant 0 : index
    %c0_93 = arith.constant 0 : index
    %87 = vector.load %arg10[%c0_92, %c0_93] : memref<128x64xf32, #tpu.memory_space<vmem>>, vector<128x64xf32>
    %c0_94 = arith.constant 0 : index
    %c0_95 = arith.constant 0 : index
    %c0_96 = arith.constant 0 : index
    %c0_97 = arith.constant 0 : index
    %88 = vector.load %arg5[%c0_94, %c0_95, %c0_96, %c0_97] : memref<1x20x1x64xf32, #tpu.memory_space<vmem>>, vector<1x1x1x64xf32>
    %89 = vector.shape_cast %88 : vector<1x1x1x64xf32> to vector<1x64xf32>
    %90 = vector.broadcast %89 : vector<1x64xf32> to vector<128x64xf32>
    %91 = arith.addf %87, %90 : vector<128x64xf32>
    %cst_98 = arith.constant 0.000000e+00 : f32
    %92 = vector.broadcast %cst_98 : f32 to vector<128x64xf32>
    %93 = arith.maximumf %91, %92 : vector<128x64xf32>
    %94 = vector.shape_cast %93 : vector<128x64xf32> to vector<2x8x8x64xf32>
    %95 = arith.truncf %94 : vector<2x8x8x64xf32> to vector<2x8x8x64xbf16>
    %c0_99 = arith.constant 0 : index
    %c1_100 = arith.constant 1 : index
    %c1_101 = arith.constant 1 : index
    %c0_102 = arith.constant 0 : index
    %96 = vector.load %arg8[%c0_99, %c1_100, %c1_101, %c0_102] : memref<2x10x10x64xbf16, #tpu.memory_space<vmem>>, vector<2x8x8x64xbf16>
    tpu.vector_store %arg8[%c0_99, %c1_100, %c1_101, %c0_102], %95 {strides = array<i32>} : memref<2x10x10x64xbf16, #tpu.memory_space<vmem>>, vector<2x8x8x64xbf16>,
    %c0_i32 = arith.constant 0 : i32
    %c18_i32 = arith.constant 18 : i32
    %97 = arith.addi %c0_i32, %c18_i32 : i32
    %c1_i32 = arith.constant 1 : i32
    scf.for %arg11 = %c0_i32 to %97 step %c1_i32  : i32 {
      %c0_163 = arith.constant 0 : index
      %c0_164 = arith.constant 0 : index
      %c0_165 = arith.constant 0 : index
      %c0_166 = arith.constant 0 : index
      %145 = vector.load %arg8[%c0_163, %c0_164, %c0_165, %c0_166] : memref<2x10x10x64xbf16, #tpu.memory_space<vmem>>, vector<2x10x8x64xbf16>
      %c0_167 = arith.constant 0 : index
      %c0_168 = arith.constant 0 : index
      %c0_169 = arith.constant 0 : index
      %c0_170 = arith.constant 0 : index
      %146 = vector.load %arg9[%c0_167, %c0_168, %c0_169, %c0_170] : memref<2x10x8x192xbf16, #tpu.memory_space<vmem>>, vector<2x10x8x64xbf16>
      tpu.vector_store %arg9[%c0_167, %c0_168, %c0_169, %c0_170], %145 {strides = array<i32>} : memref<2x10x8x192xbf16, #tpu.memory_space<vmem>>, vector<2x10x8x64xbf16>,
      %c0_171 = arith.constant 0 : index
      %c0_172 = arith.constant 0 : index
      %c1_173 = arith.constant 1 : index
      %c0_174 = arith.constant 0 : index
      %147 = vector.load %arg8[%c0_171, %c0_172, %c1_173, %c0_174] : memref<2x10x10x64xbf16, #tpu.memory_space<vmem>>, vector<2x10x8x64xbf16>
      %c0_175 = arith.constant 0 : index
      %c0_176 = arith.constant 0 : index
      %c0_177 = arith.constant 0 : index
      %c64_178 = arith.constant 64 : index
      %148 = vector.load %arg9[%c0_175, %c0_176, %c0_177, %c64_178] : memref<2x10x8x192xbf16, #tpu.memory_space<vmem>>, vector<2x10x8x64xbf16>
      tpu.vector_store %arg9[%c0_175, %c0_176, %c0_177, %c64_178], %147 {strides = array<i32>} : memref<2x10x8x192xbf16, #tpu.memory_space<vmem>>, vector<2x10x8x64xbf16>,
      %c0_179 = arith.constant 0 : index
      %c0_180 = arith.constant 0 : index
      %c2_181 = arith.constant 2 : index
      %c0_182 = arith.constant 0 : index
      %149 = vector.load %arg8[%c0_179, %c0_180, %c2_181, %c0_182] : memref<2x10x10x64xbf16, #tpu.memory_space<vmem>>, vector<2x10x8x64xbf16>
      %c0_183 = arith.constant 0 : index
      %c0_184 = arith.constant 0 : index
      %c0_185 = arith.constant 0 : index
      %c128_186 = arith.constant 128 : index
      %150 = vector.load %arg9[%c0_183, %c0_184, %c0_185, %c128_186] : memref<2x10x8x192xbf16, #tpu.memory_space<vmem>>, vector<2x10x8x64xbf16>
      tpu.vector_store %arg9[%c0_183, %c0_184, %c0_185, %c128_186], %149 {strides = array<i32>} : memref<2x10x8x192xbf16, #tpu.memory_space<vmem>>, vector<2x10x8x64xbf16>,
      %c0_187 = arith.constant 0 : index
      %c0_188 = arith.constant 0 : index
      %c0_189 = arith.constant 0 : index
      %c0_190 = arith.constant 0 : index
      %151 = vector.load %arg9[%c0_187, %c0_188, %c0_189, %c0_190] : memref<2x10x8x192xbf16, #tpu.memory_space<vmem>>, vector<2x8x8x192xbf16>
      %152 = vector.shape_cast %151 : vector<2x8x8x192xbf16> to vector<128x192xbf16>
      %c3_i32 = arith.constant 3 : i32
      %153 = arith.muli %arg11, %c3_i32 : i32
      %c0_i32_191 = arith.constant 0 : i32
      %154 = arith.addi %153, %c0_i32_191 : i32
      %c0_192 = arith.constant 0 : index
      %155 = arith.index_cast %154 : i32 to index
      %c0_193 = arith.constant 0 : index
      %c0_194 = arith.constant 0 : index
      %156 = vector.load %arg3[%c0_192, %155, %c0_193, %c0_194] : memref<1x54x192x64xbf16, #tpu.memory_space<vmem>>, vector<1x1x192x64xbf16>
      %157 = vector.shape_cast %156 : vector<1x1x192x64xbf16> to vector<192x64xbf16>
      %cst_195 = arith.constant dense<0.000000e+00> : vector<128x64xf32>
      %158 = tpu.matmul %152, %157, %cst_195 {dimension_numbers = #tpu.dot_dimension_numbers<[1], [0], [0], [1], [0, 0, 1, 1], [], []>} : vector<128x192xbf16>, vector<192x64xbf16>, vector<128x64xf32> -> vector<128x64xf32>
      %c0_196 = arith.constant 0 : index
      %c0_197 = arith.constant 0 : index
      %159 = vector.load %arg10[%c0_196, %c0_197] : memref<128x64xf32, #tpu.memory_space<vmem>>, vector<128x64xf32>
      tpu.vector_store %arg10[%c0_196, %c0_197], %158 {strides = array<i32>} : memref<128x64xf32, #tpu.memory_space<vmem>>, vector<128x64xf32>,
      %c0_198 = arith.constant 0 : index
      %c1_199 = arith.constant 1 : index
      %c0_200 = arith.constant 0 : index
      %c0_201 = arith.constant 0 : index
      %160 = vector.load %arg9[%c0_198, %c1_199, %c0_200, %c0_201] : memref<2x10x8x192xbf16, #tpu.memory_space<vmem>>, vector<2x8x8x192xbf16>
      %161 = vector.shape_cast %160 : vector<2x8x8x192xbf16> to vector<128x192xbf16>
      %c3_i32_202 = arith.constant 3 : i32
      %162 = arith.muli %arg11, %c3_i32_202 : i32
      %c1_i32_203 = arith.constant 1 : i32
      %163 = arith.addi %162, %c1_i32_203 : i32
      %c0_204 = arith.constant 0 : index
      %164 = arith.index_cast %163 : i32 to index
      %c0_205 = arith.constant 0 : index
      %c0_206 = arith.constant 0 : index
      %165 = vector.load %arg3[%c0_204, %164, %c0_205, %c0_206] : memref<1x54x192x64xbf16, #tpu.memory_space<vmem>>, vector<1x1x192x64xbf16>
      %166 = vector.shape_cast %165 : vector<1x1x192x64xbf16> to vector<192x64xbf16>
      %cst_207 = arith.constant dense<0.000000e+00> : vector<128x64xf32>
      %167 = tpu.matmul %161, %166, %cst_207 {dimension_numbers = #tpu.dot_dimension_numbers<[1], [0], [0], [1], [0, 0, 1, 1], [], []>} : vector<128x192xbf16>, vector<192x64xbf16>, vector<128x64xf32> -> vector<128x64xf32>
      %c0_208 = arith.constant 0 : index
      %c0_209 = arith.constant 0 : index
      %168 = vector.load %arg10[%c0_208, %c0_209] : memref<128x64xf32, #tpu.memory_space<vmem>>, vector<128x64xf32>
      %169 = arith.addf %168, %167 : vector<128x64xf32>
      %c0_210 = arith.constant 0 : index
      %c0_211 = arith.constant 0 : index
      %170 = vector.load %arg10[%c0_210, %c0_211] : memref<128x64xf32, #tpu.memory_space<vmem>>, vector<128x64xf32>
      tpu.vector_store %arg10[%c0_210, %c0_211], %169 {strides = array<i32>} : memref<128x64xf32, #tpu.memory_space<vmem>>, vector<128x64xf32>,
      %c0_212 = arith.constant 0 : index
      %c2_213 = arith.constant 2 : index
      %c0_214 = arith.constant 0 : index
      %c0_215 = arith.constant 0 : index
      %171 = vector.load %arg9[%c0_212, %c2_213, %c0_214, %c0_215] : memref<2x10x8x192xbf16, #tpu.memory_space<vmem>>, vector<2x8x8x192xbf16>
      %172 = vector.shape_cast %171 : vector<2x8x8x192xbf16> to vector<128x192xbf16>
      %c3_i32_216 = arith.constant 3 : i32
      %173 = arith.muli %arg11, %c3_i32_216 : i32
      %c2_i32 = arith.constant 2 : i32
      %174 = arith.addi %173, %c2_i32 : i32
      %c0_217 = arith.constant 0 : index
      %175 = arith.index_cast %174 : i32 to index
      %c0_218 = arith.constant 0 : index
      %c0_219 = arith.constant 0 : index
      %176 = vector.load %arg3[%c0_217, %175, %c0_218, %c0_219] : memref<1x54x192x64xbf16, #tpu.memory_space<vmem>>, vector<1x1x192x64xbf16>
      %177 = vector.shape_cast %176 : vector<1x1x192x64xbf16> to vector<192x64xbf16>
      %cst_220 = arith.constant dense<0.000000e+00> : vector<128x64xf32>
      %178 = tpu.matmul %172, %177, %cst_220 {dimension_numbers = #tpu.dot_dimension_numbers<[1], [0], [0], [1], [0, 0, 1, 1], [], []>} : vector<128x192xbf16>, vector<192x64xbf16>, vector<128x64xf32> -> vector<128x64xf32>
      %c0_221 = arith.constant 0 : index
      %c0_222 = arith.constant 0 : index
      %179 = vector.load %arg10[%c0_221, %c0_222] : memref<128x64xf32, #tpu.memory_space<vmem>>, vector<128x64xf32>
      %180 = arith.addf %179, %178 : vector<128x64xf32>
      %c0_223 = arith.constant 0 : index
      %c0_224 = arith.constant 0 : index
      %181 = vector.load %arg10[%c0_223, %c0_224] : memref<128x64xf32, #tpu.memory_space<vmem>>, vector<128x64xf32>
      tpu.vector_store %arg10[%c0_223, %c0_224], %180 {strides = array<i32>} : memref<128x64xf32, #tpu.memory_space<vmem>>, vector<128x64xf32>,
      %c0_225 = arith.constant 0 : index
      %c0_226 = arith.constant 0 : index
      %182 = vector.load %arg10[%c0_225, %c0_226] : memref<128x64xf32, #tpu.memory_space<vmem>>, vector<128x64xf32>
      %c1_i32_227 = arith.constant 1 : i32
      %183 = arith.addi %arg11, %c1_i32_227 : i32
      %c0_228 = arith.constant 0 : index
      %184 = arith.index_cast %183 : i32 to index
      %c0_229 = arith.constant 0 : index
      %c0_230 = arith.constant 0 : index
      %185 = vector.load %arg5[%c0_228, %184, %c0_229, %c0_230] : memref<1x20x1x64xf32, #tpu.memory_space<vmem>>, vector<1x1x1x64xf32>
      %186 = vector.shape_cast %185 : vector<1x1x1x64xf32> to vector<1x64xf32>
      %187 = vector.broadcast %186 : vector<1x64xf32> to vector<128x64xf32>
      %188 = arith.addf %182, %187 : vector<128x64xf32>
      %cst_231 = arith.constant 0.000000e+00 : f32
      %189 = vector.broadcast %cst_231 : f32 to vector<128x64xf32>
      %190 = arith.maximumf %188, %189 : vector<128x64xf32>
      %191 = vector.shape_cast %190 : vector<128x64xf32> to vector<2x8x8x64xf32>
      %192 = arith.truncf %191 : vector<2x8x8x64xf32> to vector<2x8x8x64xbf16>
      %c0_232 = arith.constant 0 : index
      %c1_233 = arith.constant 1 : index
      %c1_234 = arith.constant 1 : index
      %c0_235 = arith.constant 0 : index
      %193 = vector.load %arg8[%c0_232, %c1_233, %c1_234, %c0_235] : memref<2x10x10x64xbf16, #tpu.memory_space<vmem>>, vector<2x8x8x64xbf16>
      tpu.vector_store %arg8[%c0_232, %c1_233, %c1_234, %c0_235], %192 {strides = array<i32>} : memref<2x10x10x64xbf16, #tpu.memory_space<vmem>>, vector<2x8x8x64xbf16>,
    }
    %c18_i32_103 = arith.constant 18 : i32
    %c0_104 = arith.constant 0 : index
    %c0_105 = arith.constant 0 : index
    %c0_106 = arith.constant 0 : index
    %c0_107 = arith.constant 0 : index
    %98 = vector.load %arg8[%c0_104, %c0_105, %c0_106, %c0_107] : memref<2x10x10x64xbf16, #tpu.memory_space<vmem>>, vector<2x10x8x64xbf16>
    %c0_108 = arith.constant 0 : index
    %c0_109 = arith.constant 0 : index
    %c0_110 = arith.constant 0 : index
    %c0_111 = arith.constant 0 : index
    %99 = vector.load %arg9[%c0_108, %c0_109, %c0_110, %c0_111] : memref<2x10x8x192xbf16, #tpu.memory_space<vmem>>, vector<2x10x8x64xbf16>
    tpu.vector_store %arg9[%c0_108, %c0_109, %c0_110, %c0_111], %98 {strides = array<i32>} : memref<2x10x8x192xbf16, #tpu.memory_space<vmem>>, vector<2x10x8x64xbf16>,
    %c0_112 = arith.constant 0 : index
    %c0_113 = arith.constant 0 : index
    %c1_114 = arith.constant 1 : index
    %c0_115 = arith.constant 0 : index
    %100 = vector.load %arg8[%c0_112, %c0_113, %c1_114, %c0_115] : memref<2x10x10x64xbf16, #tpu.memory_space<vmem>>, vector<2x10x8x64xbf16>
    %c0_116 = arith.constant 0 : index
    %c0_117 = arith.constant 0 : index
    %c0_118 = arith.constant 0 : index
    %c64 = arith.constant 64 : index
    %101 = vector.load %arg9[%c0_116, %c0_117, %c0_118, %c64] : memref<2x10x8x192xbf16, #tpu.memory_space<vmem>>, vector<2x10x8x64xbf16>
    tpu.vector_store %arg9[%c0_116, %c0_117, %c0_118, %c64], %100 {strides = array<i32>} : memref<2x10x8x192xbf16, #tpu.memory_space<vmem>>, vector<2x10x8x64xbf16>,
    %c0_119 = arith.constant 0 : index
    %c0_120 = arith.constant 0 : index
    %c2_121 = arith.constant 2 : index
    %c0_122 = arith.constant 0 : index
    %102 = vector.load %arg8[%c0_119, %c0_120, %c2_121, %c0_122] : memref<2x10x10x64xbf16, #tpu.memory_space<vmem>>, vector<2x10x8x64xbf16>
    %c0_123 = arith.constant 0 : index
    %c0_124 = arith.constant 0 : index
    %c0_125 = arith.constant 0 : index
    %c128 = arith.constant 128 : index
    %103 = vector.load %arg9[%c0_123, %c0_124, %c0_125, %c128] : memref<2x10x8x192xbf16, #tpu.memory_space<vmem>>, vector<2x10x8x64xbf16>
    tpu.vector_store %arg9[%c0_123, %c0_124, %c0_125, %c128], %102 {strides = array<i32>} : memref<2x10x8x192xbf16, #tpu.memory_space<vmem>>, vector<2x10x8x64xbf16>,
    %cst_126 = arith.constant 0.000000e+00 : f32
    %104 = vector.broadcast %cst_126 : f32 to vector<128x1xf32>
    %c0_127 = arith.constant 0 : index
    %c0_128 = arith.constant 0 : index
    %c0_129 = arith.constant 0 : index
    %c0_130 = arith.constant 0 : index
    %105 = vector.load %arg9[%c0_127, %c0_128, %c0_129, %c0_130] : memref<2x10x8x192xbf16, #tpu.memory_space<vmem>>, vector<2x8x8x192xbf16>
    %106 = vector.shape_cast %105 : vector<2x8x8x192xbf16> to vector<128x192xbf16>
    %107 = arith.extf %106 : vector<128x192xbf16> to vector<128x192xf32>
    %c0_131 = arith.constant 0 : index
    %c0_132 = arith.constant 0 : index
    %c0_133 = arith.constant 0 : index
    %108 = vector.load %arg4[%c0_131, %c0_132, %c0_133] : memref<1x3x192xf32, #tpu.memory_space<vmem>>, vector<1x1x192xf32>
    %109 = vector.shape_cast %108 : vector<1x1x192xf32> to vector<1x192xf32>
    %110 = vector.broadcast %109 : vector<1x192xf32> to vector<128x192xf32>
    %111 = arith.mulf %107, %110 : vector<128x192xf32>
    %cst_134 = arith.constant dense<0.000000e+00> : vector<128xf32>
    %112 = vector.multi_reduction <add>, %111, %cst_134 [1] : vector<128x192xf32> to vector<128xf32>
    %113 = vector.shape_cast %112 : vector<128xf32> to vector<128x1xf32>
    %114 = arith.addf %104, %113 : vector<128x1xf32>
    %c0_135 = arith.constant 0 : index
    %c1_136 = arith.constant 1 : index
    %c0_137 = arith.constant 0 : index
    %c0_138 = arith.constant 0 : index
    %115 = vector.load %arg9[%c0_135, %c1_136, %c0_137, %c0_138] : memref<2x10x8x192xbf16, #tpu.memory_space<vmem>>, vector<2x8x8x192xbf16>
    %116 = vector.shape_cast %115 : vector<2x8x8x192xbf16> to vector<128x192xbf16>
    %117 = arith.extf %116 : vector<128x192xbf16> to vector<128x192xf32>
    %c0_139 = arith.constant 0 : index
    %c1_140 = arith.constant 1 : index
    %c0_141 = arith.constant 0 : index
    %118 = vector.load %arg4[%c0_139, %c1_140, %c0_141] : memref<1x3x192xf32, #tpu.memory_space<vmem>>, vector<1x1x192xf32>
    %119 = vector.shape_cast %118 : vector<1x1x192xf32> to vector<1x192xf32>
    %120 = vector.broadcast %119 : vector<1x192xf32> to vector<128x192xf32>
    %121 = arith.mulf %117, %120 : vector<128x192xf32>
    %cst_142 = arith.constant dense<0.000000e+00> : vector<128xf32>
    %122 = vector.multi_reduction <add>, %121, %cst_142 [1] : vector<128x192xf32> to vector<128xf32>
    %123 = vector.shape_cast %122 : vector<128xf32> to vector<128x1xf32>
    %124 = arith.addf %114, %123 : vector<128x1xf32>
    %c0_143 = arith.constant 0 : index
    %c2_144 = arith.constant 2 : index
    %c0_145 = arith.constant 0 : index
    %c0_146 = arith.constant 0 : index
    %125 = vector.load %arg9[%c0_143, %c2_144, %c0_145, %c0_146] : memref<2x10x8x192xbf16, #tpu.memory_space<vmem>>, vector<2x8x8x192xbf16>
    %126 = vector.shape_cast %125 : vector<2x8x8x192xbf16> to vector<128x192xbf16>
    %127 = arith.extf %126 : vector<128x192xbf16> to vector<128x192xf32>
    %c0_147 = arith.constant 0 : index
    %c2_148 = arith.constant 2 : index
    %c0_149 = arith.constant 0 : index
    %128 = vector.load %arg4[%c0_147, %c2_148, %c0_149] : memref<1x3x192xf32, #tpu.memory_space<vmem>>, vector<1x1x192xf32>
    %129 = vector.shape_cast %128 : vector<1x1x192xf32> to vector<1x192xf32>
    %130 = vector.broadcast %129 : vector<1x192xf32> to vector<128x192xf32>
    %131 = arith.mulf %127, %130 : vector<128x192xf32>
    %cst_150 = arith.constant dense<0.000000e+00> : vector<128xf32>
    %132 = vector.multi_reduction <add>, %131, %cst_150 [1] : vector<128x192xf32> to vector<128xf32>
    %133 = vector.shape_cast %132 : vector<128xf32> to vector<128x1xf32>
    %134 = arith.addf %124, %133 : vector<128x1xf32>
    %c0_151 = arith.constant 0 : index
    %c19 = arith.constant 19 : index
    %c0_152 = arith.constant 0 : index
    %c0_153 = arith.constant 0 : index
    %135 = vector.load %arg5[%c0_151, %c19, %c0_152, %c0_153] : memref<1x20x1x64xf32, #tpu.memory_space<vmem>>, vector<1x1x1x1xf32>
    %136 = vector.shape_cast %135 : vector<1x1x1x1xf32> to vector<1x1xf32>
    %137 = vector.broadcast %136 : vector<1x1xf32> to vector<128x1xf32>
    %138 = arith.addf %134, %137 : vector<128x1xf32>
    %139 = vector.shape_cast %138 : vector<128x1xf32> to vector<2x8x8x1xf32>
    %c0_154 = arith.constant 0 : index
    %c0_155 = arith.constant 0 : index
    %c0_156 = arith.constant 0 : index
    %c0_157 = arith.constant 0 : index
    %140 = vector.load %arg1[%c0_154, %c0_155, %c0_156, %c0_157] : memref<2x8x8x1xf32, #tpu.memory_space<vmem>>, vector<2x8x8x1xf32>
    %141 = arith.addf %139, %140 : vector<2x8x8x1xf32>
    %c0_158 = arith.constant 0 : index
    %c0_159 = arith.constant 0 : index
    %c0_160 = arith.constant 0 : index
    %c0_161 = arith.constant 0 : index
    %c0_162 = arith.constant 0 : index
    %142 = vector.load %arg6[%c0_158, %c0_159, %c0_160, %c0_161, %c0_162] : memref<1x2x8x8x1xf32, #tpu.memory_space<vmem>>, vector<1x2x8x8x1xf32>
    %143 = vector.shape_cast %142 : vector<1x2x8x8x1xf32> to vector<2x8x8x1xf32>
    %144 = vector.shape_cast %141 : vector<2x8x8x1xf32> to vector<1x2x8x8x1xf32>
    tpu.vector_store %arg6[%c0_158, %c0_159, %c0_160, %c0_161, %c0_162], %144 {strides = array<i32>} : memref<1x2x8x8x1xf32, #tpu.memory_space<vmem>>, vector<1x2x8x8x1xf32>,
    return
  }
  func.func @transform_0(%arg0: i32) -> (i32, i32, i32, i32) {
    %c0_i32 = arith.constant 0 : i32
    %c0_i32_0 = arith.constant 0 : i32
    %c0_i32_1 = arith.constant 0 : i32
    %c0_i32_2 = arith.constant 0 : i32
    %c0_i32_3 = arith.constant 0 : i32
    return %c0_i32, %c0_i32_0, %c0_i32_1, %c0_i32_2 : i32, i32, i32, i32
  }
  func.func @transform_1(%arg0: i32) -> (i32, i32, i32) {
    %c0_i32 = arith.constant 0 : i32
    %c0_i32_0 = arith.constant 0 : i32
    %c0_i32_1 = arith.constant 0 : i32
    return %arg0, %c0_i32, %c0_i32_0 : i32, i32, i32
  }
  func.func @transform_2(%arg0: i32) -> (i32, i32, i32, i32) {
    %c0_i32 = arith.constant 0 : i32
    %c0_i32_0 = arith.constant 0 : i32
    %c0_i32_1 = arith.constant 0 : i32
    %c0_i32_2 = arith.constant 0 : i32
    return %arg0, %c0_i32, %c0_i32_0, %c0_i32_1 : i32, i32, i32, i32
  }
  func.func @transform_3(%arg0: i32) -> (i32, i32, i32) {
    %c0_i32 = arith.constant 0 : i32
    %c0_i32_0 = arith.constant 0 : i32
    %c0_i32_1 = arith.constant 0 : i32
    return %arg0, %c0_i32, %c0_i32_0 : i32, i32, i32
  }
  func.func @transform_4(%arg0: i32) -> (i32, i32, i32, i32) {
    %c0_i32 = arith.constant 0 : i32
    %c0_i32_0 = arith.constant 0 : i32
    %c0_i32_1 = arith.constant 0 : i32
    %c0_i32_2 = arith.constant 0 : i32
    return %arg0, %c0_i32, %c0_i32_0, %c0_i32_1 : i32, i32, i32, i32
  }
  func.func @transform_5(%arg0: i32) -> (i32, i32, i32, i32, i32) {
    %c0_i32 = arith.constant 0 : i32
    %c0_i32_0 = arith.constant 0 : i32
    %c0_i32_1 = arith.constant 0 : i32
    %c0_i32_2 = arith.constant 0 : i32
    %c0_i32_3 = arith.constant 0 : i32
    return %arg0, %c0_i32, %c0_i32_0, %c0_i32_1, %c0_i32_2 : i32, i32, i32, i32, i32
  }
}

</mosaic_0001>

<llo_original>
// kernel: tpu_custom_call.1
$region0: #{tpu_custom_call.1}
  #allocation0 [shape = 'u32[]', space=smem, size = 0x4, offset = 0x4, fixed_abs, tag = 'smem constant byte address 0x4 - core index']
  #allocation1 [shape = 'u32[144,128]{1,0:T(1,128)}', space=vmem, size = 0x12000, scoped, tag = 'internal scratch']
  #allocation2 [shape = 'f32[2,10,10,1]{3,2,1,0:T(8,128)}', space=vmem, size = 0x28000, scoped, tag = 'scratch operand']
  #allocation3 [shape = 'bf16[2,10,10,64]{3,2,1,0:T(8,128)(2,1)}', space=vmem, size = 0x14000, scoped, tag = 'scratch operand']
  #allocation4 [shape = 'bf16[2,10,8,192]{3,2,1,0:T(8,128)(2,1)}', space=vmem, size = 0x14000, scoped, tag = 'scratch operand']
  #allocation5 [shape = 'f32[128,64]{1,0:T(8,128)}', space=vmem, size = 0x10000, scoped, tag = 'scratch operand']
  %s0 = inlined_call_operand.vmem [shape: f32[2,8,8,1], index: 0, kind: input, shape index: {}]
  %s1 = inlined_call_operand.vmem [shape: f32[2,9,64], index: 1, kind: input, shape index: {}]
  %s2 = inlined_call_operand.vmem [shape: bf16[2,54,192,64], index: 2, kind: input, shape index: {}]
  %s3 = inlined_call_operand.vmem [shape: f32[2,3,192], index: 3, kind: input, shape index: {}]
  %s4 = inlined_call_operand.vmem [shape: f32[2,20,1,64], index: 4, kind: input, shape index: {}]
  %s5 = inlined_call_operand.vmem [shape: f32[2,2,8,8,1], index: 5, kind: output, shape index: {}]
  %s6 = sld [smem:[#allocation0]]
  $region60: #{tpu_custom_call.1} parent=0
    _
  %s8 = ssub.s32 1, %s6
  %s9 = scalar_select 0, %s8, %s6
  loop: start=0, step=1, limit=4
  $region2: #{tpu_custom_call.1} parent=0 // loop_pre_header
    _
  $region3: #{tpu_custom_call.1} parent=0 // loop_header
    %s11 = sphi 0, %s15
    %p12 = scmp.ge.s32.totalorder %s11, 4
    %s19 = sphi 0, %s19
    %s21 = sphi 0, %s19
    %s22 = sphi 0, %s21
    %s36 = sphi 0, %s22
    %s42 = sphi 0, %s44
    %s45 = sphi 0, %s42
    %s46 = sphi 0, %s45
    %s62 = sphi 0, %s46
    %s68 = sphi 0, %s70
    %s71 = sphi 0, %s68
    %s72 = sphi 0, %s71
    %s88 = sphi 0, %s72
    %s94 = sphi 0, %s96
    %s97 = sphi 0, %s94
    %s98 = sphi 0, %s97
    %s114 = sphi 0, %s98
    %s120 = sphi 0, %s122
    %s123 = sphi 0, %s120
    %s124 = sphi 0, %s123
    %s140 = sphi 0, %s124
    %s146 = sphi 0, %s148
    %s149 = sphi 0, %s146
    %s150 = sphi 0, %s149
    %s166 = sphi 0, %s150
  $region4: #{tpu_custom_call.1} parent=0 // loop_header_branch
    %14 = sbr.rel (%p12) target = $region8
  $region5: #{tpu_custom_call.1} parent=0 // loop_body
    %s16 = ssub.s32 %s11, 1
    %s17 = ssub.s32 %s11, 2
    %s18 = sadd.s32 %s11, 1
    %s20 = sadd.s32 %s19, 1
    %p23 = scmp.eq.s32.totalorder %s11, 1
    %p24 = scmp.ne.s32.totalorder %s19, %s21
    %p25 = scmp.eq.s32.totalorder %s11, 0
    %p26 = por %p24, %p25
    %p27 = scmp.ne.s32.totalorder %s19, %s21
    %p28 = scmp.eq.s32.totalorder %s16, 1
    %p29 = por %p27, %p28
    %p30 = scmp.ne.s32.totalorder %s21, %s22
    %p31 = scmp.eq.s32.totalorder %s16, 0
    %p32 = por %p30, %p31
    %p33 = scmp.ne.s32.totalorder %s21, %s22
    %p34 = scmp.eq.s32.totalorder %s17, 1
    %p35 = por %p33, %p34
    %p37 = scmp.ne.s32.totalorder %s22, %s36
    %p38 = scmp.eq.s32.totalorder %s17, 0
    %p39 = por %p37, %p38
    %s40 = ssub.s32 %s11, %s18
    %p41 = scmp.eq.s32.totalorder %s40, 0
    %s43 = sadd.s32 %s42, 1
    %s44 = scalar_select %p41, %s42, %s43
    %p47 = pneg %p41
    %p48 = scmp.eq.s32.totalorder %s11, 1
    %p49 = por %p47, %p48
    %p50 = scmp.ne.s32.totalorder %s42, %s45
    %p51 = scmp.eq.s32.totalorder %s11, 0
    %p52 = por %p50, %p51
    %p53 = scmp.ne.s32.totalorder %s42, %s45
    %p54 = scmp.eq.s32.totalorder %s16, 1
    %p55 = por %p53, %p54
    %p56 = scmp.ne.s32.totalorder %s45, %s46
    %p57 = scmp.eq.s32.totalorder %s16, 0
    %p58 = por %p56, %p57
    %p59 = scmp.ne.s32.totalorder %s45, %s46
    %p60 = scmp.eq.s32.totalorder %s17, 1
    %p61 = por %p59, %p60
    %p63 = scmp.ne.s32.totalorder %s46, %s62
    %p64 = scmp.eq.s32.totalorder %s17, 0
    %p65 = por %p63, %p64
    %s66 = ssub.s32 %s11, %s18
    %p67 = scmp.eq.s32.totalorder %s66, 0
    %s69 = sadd.s32 %s68, 1
    %s70 = scalar_select %p67, %s68, %s69
    %p73 = pneg %p67
    %p74 = scmp.eq.s32.totalorder %s11, 1
    %p75 = por %p73, %p74
    %p76 = scmp.ne.s32.totalorder %s68, %s71
    %p77 = scmp.eq.s32.totalorder %s11, 0
    %p78 = por %p76, %p77
    %p79 = scmp.ne.s32.totalorder %s68, %s71
    %p80 = scmp.eq.s32.totalorder %s16, 1
    %p81 = por %p79, %p80
    %p82 = scmp.ne.s32.totalorder %s71, %s72
    %p83 = scmp.eq.s32.totalorder %s16, 0
    %p84 = por %p82, %p83
    %p85 = scmp.ne.s32.totalorder %s71, %s72
    %p86 = scmp.eq.s32.totalorder %s17, 1
    %p87 = por %p85, %p86
    %p89 = scmp.ne.s32.totalorder %s72, %s88
    %p90 = scmp.eq.s32.totalorder %s17, 0
    %p91 = por %p89, %p90
    %s92 = ssub.s32 %s11, %s18
    %p93 = scmp.eq.s32.totalorder %s92, 0
    %s95 = sadd.s32 %s94, 1
    %s96 = scalar_select %p93, %s94, %s95
    %p99 = pneg %p93
    %p100 = scmp.eq.s32.totalorder %s11, 1
    %p101 = por %p99, %p100
    %p102 = scmp.ne.s32.totalorder %s94, %s97
    %p103 = scmp.eq.s32.totalorder %s11, 0
    %p104 = por %p102, %p103
    %p105 = scmp.ne.s32.totalorder %s94, %s97
    %p106 = scmp.eq.s32.totalorder %s16, 1
    %p107 = por %p105, %p106
    %p108 = scmp.ne.s32.totalorder %s97, %s98
    %p109 = scmp.eq.s32.totalorder %s16, 0
    %p110 = por %p108, %p109
    %p111 = scmp.ne.s32.totalorder %s97, %s98
    %p112 = scmp.eq.s32.totalorder %s17, 1
    %p113 = por %p111, %p112
    %p115 = scmp.ne.s32.totalorder %s98, %s114
    %p116 = scmp.eq.s32.totalorder %s17, 0
    %p117 = por %p115, %p116
    %s118 = ssub.s32 %s11, %s18
    %p119 = scmp.eq.s32.totalorder %s118, 0
    %s121 = sadd.s32 %s120, 1
    %s122 = scalar_select %p119, %s120, %s121
    %p125 = pneg %p119
    %p126 = scmp.eq.s32.totalorder %s11, 1
    %p127 = por %p125, %p126
    %p128 = scmp.ne.s32.totalorder %s120, %s123
    %p129 = scmp.eq.s32.totalorder %s11, 0
    %p130 = por %p128, %p129
    %p131 = scmp.ne.s32.totalorder %s120, %s123
    %p132 = scmp.eq.s32.totalorder %s16, 1
    %p133 = por %p131, %p132
    %p134 = scmp.ne.s32.totalorder %s123, %s124
    %p135 = scmp.eq.s32.totalorder %s16, 0
    %p136 = por %p134, %p135
    %p137 = scmp.ne.s32.totalorder %s123, %s124
    %p138 = scmp.eq.s32.totalorder %s17, 1
    %p139 = por %p137, %p138
    %p141 = scmp.ne.s32.totalorder %s124, %s140
    %p142 = scmp.eq.s32.totalorder %s17, 0
    %p143 = por %p141, %p142
    %s144 = ssub.s32 %s11, %s18
    %p145 = scmp.eq.s32.totalorder %s144, 0
    %s147 = sadd.s32 %s146, 1
    %s148 = scalar_select %p145, %s146, %s147
    %p151 = pneg %p145
    %p152 = scmp.eq.s32.totalorder %s11, 1
    %p153 = por %p151, %p152
    %p154 = scmp.ne.s32.totalorder %s146, %s149
    %p155 = scmp.eq.s32.totalorder %s11, 0
    %p156 = por %p154, %p155
    %p157 = scmp.ne.s32.totalorder %s146, %s149
    %p158 = scmp.eq.s32.totalorder %s16, 1
    %p159 = por %p157, %p158
    %p160 = scmp.ne.s32.totalorder %s149, %s150
    %p161 = scmp.eq.s32.totalorder %s16, 0
    %p162 = por %p160, %p161
    %p163 = scmp.ne.s32.totalorder %s149, %s150
    %p164 = scmp.eq.s32.totalorder %s17, 1
    %p165 = por %p163, %p164
    %p167 = scmp.ne.s32.totalorder %s150, %s166
    %p168 = scmp.eq.s32.totalorder %s17, 0
    %p169 = por %p167, %p168
    %p170 = scmp.le.s32.totalorder 1, %s11
    %p171 = scmp.lt.s32.totalorder %s11, 3
    %p172 = pnand %p170, %p171
    %p173 = pneg %p172
    // Predicated region
    $region9: #{tpu_custom_call.1} parent=5 // pred_check
      _
    $region10: #{tpu_custom_call.1} parent=5 // pred_check_branch
      %175 = sbr.rel (%p172) target = $region12
    $region11: #{tpu_custom_call.1} parent=5 // pred_region
      %s176 = ssub.s32 %s11, 1
      // Predicated region
      $region13: #{tpu_custom_call.1} parent=11 // pred_check
        %p177 = pneg %p32
      $region14: #{tpu_custom_call.1} parent=11 // pred_check_branch
        %179 = sbr.rel (%p177) target = $region16
      $region15: #{tpu_custom_call.1} parent=11 // pred_region
        _
      $region16: #{tpu_custom_call.1} parent=11 // pred_fallthru
        _
    $region12: #{tpu_custom_call.1} parent=5 // pred_fallthru
      _
    %p180 = scmp.lt.s32.totalorder %s11, 2
    // Predicated region
    $region17: #{tpu_custom_call.1} parent=5 // pred_check
      %p181 = pneg %p180
    $region18: #{tpu_custom_call.1} parent=5 // pred_check_branch
      %183 = sbr.rel (%p181) target = $region20
    $region19: #{tpu_custom_call.1} parent=5 // pred_region
      // Predicated region
      $region21: #{tpu_custom_call.1} parent=19 // pred_check
        %p184 = pneg %p52
      $region22: #{tpu_custom_call.1} parent=19 // pred_check_branch
        %186 = sbr.rel (%p184) target = $region24
      $region23: #{tpu_custom_call.1} parent=19 // pred_region
        %p187 = scmp.lt.s32.totalorder %s11, 1
        %s188 = scalar_select %p187, %s11, 1
        %s189 = smul.addr %s188, 2
        %s190 = smul.addr %s189, 8
        %s191 = scalar_lea.vmem %s1, %s190
      $region24: #{tpu_custom_call.1} parent=19 // pred_fallthru
        _
      // Predicated region
      $region25: #{tpu_custom_call.1} parent=19 // pred_check
        %p192 = pneg %p78
      $region26: #{tpu_custom_call.1} parent=19 // pred_check_branch
        %194 = sbr.rel (%p192) target = $region28
      $region27: #{tpu_custom_call.1} parent=19 // pred_region
        %p195 = scmp.lt.s32.totalorder %s11, 1
        %s196 = scalar_select %p195, %s11, 1
        %s197 = smul.addr %s196, 1296
        %s198 = smul.addr %s197, 4
        %s199 = scalar_lea.vmem %s2, %s198
      $region28: #{tpu_custom_call.1} parent=19 // pred_fallthru
        _
      // Predicated region
      $region29: #{tpu_custom_call.1} parent=19 // pred_check
        %p200 = pneg %p104
      $region30: #{tpu_custom_call.1} parent=19 // pred_check_branch
        %202 = sbr.rel (%p200) target = $region32
      $region31: #{tpu_custom_call.1} parent=19 // pred_region
        %p203 = scmp.lt.s32.totalorder %s11, 1
        %s204 = scalar_select %p203, %s11, 1
        %s205 = smul.addr %s204, 2
        %s206 = smul.addr %s205, 4
        %s207 = scalar_lea.vmem %s3, %s206
      $region32: #{tpu_custom_call.1} parent=19 // pred_fallthru
        _
      // Predicated region
      $region33: #{tpu_custom_call.1} parent=19 // pred_check
        %p208 = pneg %p130
      $region34: #{tpu_custom_call.1} parent=19 // pred_check_branch
        %210 = sbr.rel (%p208) target = $region36
      $region35: #{tpu_custom_call.1} parent=19 // pred_region
        %p211 = scmp.lt.s32.totalorder %s11, 1
        %s212 = scalar_select %p211, %s11, 1
        %s213 = smul.addr %s212, 20
        %s214 = scalar_lea.vmem %s4, %s213
      $region36: #{tpu_custom_call.1} parent=19 // pred_fallthru
        _
    $region20: #{tpu_custom_call.1} parent=5 // pred_fallthru
      _
    %p215 = scmp.le.s32.totalorder 1, %s11
    %p216 = scmp.lt.s32.totalorder %s11, 3
    %p217 = pnand %p215, %p216
    %p218 = pneg %p217
    // Predicated region
    $region37: #{tpu_custom_call.1} parent=5 // pred_check
      _
    $region38: #{tpu_custom_call.1} parent=5 // pred_check_branch
      %220 = sbr.rel (%p217) target = $region40
    $region39: #{tpu_custom_call.1} parent=5 // pred_region
      %s221 = ssub.s32 %s11, 1
      %p222 = pneg %p32
      %p223 = pneg %p29
      %p224 = scmp.lt.s32.totalorder %s16, 1
      %s225 = scalar_select %p224, %s16, 1
      %s226 = smul.addr %s225, 2
      %s227 = smul.addr %s226, 8
      %s228 = scalar_lea.vmem %s1, %s227
      %p229 = pneg %p58
      %p230 = pneg %p55
      %p231 = scmp.lt.s32.totalorder %s16, 1
      %s232 = scalar_select %p231, %s16, 1
      %s233 = smul.addr %s232, 1296
      %s234 = smul.addr %s233, 4
      %s235 = scalar_lea.vmem %s2, %s234
      %p236 = pneg %p84
      %p237 = pneg %p81
      %p238 = scmp.lt.s32.totalorder %s16, 1
      %s239 = scalar_select %p238, %s16, 1
      %s240 = smul.addr %s239, 2
      %s241 = smul.addr %s240, 4
      %s242 = scalar_lea.vmem %s3, %s241
      %p243 = pneg %p110
      %p244 = pneg %p107
      %p245 = scmp.lt.s32.totalorder %s16, 1
      %s246 = scalar_select %p245, %s16, 1
      %s247 = smul.addr %s246, 20
      %s248 = scalar_lea.vmem %s4, %s247
      %p249 = pneg %p136
      %p250 = pneg %p133
      %p251 = pneg %p162
      %p252 = pneg %p159
      %p253 = scmp.lt.s32.totalorder %s16, 1
      %s254 = scalar_select %p253, %s16, 1
      %s255 = smul.addr %s254, 16
      %s256 = smul.addr %s255, 8
      %s257 = scalar_lea.vmem %s5, %s256
      %p258 = scmp.lt.s32.totalorder %s16, 1
      %s259 = scalar_select %p258, %s16, 1
      %s260 = smul.addr %s259, 2
      %s261 = smul.addr %s260, 8
      %s262 = scalar_lea.vmem %s1, %s261
      %p263 = scmp.lt.s32.totalorder %s16, 1
      %s264 = scalar_select %p263, %s16, 1
      %s265 = smul.addr %s264, 1296
      %s266 = smul.addr %s265, 4
      %s267 = scalar_lea.vmem %s2, %s266
      %p268 = scmp.lt.s32.totalorder %s16, 1
      %s269 = scalar_select %p268, %s16, 1
      %s270 = smul.addr %s269, 2
      %s271 = smul.addr %s270, 4
      %s272 = scalar_lea.vmem %s3, %s271
      %p273 = scmp.lt.s32.totalorder %s16, 1
      %s274 = scalar_select %p273, %s16, 1
      %s275 = smul.addr %s274, 20
      %s276 = scalar_lea.vmem %s4, %s275
      %p277 = scmp.lt.s32.totalorder %s16, 1
      %s278 = scalar_select %p277, %s16, 1
      %s279 = smul.addr %s278, 16
      %s280 = smul.addr %s279, 8
      %s281 = scalar_lea.vmem %s5, %s280
      %vm283 = vcmask 7168
      %284 = vst.msk [vmem:[#allocation2] sm:$0xff] %vm283, 0.0
      %vm285 = vcmask 1024
      %286 = vst.msk [vmem:[#allocation2 + $0x8] sm:$0x3] %vm285, 0.0
      %287 = vst.msk [vmem:[#allocation2 + $0xa0] sm:$0xff] %vm283, 0.0
      %288 = vst.msk [vmem:[#allocation2 + $0xa8] sm:$0x3] %vm285, 0.0
      %s289 = scalar_lea.vmem [#allocation2], 144
      %290 = vst.msk [vmem:[%s289] sm:$0xff] %vm283, 0.0
      %291 = vst.msk [vmem:[%s289 + $0x8] sm:$0x3] %vm285, 0.0
      %292 = vst.msk [vmem:[%s289 + $0xa0] sm:$0xff] %vm283, 0.0
      %293 = vst.msk [vmem:[%s289 + $0xa8] sm:$0x3] %vm285, 0.0
      %vm294 = vcmask 0
      %295 = vst.msk [vmem:[#allocation2] sm:$0x1] %vm294, 0.0
      %296 = vst.msk [vmem:[#allocation2 + $0x10] sm:$0x1] %vm294, 0.0
      %297 = vst.msk [vmem:[#allocation2 + $0x20] sm:$0x1] %vm294, 0.0
      %298 = vst.msk [vmem:[#allocation2 + $0x30] sm:$0x1] %vm294, 0.0
      %299 = vst.msk [vmem:[#allocation2 + $0x40] sm:$0x1] %vm294, 0.0
      %300 = vst.msk [vmem:[#allocation2 + $0x50] sm:$0x1] %vm294, 0.0
      %301 = vst.msk [vmem:[#allocation2 + $0x60] sm:$0x1] %vm294, 0.0
      %302 = vst.msk [vmem:[#allocation2 + $0x70] sm:$0x1] %vm294, 0.0
      %303 = vst.msk [vmem:[#allocation2 + $0x80] sm:$0x1] %vm294, 0.0
      %304 = vst.msk [vmem:[#allocation2 + $0x90] sm:$0x1] %vm294, 0.0
      %305 = vst.msk [vmem:[#allocation2 + $0xa0] sm:$0x1] %vm294, 0.0
      %306 = vst.msk [vmem:[#allocation2 + $0xb0] sm:$0x1] %vm294, 0.0
      %307 = vst.msk [vmem:[#allocation2 + $0xc0] sm:$0x1] %vm294, 0.0
      %308 = vst.msk [vmem:[#allocation2 + $0xd0] sm:$0x1] %vm294, 0.0
      %309 = vst.msk [vmem:[#allocation2 + $0xe0] sm:$0x1] %vm294, 0.0
      %310 = vst.msk [vmem:[#allocation2 + $0xf0] sm:$0x1] %vm294, 0.0
      %311 = vst.msk [vmem:[#allocation2 + $0x100] sm:$0x1] %vm294, 0.0
      %312 = vst.msk [vmem:[#allocation2 + $0x110] sm:$0x1] %vm294, 0.0
      %313 = vst.msk [vmem:[#allocation2 + $0x120] sm:$0x1] %vm294, 0.0
      %314 = vst.msk [vmem:[#allocation2 + $0x130] sm:$0x1] %vm294, 0.0
      %315 = vst.msk [vmem:[#allocation2 + $0x9] sm:$0x1] %vm294, 0.0
      %316 = vst.msk [vmem:[#allocation2 + $0x19] sm:$0x1] %vm294, 0.0
      %317 = vst.msk [vmem:[#allocation2 + $0x29] sm:$0x1] %vm294, 0.0
      %318 = vst.msk [vmem:[#allocation2 + $0x39] sm:$0x1] %vm294, 0.0
      %319 = vst.msk [vmem:[#allocation2 + $0x49] sm:$0x1] %vm294, 0.0
      %320 = vst.msk [vmem:[#allocation2 + $0x59] sm:$0x1] %vm294, 0.0
      %321 = vst.msk [vmem:[#allocation2 + $0x69] sm:$0x1] %vm294, 0.0
      %322 = vst.msk [vmem:[#allocation2 + $0x79] sm:$0x1] %vm294, 0.0
      %323 = vst.msk [vmem:[#allocation2 + $0x89] sm:$0x1] %vm294, 0.0
      %324 = vst.msk [vmem:[#allocation2 + $0x99] sm:$0x1] %vm294, 0.0
      %325 = vst.msk [vmem:[#allocation2 + $0xa9] sm:$0x1] %vm294, 0.0
      %326 = vst.msk [vmem:[#allocation2 + $0xb9] sm:$0x1] %vm294, 0.0
      %327 = vst.msk [vmem:[#allocation2 + $0xc9] sm:$0x1] %vm294, 0.0
      %328 = vst.msk [vmem:[#allocation2 + $0xd9] sm:$0x1] %vm294, 0.0
      %329 = vst.msk [vmem:[#allocation2 + $0xe9] sm:$0x1] %vm294, 0.0
      %330 = vst.msk [vmem:[#allocation2 + $0xf9] sm:$0x1] %vm294, 0.0
      %331 = vst.msk [vmem:[#allocation2 + $0x109] sm:$0x1] %vm294, 0.0
      %332 = vst.msk [vmem:[#allocation2 + $0x119] sm:$0x1] %vm294, 0.0
      %333 = vst.msk [vmem:[#allocation2 + $0x129] sm:$0x1] %vm294, 0.0
      %334 = vst.msk [vmem:[#allocation2 + $0x139] sm:$0x1] %vm294, 0.0
      %vm335 = vcmask 519168
      %336 = vst.msk [vmem:[#allocation3] sm:$0xf] %vm335, 0
      %vm337 = vcmask 516096
      %338 = vst.msk [vmem:[#allocation3 + $0x4] sm:$0x1] %vm337, 0
      %339 = vst.msk [vmem:[#allocation3 + $0x50] sm:$0xf] %vm335, 0
      %340 = vst.msk [vmem:[#allocation3 + $0x54] sm:$0x1] %vm337, 0
      %s341 = scalar_lea.vmem [#allocation3], 72
      %342 = vst.msk [vmem:[%s341] sm:$0xf] %vm335, 0
      %343 = vst.msk [vmem:[%s341 + $0x4] sm:$0x1] %vm337, 0
      %344 = vst.msk [vmem:[%s341 + $0x50] sm:$0xf] %vm335, 0
      %345 = vst.msk [vmem:[%s341 + $0x54] sm:$0x1] %vm337, 0
      %vm346 = vcmask 516096
      %vm347 = vsmask.f32 256
      %vm348 = vmand %vm346, %vm347
      %v349 = vld [vmem:[#allocation3] sm:$0x1]
      %v350 = vsel %vm348, 0, %v349
      %351 = vst [vmem:[#allocation3] sm:$0x1] %v350
      %v352 = vld [vmem:[#allocation3 + $0x8] sm:$0x1]
      %v353 = vsel %vm348, 0, %v352
      %354 = vst [vmem:[#allocation3 + $0x8] sm:$0x1] %v353
      %v355 = vld [vmem:[#allocation3 + $0x10] sm:$0x1]
      %v356 = vsel %vm348, 0, %v355
      %357 = vst [vmem:[#allocation3 + $0x10] sm:$0x1] %v356
      %v358 = vld [vmem:[#allocation3 + $0x18] sm:$0x1]
      %v359 = vsel %vm348, 0, %v358
      %360 = vst [vmem:[#allocation3 + $0x18] sm:$0x1] %v359
      %v361 = vld [vmem:[#allocation3 + $0x20] sm:$0x1]
      %v362 = vsel %vm348, 0, %v361
      %363 = vst [vmem:[#allocation3 + $0x20] sm:$0x1] %v362
      %v364 = vld [vmem:[#allocation3 + $0x28] sm:$0x1]
      %v365 = vsel %vm348, 0, %v364
      %366 = vst [vmem:[#allocation3 + $0x28] sm:$0x1] %v365
      %v367 = vld [vmem:[#allocation3 + $0x30] sm:$0x1]
      %v368 = vsel %vm348, 0, %v367
      %369 = vst [vmem:[#allocation3 + $0x30] sm:$0x1] %v368
      %v370 = vld [vmem:[#allocation3 + $0x38] sm:$0x1]
      %v371 = vsel %vm348, 0, %v370
      %372 = vst [vmem:[#allocation3 + $0x38] sm:$0x1] %v371
      %v373 = vld [vmem:[#allocation3 + $0x40] sm:$0x1]
      %v374 = vsel %vm348, 0, %v373
      %375 = vst [vmem:[#allocation3 + $0x40] sm:$0x1] %v374
      %v376 = vld [vmem:[#allocation3 + $0x48] sm:$0x1]
      %v377 = vsel %vm348, 0, %v376
      %378 = vst [vmem:[#allocation3 + $0x48] sm:$0x1] %v377
      %v379 = vld [vmem:[#allocation3 + $0x50] sm:$0x1]
      %v380 = vsel %vm348, 0, %v379
      %381 = vst [vmem:[#allocation3 + $0x50] sm:$0x1] %v380
      %v382 = vld [vmem:[#allocation3 + $0x58] sm:$0x1]
      %v383 = vsel %vm348, 0, %v382
      %384 = vst [vmem:[#allocation3 + $0x58] sm:$0x1] %v383
      %v385 = vld [vmem:[#allocation3 + $0x60] sm:$0x1]
      %v386 = vsel %vm348, 0, %v385
      %387 = vst [vmem:[#allocation3 + $0x60] sm:$0x1] %v386
      %v388 = vld [vmem:[#allocation3 + $0x68] sm:$0x1]
      %v389 = vsel %vm348, 0, %v388
      %390 = vst [vmem:[#allocation3 + $0x68] sm:$0x1] %v389
      %v391 = vld [vmem:[#allocation3 + $0x70] sm:$0x1]
      %v392 = vsel %vm348, 0, %v391
      %393 = vst [vmem:[#allocation3 + $0x70] sm:$0x1] %v392
      %v394 = vld [vmem:[#allocation3 + $0x78] sm:$0x1]
      %v395 = vsel %vm348, 0, %v394
      %396 = vst [vmem:[#allocation3 + $0x78] sm:$0x1] %v395
      %v397 = vld [vmem:[#allocation3 + $0x80] sm:$0x1]
      %v398 = vsel %vm348, 0, %v397
      %399 = vst [vmem:[#allocation3 + $0x80] sm:$0x1] %v398
      %v400 = vld [vmem:[#allocation3 + $0x88] sm:$0x1]
      %v401 = vsel %vm348, 0, %v400
      %402 = vst [vmem:[#allocation3 + $0x88] sm:$0x1] %v401
      %v403 = vld [vmem:[#allocation3 + $0x90] sm:$0x1]
      %v404 = vsel %vm348, 0, %v403
      %405 = vst [vmem:[#allocation3 + $0x90] sm:$0x1] %v404
      %v406 = vld [vmem:[#allocation3 + $0x98] sm:$0x1]
      %v407 = vsel %vm348, 0, %v406
      %408 = vst [vmem:[#allocation3 + $0x98] sm:$0x1] %v407
      %vm409 = vsmask.f32 7938
      %vm410 = vmand %vm346, %vm409
      %v411 = vld [vmem:[#allocation3 + $0x4] sm:$0x1]
      %v412 = vsel %vm410, 0, %v411
      %413 = vst [vmem:[#allocation3 + $0x4] sm:$0x1] %v412
      %v414 = vld [vmem:[#allocation3 + $0xc] sm:$0x1]
      %v415 = vsel %vm410, 0, %v414
      %416 = vst [vmem:[#allocation3 + $0xc] sm:$0x1] %v415
      %v417 = vld [vmem:[#allocation3 + $0x14] sm:$0x1]
      %v418 = vsel %vm410, 0, %v417
      %419 = vst [vmem:[#allocation3 + $0x14] sm:$0x1] %v418
      %v420 = vld [vmem:[#allocation3 + $0x1c] sm:$0x1]
      %v421 = vsel %vm410, 0, %v420
      %422 = vst [vmem:[#allocation3 + $0x1c] sm:$0x1] %v421
      %v423 = vld [vmem:[#allocation3 + $0x24] sm:$0x1]
      %v424 = vsel %vm410, 0, %v423
      %425 = vst [vmem:[#allocation3 + $0x24] sm:$0x1] %v424
      %v426 = vld [vmem:[#allocation3 + $0x2c] sm:$0x1]
      %v427 = vsel %vm410, 0, %v426
      %428 = vst [vmem:[#allocation3 + $0x2c] sm:$0x1] %v427
      %v429 = vld [vmem:[#allocation3 + $0x34] sm:$0x1]
      %v430 = vsel %vm410, 0, %v429
      %431 = vst [vmem:[#allocation3 + $0x34] sm:$0x1] %v430
      %v432 = vld [vmem:[#allocation3 + $0x3c] sm:$0x1]
      %v433 = vsel %vm410, 0, %v432
      %434 = vst [vmem:[#allocation3 + $0x3c] sm:$0x1] %v433
      %v435 = vld [vmem:[#allocation3 + $0x44] sm:$0x1]
      %v436 = vsel %vm410, 0, %v435
      %437 = vst [vmem:[#allocation3 + $0x44] sm:$0x1] %v436
      %v438 = vld [vmem:[#allocation3 + $0x4c] sm:$0x1]
      %v439 = vsel %vm410, 0, %v438
      %440 = vst [vmem:[#allocation3 + $0x4c] sm:$0x1] %v439
      %v441 = vld [vmem:[#allocation3 + $0x54] sm:$0x1]
      %v442 = vsel %vm410, 0, %v441
      %443 = vst [vmem:[#allocation3 + $0x54] sm:$0x1] %v442
      %v444 = vld [vmem:[#allocation3 + $0x5c] sm:$0x1]
      %v445 = vsel %vm410, 0, %v444
      %446 = vst [vmem:[#allocation3 + $0x5c] sm:$0x1] %v445
      %v447 = vld [vmem:[#allocation3 + $0x64] sm:$0x1]
      %v448 = vsel %vm410, 0, %v447
      %449 = vst [vmem:[#allocation3 + $0x64] sm:$0x1] %v448
      %v450 = vld [vmem:[#allocation3 + $0x6c] sm:$0x1]
      %v451 = vsel %vm410, 0, %v450
      %452 = vst [vmem:[#allocation3 + $0x6c] sm:$0x1] %v451
      %v453 = vld [vmem:[#allocation3 + $0x74] sm:$0x1]
      %v454 = vsel %vm410, 0, %v453
      %455 = vst [vmem:[#allocation3 + $0x74] sm:$0x1] %v454
      %v456 = vld [vmem:[#allocation3 + $0x7c] sm:$0x1]
      %v457 = vsel %vm410, 0, %v456
      %458 = vst [vmem:[#allocation3 + $0x7c] sm:$0x1] %v457
      %v459 = vld [vmem:[#allocation3 + $0x84] sm:$0x1]
      %v460 = vsel %vm410, 0, %v459
      %461 = vst [vmem:[#allocation3 + $0x84] sm:$0x1] %v460
      %v462 = vld [vmem:[#allocation3 + $0x8c] sm:$0x1]
      %v463 = vsel %vm410, 0, %v462
      %464 = vst [vmem:[#allocation3 + $0x8c] sm:$0x1] %v463
      %v465 = vld [vmem:[#allocation3 + $0x94] sm:$0x1]
      %v466 = vsel %vm410, 0, %v465
      %467 = vst [vmem:[#allocation3 + $0x94] sm:$0x1] %v466
      %v468 = vld [vmem:[#allocation3 + $0x9c] sm:$0x1]
      %v469 = vsel %vm410, 0, %v468
      %470 = vst [vmem:[#allocation3 + $0x9c] sm:$0x1] %v469
      %v471 = vld [vmem:[%s0] sm:$0xff]
      %v472 = vld [vmem:[%s0 + $0x8] sm:$0xff]
      %v473 = vld [vmem:[%s0 + $0x10] sm:$0xff]
      %v474 = vld [vmem:[%s0 + $0x18] sm:$0xff]
      %v475 = vld [vmem:[%s0 + $0x20] sm:$0xff]
      %v476 = vld [vmem:[%s0 + $0x28] sm:$0xff]
      %v477 = vld [vmem:[%s0 + $0x30] sm:$0xff]
      %v478 = vld [vmem:[%s0 + $0x38] sm:$0xff]
      %v479 = vld [vmem:[%s0 + $0x40] sm:$0xff]
      %v480 = vld [vmem:[%s0 + $0x48] sm:$0xff]
      %v481 = vld [vmem:[%s0 + $0x50] sm:$0xff]
      %v482 = vld [vmem:[%s0 + $0x58] sm:$0xff]
      %v483 = vld [vmem:[%s0 + $0x60] sm:$0xff]
      %v484 = vld [vmem:[%s0 + $0x68] sm:$0xff]
      %v485 = vld [vmem:[%s0 + $0x70] sm:$0xff]
      %v486 = vld [vmem:[%s0 + $0x78] sm:$0xff]
      %s487 = scalar_lea.vmem [#allocation2], 16
      %488 = vst.msk [vmem:[%s487 + $0x1] sm:$0xff] %vm283, %v471
      %489 = vst.msk [vmem:[%s487 + $0x11] sm:$0xff] %vm283, %v472
      %490 = vst.msk [vmem:[%s487 + $0x21] sm:$0xff] %vm283, %v473
      %491 = vst.msk [vmem:[%s487 + $0x31] sm:$0xff] %vm283, %v474
      %492 = vst.msk [vmem:[%s487 + $0x41] sm:$0xff] %vm283, %v475
      %493 = vst.msk [vmem:[%s487 + $0x51] sm:$0xff] %vm283, %v476
      %494 = vst.msk [vmem:[%s487 + $0x61] sm:$0xff] %vm283, %v477
      %495 = vst.msk [vmem:[%s487 + $0x71] sm:$0xff] %vm283, %v478
      %496 = vst.msk [vmem:[%s487 + $0xa1] sm:$0xff] %vm283, %v479
      %497 = vst.msk [vmem:[%s487 + $0xb1] sm:$0xff] %vm283, %v480
      %498 = vst.msk [vmem:[%s487 + $0xc1] sm:$0xff] %vm283, %v481
      %499 = vst.msk [vmem:[%s487 + $0xd1] sm:$0xff] %vm283, %v482
      %500 = vst.msk [vmem:[%s487 + $0xe1] sm:$0xff] %vm283, %v483
      %501 = vst.msk [vmem:[%s487 + $0xf1] sm:$0xff] %vm283, %v484
      %502 = vst.msk [vmem:[%s487 + $0x101] sm:$0xff] %vm283, %v485
      %503 = vst.msk [vmem:[%s487 + $0x111] sm:$0xff] %vm283, %v486
      %v504 = vld [vmem:[%s262] sm:$0xff]
      %v505 = vld [vmem:[%s262 + $0x8] sm:$0x1]
      %v506 = vld [vmem:[#allocation2] sm:$0xff]
      %v507 = vld [vmem:[#allocation2 + $0x10] sm:$0xff]
      %v508 = vld [vmem:[#allocation2 + $0x20] sm:$0xff]
      %v509 = vld [vmem:[#allocation2 + $0x30] sm:$0xff]
      %v510 = vld [vmem:[#allocation2 + $0x40] sm:$0xff]
      %v511 = vld [vmem:[#allocation2 + $0x50] sm:$0xff]
      %v512 = vld [vmem:[#allocation2 + $0x60] sm:$0xff]
      %v513 = vld [vmem:[#allocation2 + $0x70] sm:$0xff]
      %v514 = vld [vmem:[#allocation2 + $0xa0] sm:$0xff]
      %v515 = vld [vmem:[#allocation2 + $0xb0] sm:$0xff]
      %v516 = vld [vmem:[#allocation2 + $0xc0] sm:$0xff]
      %v517 = vld [vmem:[#allocation2 + $0xd0] sm:$0xff]
      %v518 = vld [vmem:[#allocation2 + $0xe0] sm:$0xff]
      %v519 = vld [vmem:[#allocation2 + $0xf0] sm:$0xff]
      %v520 = vld [vmem:[#allocation2 + $0x100] sm:$0xff]
      %v521 = vld [vmem:[#allocation2 + $0x110] sm:$0xff]
      %523 = vset.pattern.permute.xlu0 0
      %524 = vperm.xlu0 %523, %v506
      %v525 = vpop.permute.xlu0 %524
      %528 = vset.pattern.permute.xlu0 0
      %529 = vperm.xlu0 %528, %v507
      %v530 = vpop.permute.xlu0 %529
      %533 = vset.pattern.permute.xlu0 0
      %534 = vperm.xlu0 %533, %v508
      %v535 = vpop.permute.xlu0 %534
      %538 = vset.pattern.permute.xlu0 0
      %539 = vperm.xlu0 %538, %v509
      %v540 = vpop.permute.xlu0 %539
      %543 = vset.pattern.permute.xlu0 0
      %544 = vperm.xlu0 %543, %v510
      %v545 = vpop.permute.xlu0 %544
      %548 = vset.pattern.permute.xlu0 0
      %549 = vperm.xlu0 %548, %v511
      %v550 = vpop.permute.xlu0 %549
      %553 = vset.pattern.permute.xlu0 0
      %554 = vperm.xlu0 %553, %v512
      %v555 = vpop.permute.xlu0 %554
      %558 = vset.pattern.permute.xlu0 0
      %559 = vperm.xlu0 %558, %v513
      %v560 = vpop.permute.xlu0 %559
      %563 = vset.pattern.permute.xlu0 0
      %564 = vperm.xlu0 %563, %v514
      %v565 = vpop.permute.xlu0 %564
      %568 = vset.pattern.permute.xlu0 0
      %569 = vperm.xlu0 %568, %v515
      %v570 = vpop.permute.xlu0 %569
      %573 = vset.pattern.permute.xlu0 0
      %574 = vperm.xlu0 %573, %v516
      %v575 = vpop.permute.xlu0 %574
      %578 = vset.pattern.permute.xlu0 0
      %579 = vperm.xlu0 %578, %v517
      %v580 = vpop.permute.xlu0 %579
      %583 = vset.pattern.permute.xlu0 0
      %584 = vperm.xlu0 %583, %v518
      %v585 = vpop.permute.xlu0 %584
      %588 = vset.pattern.permute.xlu0 0
      %589 = vperm.xlu0 %588, %v519
      %v590 = vpop.permute.xlu0 %589
      %593 = vset.pattern.permute.xlu0 0
      %594 = vperm.xlu0 %593, %v520
      %v595 = vpop.permute.xlu0 %594
      %598 = vset.pattern.permute.xlu0 0
      %599 = vperm.xlu0 %598, %v521
      %v600 = vpop.permute.xlu0 %599
      %v602 = vlaneseq
      %v603 = vshrl.u32 %v602, 7
      %v604 = vsub.s32 0, %v603
      %v605 = vrot.slane %v504, %v604
      %v606 = vmul.f32 %v525, %v605
      %v607 = vmul.f32 %v530, %v605
      %v608 = vmul.f32 %v535, %v605
      %v609 = vmul.f32 %v540, %v605
      %v610 = vmul.f32 %v545, %v605
      %v611 = vmul.f32 %v550, %v605
      %v612 = vmul.f32 %v555, %v605
      %v613 = vmul.f32 %v560, %v605
      %v614 = vmul.f32 %v565, %v605
      %v615 = vmul.f32 %v570, %v605
      %v616 = vmul.f32 %v575, %v605
      %v617 = vmul.f32 %v580, %v605
      %v618 = vmul.f32 %v585, %v605
      %v619 = vmul.f32 %v590, %v605
      %v620 = vmul.f32 %v595, %v605
      %v621 = vmul.f32 %v600, %v605
      %v622 = vld [vmem:[#allocation2 + $0x1] sm:$0xff]
      %v623 = vld [vmem:[#allocation2 + $0x11] sm:$0xff]
      %v624 = vld [vmem:[#allocation2 + $0x21] sm:$0xff]
      %v625 = vld [vmem:[#allocation2 + $0x31] sm:$0xff]
      %v626 = vld [vmem:[#allocation2 + $0x41] sm:$0xff]
      %v627 = vld [vmem:[#allocation2 + $0x51] sm:$0xff]
      %v628 = vld [vmem:[#allocation2 + $0x61] sm:$0xff]
      %v629 = vld [vmem:[#allocation2 + $0x71] sm:$0xff]
      %v630 = vld [vmem:[#allocation2 + $0xa1] sm:$0xff]
      %v631 = vld [vmem:[#allocation2 + $0xb1] sm:$0xff]
      %v632 = vld [vmem:[#allocation2 + $0xc1] sm:$0xff]
      %v633 = vld [vmem:[#allocation2 + $0xd1] sm:$0xff]
      %v634 = vld [vmem:[#allocation2 + $0xe1] sm:$0xff]
      %v635 = vld [vmem:[#allocation2 + $0xf1] sm:$0xff]
      %v636 = vld [vmem:[#allocation2 + $0x101] sm:$0xff]
      %v637 = vld [vmem:[#allocation2 + $0x111] sm:$0xff]
      %639 = vset.pattern.permute.xlu0 0
      %640 = vperm.xlu0 %639, %v622
      %v641 = vpop.permute.xlu0 %640
      %644 = vset.pattern.permute.xlu0 0
      %645 = vperm.xlu0 %644, %v623
      %v646 = vpop.permute.xlu0 %645
      %649 = vset.pattern.permute.xlu0 0
      %650 = vperm.xlu0 %649, %v624
      %v651 = vpop.permute.xlu0 %650
      %654 = vset.pattern.permute.xlu0 0
      %655 = vperm.xlu0 %654, %v625
      %v656 = vpop.permute.xlu0 %655
      %659 = vset.pattern.permute.xlu0 0
      %660 = vperm.xlu0 %659, %v626
      %v661 = vpop.permute.xlu0 %660
      %664 = vset.pattern.permute.xlu0 0
      %665 = vperm.xlu0 %664, %v627
      %v666 = vpop.permute.xlu0 %665
      %669 = vset.pattern.permute.xlu0 0
      %670 = vperm.xlu0 %669, %v628
      %v671 = vpop.permute.xlu0 %670
      %674 = vset.pattern.permute.xlu0 0
      %675 = vperm.xlu0 %674, %v629
      %v676 = vpop.permute.xlu0 %675
      %679 = vset.pattern.permute.xlu0 0
      %680 = vperm.xlu0 %679, %v630
      %v681 = vpop.permute.xlu0 %680
      %684 = vset.pattern.permute.xlu0 0
      %685 = vperm.xlu0 %684, %v631
      %v686 = vpop.permute.xlu0 %685
      %689 = vset.pattern.permute.xlu0 0
      %690 = vperm.xlu0 %689, %v632
      %v691 = vpop.permute.xlu0 %690
      %694 = vset.pattern.permute.xlu0 0
      %695 = vperm.xlu0 %694, %v633
      %v696 = vpop.permute.xlu0 %695
      %699 = vset.pattern.permute.xlu0 0
      %700 = vperm.xlu0 %699, %v634
      %v701 = vpop.permute.xlu0 %700
      %704 = vset.pattern.permute.xlu0 0
      %705 = vperm.xlu0 %704, %v635
      %v706 = vpop.permute.xlu0 %705
      %709 = vset.pattern.permute.xlu0 0
      %710 = vperm.xlu0 %709, %v636
      %v711 = vpop.permute.xlu0 %710
      %714 = vset.pattern.permute.xlu0 0
      %715 = vperm.xlu0 %714, %v637
      %v716 = vpop.permute.xlu0 %715
      %v718 = vlaneseq
      %v719 = vshrl.u32 %v718, 7
      %v720 = vsub.s32 1, %v719
      %v721 = vrot.slane %v504, %v720
      %v722 = vmul.f32 %v641, %v721
      %v723 = vmul.f32 %v646, %v721
      %v724 = vmul.f32 %v651, %v721
      %v725 = vmul.f32 %v656, %v721
      %v726 = vmul.f32 %v661, %v721
      %v727 = vmul.f32 %v666, %v721
      %v728 = vmul.f32 %v671, %v721
      %v729 = vmul.f32 %v676, %v721
      %v730 = vmul.f32 %v681, %v721
      %v731 = vmul.f32 %v686, %v721
      %v732 = vmul.f32 %v691, %v721
      %v733 = vmul.f32 %v696, %v721
      %v734 = vmul.f32 %v701, %v721
      %v735 = vmul.f32 %v706, %v721
      %v736 = vmul.f32 %v711, %v721
      %v737 = vmul.f32 %v716, %v721
      %v738 = vadd.f32 %v606, %v722
      %v739 = vadd.f32 %v607, %v723
      %v740 = vadd.f32 %v608, %v724
      %v741 = vadd.f32 %v609, %v725
      %v742 = vadd.f32 %v610, %v726
      %v743 = vadd.f32 %v611, %v727
      %v744 = vadd.f32 %v612, %v728
      %v745 = vadd.f32 %v613, %v729
      %v746 = vadd.f32 %v614, %v730
      %v747 = vadd.f32 %v615, %v731
      %v748 = vadd.f32 %v616, %v732
      %v749 = vadd.f32 %v617, %v733
      %v750 = vadd.f32 %v618, %v734
      %v751 = vadd.f32 %v619, %v735
      %v752 = vadd.f32 %v620, %v736
      %v753 = vadd.f32 %v621, %v737
      %v754 = vld [vmem:[#allocation2 + $0x2] sm:$0xff]
      %v755 = vld [vmem:[#allocation2 + $0x12] sm:$0xff]
      %v756 = vld [vmem:[#allocation2 + $0x22] sm:$0xff]
      %v757 = vld [vmem:[#allocation2 + $0x32] sm:$0xff]
      %v758 = vld [vmem:[#allocation2 + $0x42] sm:$0xff]
      %v759 = vld [vmem:[#allocation2 + $0x52] sm:$0xff]
      %v760 = vld [vmem:[#allocation2 + $0x62] sm:$0xff]
      %v761 = vld [vmem:[#allocation2 + $0x72] sm:$0xff]
      %v762 = vld [vmem:[#allocation2 + $0xa2] sm:$0xff]
      %v763 = vld [vmem:[#allocation2 + $0xb2] sm:$0xff]
      %v764 = vld [vmem:[#allocation2 + $0xc2] sm:$0xff]
      %v765 = vld [vmem:[#allocation2 + $0xd2] sm:$0xff]
      %v766 = vld [vmem:[#allocation2 + $0xe2] sm:$0xff]
      %v767 = vld [vmem:[#allocation2 + $0xf2] sm:$0xff]
      %v768 = vld [vmem:[#allocation2 + $0x102] sm:$0xff]
      %v769 = vld [vmem:[#allocation2 + $0x112] sm:$0xff]
      %771 = vset.pattern.permute.xlu0 0
      %772 = vperm.xlu0 %771, %v754
      %v773 = vpop.permute.xlu0 %772
      %776 = vset.pattern.permute.xlu0 0
      %777 = vperm.xlu0 %776, %v755
      %v778 = vpop.permute.xlu0 %777
      %781 = vset.pattern.permute.xlu0 0
      %782 = vperm.xlu0 %781, %v756
      %v783 = vpop.permute.xlu0 %782
      %786 = vset.pattern.permute.xlu0 0
      %787 = vperm.xlu0 %786, %v757
      %v788 = vpop.permute.xlu0 %787
      %791 = vset.pattern.permute.xlu0 0
      %792 = vperm.xlu0 %791, %v758
      %v793 = vpop.permute.xlu0 %792
      %796 = vset.pattern.permute.xlu0 0
      %797 = vperm.xlu0 %796, %v759
      %v798 = vpop.permute.xlu0 %797
      %801 = vset.pattern.permute.xlu0 0
      %802 = vperm.xlu0 %801, %v760
      %v803 = vpop.permute.xlu0 %802
      %806 = vset.pattern.permute.xlu0 0
      %807 = vperm.xlu0 %806, %v761
      %v808 = vpop.permute.xlu0 %807
      %811 = vset.pattern.permute.xlu0 0
      %812 = vperm.xlu0 %811, %v762
      %v813 = vpop.permute.xlu0 %812
      %816 = vset.pattern.permute.xlu0 0
      %817 = vperm.xlu0 %816, %v763
      %v818 = vpop.permute.xlu0 %817
      %821 = vset.pattern.permute.xlu0 0
      %822 = vperm.xlu0 %821, %v764
      %v823 = vpop.permute.xlu0 %822
      %826 = vset.pattern.permute.xlu0 0
      %827 = vperm.xlu0 %826, %v765
      %v828 = vpop.permute.xlu0 %827
      %831 = vset.pattern.permute.xlu0 0
      %832 = vperm.xlu0 %831, %v766
      %v833 = vpop.permute.xlu0 %832
      %836 = vset.pattern.permute.xlu0 0
      %837 = vperm.xlu0 %836, %v767
      %v838 = vpop.permute.xlu0 %837
      %841 = vset.pattern.permute.xlu0 0
      %842 = vperm.xlu0 %841, %v768
      %v843 = vpop.permute.xlu0 %842
      %846 = vset.pattern.permute.xlu0 0
      %847 = vperm.xlu0 %846, %v769
      %v848 = vpop.permute.xlu0 %847
      %v850 = vlaneseq
      %v851 = vshrl.u32 %v850, 7
      %v852 = vsub.s32 2, %v851
      %v853 = vrot.slane %v504, %v852
      %v854 = vmul.f32 %v773, %v853
      %v855 = vmul.f32 %v778, %v853
      %v856 = vmul.f32 %v783, %v853
      %v857 = vmul.f32 %v788, %v853
      %v858 = vmul.f32 %v793, %v853
      %v859 = vmul.f32 %v798, %v853
      %v860 = vmul.f32 %v803, %v853
      %v861 = vmul.f32 %v808, %v853
      %v862 = vmul.f32 %v813, %v853
      %v863 = vmul.f32 %v818, %v853
      %v864 = vmul.f32 %v823, %v853
      %v865 = vmul.f32 %v828, %v853
      %v866 = vmul.f32 %v833, %v853
      %v867 = vmul.f32 %v838, %v853
      %v868 = vmul.f32 %v843, %v853
      %v869 = vmul.f32 %v848, %v853
      %v870 = vadd.f32 %v738, %v854
      %v871 = vadd.f32 %v739, %v855
      %v872 = vadd.f32 %v740, %v856
      %v873 = vadd.f32 %v741, %v857
      %v874 = vadd.f32 %v742, %v858
      %v875 = vadd.f32 %v743, %v859
      %v876 = vadd.f32 %v744, %v860
      %v877 = vadd.f32 %v745, %v861
      %v878 = vadd.f32 %v746, %v862
      %v879 = vadd.f32 %v747, %v863
      %v880 = vadd.f32 %v748, %v864
      %v881 = vadd.f32 %v749, %v865
      %v882 = vadd.f32 %v750, %v866
      %v883 = vadd.f32 %v751, %v867
      %v884 = vadd.f32 %v752, %v868
      %v885 = vadd.f32 %v753, %v869
      %vm886 = vcmask 523264
      %887 = vst.msk [vmem:[#allocation5] sm:$0xff] %vm886, %v870
      %888 = vst.msk [vmem:[#allocation5 + $0x8] sm:$0xff] %vm886, %v871
      %889 = vst.msk [vmem:[#allocation5 + $0x10] sm:$0xff] %vm886, %v872
      %890 = vst.msk [vmem:[#allocation5 + $0x18] sm:$0xff] %vm886, %v873
      %891 = vst.msk [vmem:[#allocation5 + $0x20] sm:$0xff] %vm886, %v874
      %892 = vst.msk [vmem:[#allocation5 + $0x28] sm:$0xff] %vm886, %v875
      %893 = vst.msk [vmem:[#allocation5 + $0x30] sm:$0xff] %vm886, %v876
      %894 = vst.msk [vmem:[#allocation5 + $0x38] sm:$0xff] %vm886, %v877
      %895 = vst.msk [vmem:[#allocation5 + $0x40] sm:$0xff] %vm886, %v878
      %896 = vst.msk [vmem:[#allocation5 + $0x48] sm:$0xff] %vm886, %v879
      %897 = vst.msk [vmem:[#allocation5 + $0x50] sm:$0xff] %vm886, %v880
      %898 = vst.msk [vmem:[#allocation5 + $0x58] sm:$0xff] %vm886, %v881
      %899 = vst.msk [vmem:[#allocation5 + $0x60] sm:$0xff] %vm886, %v882
      %900 = vst.msk [vmem:[#allocation5 + $0x68] sm:$0xff] %vm886, %v883
      %901 = vst.msk [vmem:[#allocation5 + $0x70] sm:$0xff] %vm886, %v884
      %902 = vst.msk [vmem:[#allocation5 + $0x78] sm:$0xff] %vm886, %v885
      %v903 = vld [vmem:[%s487] sm:$0xff]
      %v904 = vld [vmem:[%s487 + $0x10] sm:$0xff]
      %v905 = vld [vmem:[%s487 + $0x20] sm:$0xff]
      %v906 = vld [vmem:[%s487 + $0x30] sm:$0xff]
      %v907 = vld [vmem:[%s487 + $0x40] sm:$0xff]
      %v908 = vld [vmem:[%s487 + $0x50] sm:$0xff]
      %v909 = vld [vmem:[%s487 + $0x60] sm:$0xff]
      %v910 = vld [vmem:[%s487 + $0x70] sm:$0xff]
      %v911 = vld [vmem:[%s487 + $0xa0] sm:$0xff]
      %v912 = vld [vmem:[%s487 + $0xb0] sm:$0xff]
      %v913 = vld [vmem:[%s487 + $0xc0] sm:$0xff]
      %v914 = vld [vmem:[%s487 + $0xd0] sm:$0xff]
      %v915 = vld [vmem:[%s487 + $0xe0] sm:$0xff]
      %v916 = vld [vmem:[%s487 + $0xf0] sm:$0xff]
      %v917 = vld [vmem:[%s487 + $0x100] sm:$0xff]
      %v918 = vld [vmem:[%s487 + $0x110] sm:$0xff]
      %920 = vset.pattern.permute.xlu0 0
      %921 = vperm.xlu0 %920, %v903
      %v922 = vpop.permute.xlu0 %921
      %925 = vset.pattern.permute.xlu0 0
      %926 = vperm.xlu0 %925, %v904
      %v927 = vpop.permute.xlu0 %926
      %930 = vset.pattern.permute.xlu0 0
      %931 = vperm.xlu0 %930, %v905
      %v932 = vpop.permute.xlu0 %931
      %935 = vset.pattern.permute.xlu0 0
      %936 = vperm.xlu0 %935, %v906
      %v937 = vpop.permute.xlu0 %936
      %940 = vset.pattern.permute.xlu0 0
      %941 = vperm.xlu0 %940, %v907
      %v942 = vpop.permute.xlu0 %941
      %945 = vset.pattern.permute.xlu0 0
      %946 = vperm.xlu0 %945, %v908
      %v947 = vpop.permute.xlu0 %946
      %950 = vset.pattern.permute.xlu0 0
      %951 = vperm.xlu0 %950, %v909
      %v952 = vpop.permute.xlu0 %951
      %955 = vset.pattern.permute.xlu0 0
      %956 = vperm.xlu0 %955, %v910
      %v957 = vpop.permute.xlu0 %956
      %960 = vset.pattern.permute.xlu0 0
      %961 = vperm.xlu0 %960, %v911
      %v962 = vpop.permute.xlu0 %961
      %965 = vset.pattern.permute.xlu0 0
      %966 = vperm.xlu0 %965, %v912
      %v967 = vpop.permute.xlu0 %966
      %970 = vset.pattern.permute.xlu0 0
      %971 = vperm.xlu0 %970, %v913
      %v972 = vpop.permute.xlu0 %971
      %975 = vset.pattern.permute.xlu0 0
      %976 = vperm.xlu0 %975, %v914
      %v977 = vpop.permute.xlu0 %976
      %980 = vset.pattern.permute.xlu0 0
      %981 = vperm.xlu0 %980, %v915
      %v982 = vpop.permute.xlu0 %981
      %985 = vset.pattern.permute.xlu0 0
      %986 = vperm.xlu0 %985, %v916
      %v987 = vpop.permute.xlu0 %986
      %990 = vset.pattern.permute.xlu0 0
      %991 = vperm.xlu0 %990, %v917
      %v992 = vpop.permute.xlu0 %991
      %995 = vset.pattern.permute.xlu0 0
      %996 = vperm.xlu0 %995, %v918
      %v997 = vpop.permute.xlu0 %996
      %v999 = vlaneseq
      %v1000 = vshrl.u32 %v999, 7
      %v1001 = vsub.s32 3, %v1000
      %v1002 = vrot.slane %v504, %v1001
      %v1003 = vmul.f32 %v922, %v1002
      %v1004 = vmul.f32 %v927, %v1002
      %v1005 = vmul.f32 %v932, %v1002
      %v1006 = vmul.f32 %v937, %v1002
      %v1007 = vmul.f32 %v942, %v1002
      %v1008 = vmul.f32 %v947, %v1002
      %v1009 = vmul.f32 %v952, %v1002
      %v1010 = vmul.f32 %v957, %v1002
      %v1011 = vmul.f32 %v962, %v1002
      %v1012 = vmul.f32 %v967, %v1002
      %v1013 = vmul.f32 %v972, %v1002
      %v1014 = vmul.f32 %v977, %v1002
      %v1015 = vmul.f32 %v982, %v1002
      %v1016 = vmul.f32 %v987, %v1002
      %v1017 = vmul.f32 %v992, %v1002
      %v1018 = vmul.f32 %v997, %v1002
      %v1019 = vld [vmem:[%s487 + $0x1] sm:$0xff]
      %v1020 = vld [vmem:[%s487 + $0x11] sm:$0xff]
      %v1021 = vld [vmem:[%s487 + $0x21] sm:$0xff]
      %v1022 = vld [vmem:[%s487 + $0x31] sm:$0xff]
      %v1023 = vld [vmem:[%s487 + $0x41] sm:$0xff]
      %v1024 = vld [vmem:[%s487 + $0x51] sm:$0xff]
      %v1025 = vld [vmem:[%s487 + $0x61] sm:$0xff]
      %v1026 = vld [vmem:[%s487 + $0x71] sm:$0xff]
      %v1027 = vld [vmem:[%s487 + $0xa1] sm:$0xff]
      %v1028 = vld [vmem:[%s487 + $0xb1] sm:$0xff]
      %v1029 = vld [vmem:[%s487 + $0xc1] sm:$0xff]
      %v1030 = vld [vmem:[%s487 + $0xd1] sm:$0xff]
      %v1031 = vld [vmem:[%s487 + $0xe1] sm:$0xff]
      %v1032 = vld [vmem:[%s487 + $0xf1] sm:$0xff]
      %v1033 = vld [vmem:[%s487 + $0x101] sm:$0xff]
      %v1034 = vld [vmem:[%s487 + $0x111] sm:$0xff]
      %1036 = vset.pattern.permute.xlu0 0
      %1037 = vperm.xlu0 %1036, %v1019
      %v1038 = vpop.permute.xlu0 %1037
      %1041 = vset.pattern.permute.xlu0 0
      %1042 = vperm.xlu0 %1041, %v1020
      %v1043 = vpop.permute.xlu0 %1042
      %1046 = vset.pattern.permute.xlu0 0
      %1047 = vperm.xlu0 %1046, %v1021
      %v1048 = vpop.permute.xlu0 %1047
      %1051 = vset.pattern.permute.xlu0 0
      %1052 = vperm.xlu0 %1051, %v1022
      %v1053 = vpop.permute.xlu0 %1052
      %1056 = vset.pattern.permute.xlu0 0
      %1057 = vperm.xlu0 %1056, %v1023
      %v1058 = vpop.permute.xlu0 %1057
      %1061 = vset.pattern.permute.xlu0 0
      %1062 = vperm.xlu0 %1061, %v1024
      %v1063 = vpop.permute.xlu0 %1062
      %1066 = vset.pattern.permute.xlu0 0
      %1067 = vperm.xlu0 %1066, %v1025
      %v1068 = vpop.permute.xlu0 %1067
      %1071 = vset.pattern.permute.xlu0 0
      %1072 = vperm.xlu0 %1071, %v1026
      %v1073 = vpop.permute.xlu0 %1072
      %1076 = vset.pattern.permute.xlu0 0
      %1077 = vperm.xlu0 %1076, %v1027
      %v1078 = vpop.permute.xlu0 %1077
      %1081 = vset.pattern.permute.xlu0 0
      %1082 = vperm.xlu0 %1081, %v1028
      %v1083 = vpop.permute.xlu0 %1082
      %1086 = vset.pattern.permute.xlu0 0
      %1087 = vperm.xlu0 %1086, %v1029
      %v1088 = vpop.permute.xlu0 %1087
      %1091 = vset.pattern.permute.xlu0 0
      %1092 = vperm.xlu0 %1091, %v1030
      %v1093 = vpop.permute.xlu0 %1092
      %1096 = vset.pattern.permute.xlu0 0
      %1097 = vperm.xlu0 %1096, %v1031
      %v1098 = vpop.permute.xlu0 %1097
      %1101 = vset.pattern.permute.xlu0 0
      %1102 = vperm.xlu0 %1101, %v1032
      %v1103 = vpop.permute.xlu0 %1102
      %1106 = vset.pattern.permute.xlu0 0
      %1107 = vperm.xlu0 %1106, %v1033
      %v1108 = vpop.permute.xlu0 %1107
      %1111 = vset.pattern.permute.xlu0 0
      %1112 = vperm.xlu0 %1111, %v1034
      %v1113 = vpop.permute.xlu0 %1112
      %v1115 = vlaneseq
      %v1116 = vshrl.u32 %v1115, 7
      %v1117 = vsub.s32 4, %v1116
      %v1118 = vrot.slane %v504, %v1117
      %v1119 = vmul.f32 %v1038, %v1118
      %v1120 = vmul.f32 %v1043, %v1118
      %v1121 = vmul.f32 %v1048, %v1118
      %v1122 = vmul.f32 %v1053, %v1118
      %v1123 = vmul.f32 %v1058, %v1118
      %v1124 = vmul.f32 %v1063, %v1118
      %v1125 = vmul.f32 %v1068, %v1118
      %v1126 = vmul.f32 %v1073, %v1118
      %v1127 = vmul.f32 %v1078, %v1118
      %v1128 = vmul.f32 %v1083, %v1118
      %v1129 = vmul.f32 %v1088, %v1118
      %v1130 = vmul.f32 %v1093, %v1118
      %v1131 = vmul.f32 %v1098, %v1118
      %v1132 = vmul.f32 %v1103, %v1118
      %v1133 = vmul.f32 %v1108, %v1118
      %v1134 = vmul.f32 %v1113, %v1118
      %v1135 = vadd.f32 %v1003, %v1119
      %v1136 = vadd.f32 %v1004, %v1120
      %v1137 = vadd.f32 %v1005, %v1121
      %v1138 = vadd.f32 %v1006, %v1122
      %v1139 = vadd.f32 %v1007, %v1123
      %v1140 = vadd.f32 %v1008, %v1124
      %v1141 = vadd.f32 %v1009, %v1125
      %v1142 = vadd.f32 %v1010, %v1126
      %v1143 = vadd.f32 %v1011, %v1127
      %v1144 = vadd.f32 %v1012, %v1128
      %v1145 = vadd.f32 %v1013, %v1129
      %v1146 = vadd.f32 %v1014, %v1130
      %v1147 = vadd.f32 %v1015, %v1131
      %v1148 = vadd.f32 %v1016, %v1132
      %v1149 = vadd.f32 %v1017, %v1133
      %v1150 = vadd.f32 %v1018, %v1134
      %v1151 = vld [vmem:[%s487 + $0x2] sm:$0xff]
      %v1152 = vld [vmem:[%s487 + $0x12] sm:$0xff]
      %v1153 = vld [vmem:[%s487 + $0x22] sm:$0xff]
      %v1154 = vld [vmem:[%s487 + $0x32] sm:$0xff]
      %v1155 = vld [vmem:[%s487 + $0x42] sm:$0xff]
      %v1156 = vld [vmem:[%s487 + $0x52] sm:$0xff]
      %v1157 = vld [vmem:[%s487 + $0x62] sm:$0xff]
      %v1158 = vld [vmem:[%s487 + $0x72] sm:$0xff]
      %v1159 = vld [vmem:[%s487 + $0xa2] sm:$0xff]
      %v1160 = vld [vmem:[%s487 + $0xb2] sm:$0xff]
      %v1161 = vld [vmem:[%s487 + $0xc2] sm:$0xff]
      %v1162 = vld [vmem:[%s487 + $0xd2] sm:$0xff]
      %v1163 = vld [vmem:[%s487 + $0xe2] sm:$0xff]
      %v1164 = vld [vmem:[%s487 + $0xf2] sm:$0xff]
      %v1165 = vld [vmem:[%s487 + $0x102] sm:$0xff]
      %v1166 = vld [vmem:[%s487 + $0x112] sm:$0xff]
      %1168 = vset.pattern.permute.xlu0 0
      %1169 = vperm.xlu0 %1168, %v1151
      %v1170 = vpop.permute.xlu0 %1169
      %1173 = vset.pattern.permute.xlu0 0
      %1174 = vperm.xlu0 %1173, %v1152
      %v1175 = vpop.permute.xlu0 %1174
      %1178 = vset.pattern.permute.xlu0 0
      %1179 = vperm.xlu0 %1178, %v1153
      %v1180 = vpop.permute.xlu0 %1179
      %1183 = vset.pattern.permute.xlu0 0
      %1184 = vperm.xlu0 %1183, %v1154
      %v1185 = vpop.permute.xlu0 %1184
      %1188 = vset.pattern.permute.xlu0 0
      %1189 = vperm.xlu0 %1188, %v1155
      %v1190 = vpop.permute.xlu0 %1189
      %1193 = vset.pattern.permute.xlu0 0
      %1194 = vperm.xlu0 %1193, %v1156
      %v1195 = vpop.permute.xlu0 %1194
      %1198 = vset.pattern.permute.xlu0 0
      %1199 = vperm.xlu0 %1198, %v1157
      %v1200 = vpop.permute.xlu0 %1199
      %1203 = vset.pattern.permute.xlu0 0
      %1204 = vperm.xlu0 %1203, %v1158
      %v1205 = vpop.permute.xlu0 %1204
      %1208 = vset.pattern.permute.xlu0 0
      %1209 = vperm.xlu0 %1208, %v1159
      %v1210 = vpop.permute.xlu0 %1209
      %1213 = vset.pattern.permute.xlu0 0
      %1214 = vperm.xlu0 %1213, %v1160
      %v1215 = vpop.permute.xlu0 %1214
      %1218 = vset.pattern.permute.xlu0 0
      %1219 = vperm.xlu0 %1218, %v1161
      %v1220 = vpop.permute.xlu0 %1219
      %1223 = vset.pattern.permute.xlu0 0
      %1224 = vperm.xlu0 %1223, %v1162
      %v1225 = vpop.permute.xlu0 %1224
      %1228 = vset.pattern.permute.xlu0 0
      %1229 = vperm.xlu0 %1228, %v1163
      %v1230 = vpop.permute.xlu0 %1229
      %1233 = vset.pattern.permute.xlu0 0
      %1234 = vperm.xlu0 %1233, %v1164
      %v1235 = vpop.permute.xlu0 %1234
      %1238 = vset.pattern.permute.xlu0 0
      %1239 = vperm.xlu0 %1238, %v1165
      %v1240 = vpop.permute.xlu0 %1239
      %1243 = vset.pattern.permute.xlu0 0
      %1244 = vperm.xlu0 %1243, %v1166
      %v1245 = vpop.permute.xlu0 %1244
      %v1247 = vlaneseq
      %v1248 = vshrl.u32 %v1247, 7
      %v1249 = vsub.s32 5, %v1248
      %v1250 = vrot.slane %v504, %v1249
      %v1251 = vmul.f32 %v1170, %v1250
      %v1252 = vmul.f32 %v1175, %v1250
      %v1253 = vmul.f32 %v1180, %v1250
      %v1254 = vmul.f32 %v1185, %v1250
      %v1255 = vmul.f32 %v1190, %v1250
      %v1256 = vmul.f32 %v1195, %v1250
      %v1257 = vmul.f32 %v1200, %v1250
      %v1258 = vmul.f32 %v1205, %v1250
      %v1259 = vmul.f32 %v1210, %v1250
      %v1260 = vmul.f32 %v1215, %v1250
      %v1261 = vmul.f32 %v1220, %v1250
      %v1262 = vmul.f32 %v1225, %v1250
      %v1263 = vmul.f32 %v1230, %v1250
      %v1264 = vmul.f32 %v1235, %v1250
      %v1265 = vmul.f32 %v1240, %v1250
      %v1266 = vmul.f32 %v1245, %v1250
      %v1267 = vadd.f32 %v1135, %v1251
      %v1268 = vadd.f32 %v1136, %v1252
      %v1269 = vadd.f32 %v1137, %v1253
      %v1270 = vadd.f32 %v1138, %v1254
      %v1271 = vadd.f32 %v1139, %v1255
      %v1272 = vadd.f32 %v1140, %v1256
      %v1273 = vadd.f32 %v1141, %v1257
      %v1274 = vadd.f32 %v1142, %v1258
      %v1275 = vadd.f32 %v1143, %v1259
      %v1276 = vadd.f32 %v1144, %v1260
      %v1277 = vadd.f32 %v1145, %v1261
      %v1278 = vadd.f32 %v1146, %v1262
      %v1279 = vadd.f32 %v1147, %v1263
      %v1280 = vadd.f32 %v1148, %v1264
      %v1281 = vadd.f32 %v1149, %v1265
      %v1282 = vadd.f32 %v1150, %v1266
      %v1283 = vld [vmem:[#allocation5] sm:$0xff]
      %v1284 = vld [vmem:[#allocation5 + $0x8] sm:$0xff]
      %v1285 = vld [vmem:[#allocation5 + $0x10] sm:$0xff]
      %v1286 = vld [vmem:[#allocation5 + $0x18] sm:$0xff]
      %v1287 = vld [vmem:[#allocation5 + $0x20] sm:$0xff]
      %v1288 = vld [vmem:[#allocation5 + $0x28] sm:$0xff]
      %v1289 = vld [vmem:[#allocation5 + $0x30] sm:$0xff]
      %v1290 = vld [vmem:[#allocation5 + $0x38] sm:$0xff]
      %v1291 = vld [vmem:[#allocation5 + $0x40] sm:$0xff]
      %v1292 = vld [vmem:[#allocation5 + $0x48] sm:$0xff]
      %v1293 = vld [vmem:[#allocation5 + $0x50] sm:$0xff]
      %v1294 = vld [vmem:[#allocation5 + $0x58] sm:$0xff]
      %v1295 = vld [vmem:[#allocation5 + $0x60] sm:$0xff]
      %v1296 = vld [vmem:[#allocation5 + $0x68] sm:$0xff]
      %v1297 = vld [vmem:[#allocation5 + $0x70] sm:$0xff]
      %v1298 = vld [vmem:[#allocation5 + $0x78] sm:$0xff]
      %v1299 = vadd.f32 %v1283, %v1267
      %v1300 = vadd.f32 %v1284, %v1268
      %v1301 = vadd.f32 %v1285, %v1269
      %v1302 = vadd.f32 %v1286, %v1270
      %v1303 = vadd.f32 %v1287, %v1271
      %v1304 = vadd.f32 %v1288, %v1272
      %v1305 = vadd.f32 %v1289, %v1273
      %v1306 = vadd.f32 %v1290, %v1274
      %v1307 = vadd.f32 %v1291, %v1275
      %v1308 = vadd.f32 %v1292, %v1276
      %v1309 = vadd.f32 %v1293, %v1277
      %v1310 = vadd.f32 %v1294, %v1278
      %v1311 = vadd.f32 %v1295, %v1279
      %v1312 = vadd.f32 %v1296, %v1280
      %v1313 = vadd.f32 %v1297, %v1281
      %v1314 = vadd.f32 %v1298, %v1282
      %1315 = vst.msk [vmem:[#allocation5] sm:$0xff] %vm886, %v1299
      %1316 = vst.msk [vmem:[#allocation5 + $0x8] sm:$0xff] %vm886, %v1300
      %1317 = vst.msk [vmem:[#allocation5 + $0x10] sm:$0xff] %vm886, %v1301
      %1318 = vst.msk [vmem:[#allocation5 + $0x18] sm:$0xff] %vm886, %v1302
      %1319 = vst.msk [vmem:[#allocation5 + $0x20] sm:$0xff] %vm886, %v1303
      %1320 = vst.msk [vmem:[#allocation5 + $0x28] sm:$0xff] %vm886, %v1304
      %1321 = vst.msk [vmem:[#allocation5 + $0x30] sm:$0xff] %vm886, %v1305
      %1322 = vst.msk [vmem:[#allocation5 + $0x38] sm:$0xff] %vm886, %v1306
      %1323 = vst.msk [vmem:[#allocation5 + $0x40] sm:$0xff] %vm886, %v1307
      %1324 = vst.msk [vmem:[#allocation5 + $0x48] sm:$0xff] %vm886, %v1308
      %1325 = vst.msk [vmem:[#allocation5 + $0x50] sm:$0xff] %vm886, %v1309
      %1326 = vst.msk [vmem:[#allocation5 + $0x58] sm:$0xff] %vm886, %v1310
      %1327 = vst.msk [vmem:[#allocation5 + $0x60] sm:$0xff] %vm886, %v1311
      %1328 = vst.msk [vmem:[#allocation5 + $0x68] sm:$0xff] %vm886, %v1312
      %1329 = vst.msk [vmem:[#allocation5 + $0x70] sm:$0xff] %vm886, %v1313
      %1330 = vst.msk [vmem:[#allocation5 + $0x78] sm:$0xff] %vm886, %v1314
      %s1331 = scalar_lea.vmem [#allocation2], 32
      %v1332 = vld [vmem:[%s1331] sm:$0xff]
      %v1333 = vld [vmem:[%s1331 + $0x10] sm:$0xff]
      %v1334 = vld [vmem:[%s1331 + $0x20] sm:$0xff]
      %v1335 = vld [vmem:[%s1331 + $0x30] sm:$0xff]
      %v1336 = vld [vmem:[%s1331 + $0x40] sm:$0xff]
      %v1337 = vld [vmem:[%s1331 + $0x50] sm:$0xff]
      %v1338 = vld [vmem:[%s1331 + $0x60] sm:$0xff]
      %v1339 = vld [vmem:[%s1331 + $0x70] sm:$0xff]
      %v1340 = vld [vmem:[%s1331 + $0xa0] sm:$0xff]
      %v1341 = vld [vmem:[%s1331 + $0xb0] sm:$0xff]
      %v1342 = vld [vmem:[%s1331 + $0xc0] sm:$0xff]
      %v1343 = vld [vmem:[%s1331 + $0xd0] sm:$0xff]
      %v1344 = vld [vmem:[%s1331 + $0xe0] sm:$0xff]
      %v1345 = vld [vmem:[%s1331 + $0xf0] sm:$0xff]
      %v1346 = vld [vmem:[%s1331 + $0x100] sm:$0xff]
      %v1347 = vld [vmem:[%s1331 + $0x110] sm:$0xff]
      %1349 = vset.pattern.permute.xlu0 0
      %1350 = vperm.xlu0 %1349, %v1332
      %v1351 = vpop.permute.xlu0 %1350
      %1354 = vset.pattern.permute.xlu0 0
      %1355 = vperm.xlu0 %1354, %v1333
      %v1356 = vpop.permute.xlu0 %1355
      %1359 = vset.pattern.permute.xlu0 0
      %1360 = vperm.xlu0 %1359, %v1334
      %v1361 = vpop.permute.xlu0 %1360
      %1364 = vset.pattern.permute.xlu0 0
      %1365 = vperm.xlu0 %1364, %v1335
      %v1366 = vpop.permute.xlu0 %1365
      %1369 = vset.pattern.permute.xlu0 0
      %1370 = vperm.xlu0 %1369, %v1336
      %v1371 = vpop.permute.xlu0 %1370
      %1374 = vset.pattern.permute.xlu0 0
      %1375 = vperm.xlu0 %1374, %v1337
      %v1376 = vpop.permute.xlu0 %1375
      %1379 = vset.pattern.permute.xlu0 0
      %1380 = vperm.xlu0 %1379, %v1338
      %v1381 = vpop.permute.xlu0 %1380
      %1384 = vset.pattern.permute.xlu0 0
      %1385 = vperm.xlu0 %1384, %v1339
      %v1386 = vpop.permute.xlu0 %1385
      %1389 = vset.pattern.permute.xlu0 0
      %1390 = vperm.xlu0 %1389, %v1340
      %v1391 = vpop.permute.xlu0 %1390
      %1394 = vset.pattern.permute.xlu0 0
      %1395 = vperm.xlu0 %1394, %v1341
      %v1396 = vpop.permute.xlu0 %1395
      %1399 = vset.pattern.permute.xlu0 0
      %1400 = vperm.xlu0 %1399, %v1342
      %v1401 = vpop.permute.xlu0 %1400
      %1404 = vset.pattern.permute.xlu0 0
      %1405 = vperm.xlu0 %1404, %v1343
      %v1406 = vpop.permute.xlu0 %1405
      %1409 = vset.pattern.permute.xlu0 0
      %1410 = vperm.xlu0 %1409, %v1344
      %v1411 = vpop.permute.xlu0 %1410
      %1414 = vset.pattern.permute.xlu0 0
      %1415 = vperm.xlu0 %1414, %v1345
      %v1416 = vpop.permute.xlu0 %1415
      %1419 = vset.pattern.permute.xlu0 0
      %1420 = vperm.xlu0 %1419, %v1346
      %v1421 = vpop.permute.xlu0 %1420
      %1424 = vset.pattern.permute.xlu0 0
      %1425 = vperm.xlu0 %1424, %v1347
      %v1426 = vpop.permute.xlu0 %1425
      %v1428 = vlaneseq
      %v1429 = vshrl.u32 %v1428, 7
      %v1430 = vsub.s32 6, %v1429
      %v1431 = vrot.slane %v504, %v1430
      %v1432 = vmul.f32 %v1351, %v1431
      %v1433 = vmul.f32 %v1356, %v1431
      %v1434 = vmul.f32 %v1361, %v1431
      %v1435 = vmul.f32 %v1366, %v1431
      %v1436 = vmul.f32 %v1371, %v1431
      %v1437 = vmul.f32 %v1376, %v1431
      %v1438 = vmul.f32 %v1381, %v1431
      %v1439 = vmul.f32 %v1386, %v1431
      %v1440 = vmul.f32 %v1391, %v1431
      %v1441 = vmul.f32 %v1396, %v1431
      %v1442 = vmul.f32 %v1401, %v1431
      %v1443 = vmul.f32 %v1406, %v1431
      %v1444 = vmul.f32 %v1411, %v1431
      %v1445 = vmul.f32 %v1416, %v1431
      %v1446 = vmul.f32 %v1421, %v1431
      %v1447 = vmul.f32 %v1426, %v1431
      %v1448 = vld [vmem:[%s1331 + $0x1] sm:$0xff]
      %v1449 = vld [vmem:[%s1331 + $0x11] sm:$0xff]
      %v1450 = vld [vmem:[%s1331 + $0x21] sm:$0xff]
      %v1451 = vld [vmem:[%s1331 + $0x31] sm:$0xff]
      %v1452 = vld [vmem:[%s1331 + $0x41] sm:$0xff]
      %v1453 = vld [vmem:[%s1331 + $0x51] sm:$0xff]
      %v1454 = vld [vmem:[%s1331 + $0x61] sm:$0xff]
      %v1455 = vld [vmem:[%s1331 + $0x71] sm:$0xff]
      %v1456 = vld [vmem:[%s1331 + $0xa1] sm:$0xff]
      %v1457 = vld [vmem:[%s1331 + $0xb1] sm:$0xff]
      %v1458 = vld [vmem:[%s1331 + $0xc1] sm:$0xff]
      %v1459 = vld [vmem:[%s1331 + $0xd1] sm:$0xff]
      %v1460 = vld [vmem:[%s1331 + $0xe1] sm:$0xff]
      %v1461 = vld [vmem:[%s1331 + $0xf1] sm:$0xff]
      %v1462 = vld [vmem:[%s1331 + $0x101] sm:$0xff]
      %v1463 = vld [vmem:[%s1331 + $0x111] sm:$0xff]
      %1465 = vset.pattern.permute.xlu0 0
      %1466 = vperm.xlu0 %1465, %v1448
      %v1467 = vpop.permute.xlu0 %1466
      %1470 = vset.pattern.permute.xlu0 0
      %1471 = vperm.xlu0 %1470, %v1449
      %v1472 = vpop.permute.xlu0 %1471
      %1475 = vset.pattern.permute.xlu0 0
      %1476 = vperm.xlu0 %1475, %v1450
      %v1477 = vpop.permute.xlu0 %1476
      %1480 = vset.pattern.permute.xlu0 0
      %1481 = vperm.xlu0 %1480, %v1451
      %v1482 = vpop.permute.xlu0 %1481
      %1485 = vset.pattern.permute.xlu0 0
      %1486 = vperm.xlu0 %1485, %v1452
      %v1487 = vpop.permute.xlu0 %1486
      %1490 = vset.pattern.permute.xlu0 0
      %1491 = vperm.xlu0 %1490, %v1453
      %v1492 = vpop.permute.xlu0 %1491
      %1495 = vset.pattern.permute.xlu0 0
      %1496 = vperm.xlu0 %1495, %v1454
      %v1497 = vpop.permute.xlu0 %1496
      %1500 = vset.pattern.permute.xlu0 0
      %1501 = vperm.xlu0 %1500, %v1455
      %v1502 = vpop.permute.xlu0 %1501
      %1505 = vset.pattern.permute.xlu0 0
      %1506 = vperm.xlu0 %1505, %v1456
      %v1507 = vpop.permute.xlu0 %1506
      %1510 = vset.pattern.permute.xlu0 0
      %1511 = vperm.xlu0 %1510, %v1457
      %v1512 = vpop.permute.xlu0 %1511
      %1515 = vset.pattern.permute.xlu0 0
      %1516 = vperm.xlu0 %1515, %v1458
      %v1517 = vpop.permute.xlu0 %1516
      %1520 = vset.pattern.permute.xlu0 0
      %1521 = vperm.xlu0 %1520, %v1459
      %v1522 = vpop.permute.xlu0 %1521
      %1525 = vset.pattern.permute.xlu0 0
      %1526 = vperm.xlu0 %1525, %v1460
      %v1527 = vpop.permute.xlu0 %1526
      %1530 = vset.pattern.permute.xlu0 0
      %1531 = vperm.xlu0 %1530, %v1461
      %v1532 = vpop.permute.xlu0 %1531
      %1535 = vset.pattern.permute.xlu0 0
      %1536 = vperm.xlu0 %1535, %v1462
      %v1537 = vpop.permute.xlu0 %1536
      %1540 = vset.pattern.permute.xlu0 0
      %1541 = vperm.xlu0 %1540, %v1463
      %v1542 = vpop.permute.xlu0 %1541
      %v1544 = vlaneseq
      %v1545 = vshrl.u32 %v1544, 7
      %v1546 = vsub.s32 7, %v1545
      %v1547 = vrot.slane %v504, %v1546
      %v1548 = vmul.f32 %v1467, %v1547
      %v1549 = vmul.f32 %v1472, %v1547
      %v1550 = vmul.f32 %v1477, %v1547
      %v1551 = vmul.f32 %v1482, %v1547
      %v1552 = vmul.f32 %v1487, %v1547
      %v1553 = vmul.f32 %v1492, %v1547
      %v1554 = vmul.f32 %v1497, %v1547
      %v1555 = vmul.f32 %v1502, %v1547
      %v1556 = vmul.f32 %v1507, %v1547
      %v1557 = vmul.f32 %v1512, %v1547
      %v1558 = vmul.f32 %v1517, %v1547
      %v1559 = vmul.f32 %v1522, %v1547
      %v1560 = vmul.f32 %v1527, %v1547
      %v1561 = vmul.f32 %v1532, %v1547
      %v1562 = vmul.f32 %v1537, %v1547
      %v1563 = vmul.f32 %v1542, %v1547
      %v1564 = vadd.f32 %v1432, %v1548
      %v1565 = vadd.f32 %v1433, %v1549
      %v1566 = vadd.f32 %v1434, %v1550
      %v1567 = vadd.f32 %v1435, %v1551
      %v1568 = vadd.f32 %v1436, %v1552
      %v1569 = vadd.f32 %v1437, %v1553
      %v1570 = vadd.f32 %v1438, %v1554
      %v1571 = vadd.f32 %v1439, %v1555
      %v1572 = vadd.f32 %v1440, %v1556
      %v1573 = vadd.f32 %v1441, %v1557
      %v1574 = vadd.f32 %v1442, %v1558
      %v1575 = vadd.f32 %v1443, %v1559
      %v1576 = vadd.f32 %v1444, %v1560
      %v1577 = vadd.f32 %v1445, %v1561
      %v1578 = vadd.f32 %v1446, %v1562
      %v1579 = vadd.f32 %v1447, %v1563
      %v1580 = vld [vmem:[%s1331 + $0x2] sm:$0xff]
      %v1581 = vld [vmem:[%s1331 + $0x12] sm:$0xff]
      %v1582 = vld [vmem:[%s1331 + $0x22] sm:$0xff]
      %v1583 = vld [vmem:[%s1331 + $0x32] sm:$0xff]
      %v1584 = vld [vmem:[%s1331 + $0x42] sm:$0xff]
      %v1585 = vld [vmem:[%s1331 + $0x52] sm:$0xff]
      %v1586 = vld [vmem:[%s1331 + $0x62] sm:$0xff]
      %v1587 = vld [vmem:[%s1331 + $0x72] sm:$0xff]
      %v1588 = vld [vmem:[%s1331 + $0xa2] sm:$0xff]
      %v1589 = vld [vmem:[%s1331 + $0xb2] sm:$0xff]
      %v1590 = vld [vmem:[%s1331 + $0xc2] sm:$0xff]
      %v1591 = vld [vmem:[%s1331 + $0xd2] sm:$0xff]
      %v1592 = vld [vmem:[%s1331 + $0xe2] sm:$0xff]
      %v1593 = vld [vmem:[%s1331 + $0xf2] sm:$0xff]
      %v1594 = vld [vmem:[%s1331 + $0x102] sm:$0xff]
      %v1595 = vld [vmem:[%s1331 + $0x112] sm:$0xff]
      %1597 = vset.pattern.permute.xlu0 0
      %1598 = vperm.xlu0 %1597, %v1580
      %v1599 = vpop.permute.xlu0 %1598
      %1602 = vset.pattern.permute.xlu0 0
      %1603 = vperm.xlu0 %1602, %v1581
      %v1604 = vpop.permute.xlu0 %1603
      %1607 = vset.pattern.permute.xlu0 0
      %1608 = vperm.xlu0 %1607, %v1582
      %v1609 = vpop.permute.xlu0 %1608
      %1612 = vset.pattern.permute.xlu0 0
      %1613 = vperm.xlu0 %1612, %v1583
      %v1614 = vpop.permute.xlu0 %1613
      %1617 = vset.pattern.permute.xlu0 0
      %1618 = vperm.xlu0 %1617, %v1584
      %v1619 = vpop.permute.xlu0 %1618
      %1622 = vset.pattern.permute.xlu0 0
      %1623 = vperm.xlu0 %1622, %v1585
      %v1624 = vpop.permute.xlu0 %1623
      %1627 = vset.pattern.permute.xlu0 0
      %1628 = vperm.xlu0 %1627, %v1586
      %v1629 = vpop.permute.xlu0 %1628
      %1632 = vset.pattern.permute.xlu0 0
      %1633 = vperm.xlu0 %1632, %v1587
      %v1634 = vpop.permute.xlu0 %1633
      %1637 = vset.pattern.permute.xlu0 0
      %1638 = vperm.xlu0 %1637, %v1588
      %v1639 = vpop.permute.xlu0 %1638
      %1642 = vset.pattern.permute.xlu0 0
      %1643 = vperm.xlu0 %1642, %v1589
      %v1644 = vpop.permute.xlu0 %1643
      %1647 = vset.pattern.permute.xlu0 0
      %1648 = vperm.xlu0 %1647, %v1590
      %v1649 = vpop.permute.xlu0 %1648
      %1652 = vset.pattern.permute.xlu0 0
      %1653 = vperm.xlu0 %1652, %v1591
      %v1654 = vpop.permute.xlu0 %1653
      %1657 = vset.pattern.permute.xlu0 0
      %1658 = vperm.xlu0 %1657, %v1592
      %v1659 = vpop.permute.xlu0 %1658
      %1662 = vset.pattern.permute.xlu0 0
      %1663 = vperm.xlu0 %1662, %v1593
      %v1664 = vpop.permute.xlu0 %1663
      %1667 = vset.pattern.permute.xlu0 0
      %1668 = vperm.xlu0 %1667, %v1594
      %v1669 = vpop.permute.xlu0 %1668
      %1672 = vset.pattern.permute.xlu0 0
      %1673 = vperm.xlu0 %1672, %v1595
      %v1674 = vpop.permute.xlu0 %1673
      %v1676 = vlaneseq
      %v1677 = vshrl.u32 %v1676, 7
      %v1678 = vsub.s32 0, %v1677
      %v1679 = vrot.slane %v505, %v1678
      %v1680 = vmul.f32 %v1599, %v1679
      %v1681 = vmul.f32 %v1604, %v1679
      %v1682 = vmul.f32 %v1609, %v1679
      %v1683 = vmul.f32 %v1614, %v1679
      %v1684 = vmul.f32 %v1619, %v1679
      %v1685 = vmul.f32 %v1624, %v1679
      %v1686 = vmul.f32 %v1629, %v1679
      %v1687 = vmul.f32 %v1634, %v1679
      %v1688 = vmul.f32 %v1639, %v1679
      %v1689 = vmul.f32 %v1644, %v1679
      %v1690 = vmul.f32 %v1649, %v1679
      %v1691 = vmul.f32 %v1654, %v1679
      %v1692 = vmul.f32 %v1659, %v1679
      %v1693 = vmul.f32 %v1664, %v1679
      %v1694 = vmul.f32 %v1669, %v1679
      %v1695 = vmul.f32 %v1674, %v1679
      %v1696 = vadd.f32 %v1564, %v1680
      %v1697 = vadd.f32 %v1565, %v1681
      %v1698 = vadd.f32 %v1566, %v1682
      %v1699 = vadd.f32 %v1567, %v1683
      %v1700 = vadd.f32 %v1568, %v1684
      %v1701 = vadd.f32 %v1569, %v1685
      %v1702 = vadd.f32 %v1570, %v1686
      %v1703 = vadd.f32 %v1571, %v1687
      %v1704 = vadd.f32 %v1572, %v1688
      %v1705 = vadd.f32 %v1573, %v1689
      %v1706 = vadd.f32 %v1574, %v1690
      %v1707 = vadd.f32 %v1575, %v1691
      %v1708 = vadd.f32 %v1576, %v1692
      %v1709 = vadd.f32 %v1577, %v1693
      %v1710 = vadd.f32 %v1578, %v1694
      %v1711 = vadd.f32 %v1579, %v1695
      %v1712 = vld [vmem:[#allocation5] sm:$0xff]
      %v1713 = vld [vmem:[#allocation5 + $0x8] sm:$0xff]
      %v1714 = vld [vmem:[#allocation5 + $0x10] sm:$0xff]
      %v1715 = vld [vmem:[#allocation5 + $0x18] sm:$0xff]
      %v1716 = vld [vmem:[#allocation5 + $0x20] sm:$0xff]
      %v1717 = vld [vmem:[#allocation5 + $0x28] sm:$0xff]
      %v1718 = vld [vmem:[#allocation5 + $0x30] sm:$0xff]
      %v1719 = vld [vmem:[#allocation5 + $0x38] sm:$0xff]
      %v1720 = vld [vmem:[#allocation5 + $0x40] sm:$0xff]
      %v1721 = vld [vmem:[#allocation5 + $0x48] sm:$0xff]
      %v1722 = vld [vmem:[#allocation5 + $0x50] sm:$0xff]
      %v1723 = vld [vmem:[#allocation5 + $0x58] sm:$0xff]
      %v1724 = vld [vmem:[#allocation5 + $0x60] sm:$0xff]
      %v1725 = vld [vmem:[#allocation5 + $0x68] sm:$0xff]
      %v1726 = vld [vmem:[#allocation5 + $0x70] sm:$0xff]
      %v1727 = vld [vmem:[#allocation5 + $0x78] sm:$0xff]
      %v1728 = vadd.f32 %v1712, %v1696
      %v1729 = vadd.f32 %v1713, %v1697
      %v1730 = vadd.f32 %v1714, %v1698
      %v1731 = vadd.f32 %v1715, %v1699
      %v1732 = vadd.f32 %v1716, %v1700
      %v1733 = vadd.f32 %v1717, %v1701
      %v1734 = vadd.f32 %v1718, %v1702
      %v1735 = vadd.f32 %v1719, %v1703
      %v1736 = vadd.f32 %v1720, %v1704
      %v1737 = vadd.f32 %v1721, %v1705
      %v1738 = vadd.f32 %v1722, %v1706
      %v1739 = vadd.f32 %v1723, %v1707
      %v1740 = vadd.f32 %v1724, %v1708
      %v1741 = vadd.f32 %v1725, %v1709
      %v1742 = vadd.f32 %v1726, %v1710
      %v1743 = vadd.f32 %v1727, %v1711
      %1744 = vst.msk [vmem:[#allocation5] sm:$0xff] %vm886, %v1728
      %1745 = vst.msk [vmem:[#allocation5 + $0x8] sm:$0xff] %vm886, %v1729
      %1746 = vst.msk [vmem:[#allocation5 + $0x10] sm:$0xff] %vm886, %v1730
      %1747 = vst.msk [vmem:[#allocation5 + $0x18] sm:$0xff] %vm886, %v1731
      %1748 = vst.msk [vmem:[#allocation5 + $0x20] sm:$0xff] %vm886, %v1732
      %1749 = vst.msk [vmem:[#allocation5 + $0x28] sm:$0xff] %vm886, %v1733
      %1750 = vst.msk [vmem:[#allocation5 + $0x30] sm:$0xff] %vm886, %v1734
      %1751 = vst.msk [vmem:[#allocation5 + $0x38] sm:$0xff] %vm886, %v1735
      %1752 = vst.msk [vmem:[#allocation5 + $0x40] sm:$0xff] %vm886, %v1736
      %1753 = vst.msk [vmem:[#allocation5 + $0x48] sm:$0xff] %vm886, %v1737
      %1754 = vst.msk [vmem:[#allocation5 + $0x50] sm:$0xff] %vm886, %v1738
      %1755 = vst.msk [vmem:[#allocation5 + $0x58] sm:$0xff] %vm886, %v1739
      %1756 = vst.msk [vmem:[#allocation5 + $0x60] sm:$0xff] %vm886, %v1740
      %1757 = vst.msk [vmem:[#allocation5 + $0x68] sm:$0xff] %vm886, %v1741
      %1758 = vst.msk [vmem:[#allocation5 + $0x70] sm:$0xff] %vm886, %v1742
      %1759 = vst.msk [vmem:[#allocation5 + $0x78] sm:$0xff] %vm886, %v1743
      %v1760 = vld [vmem:[#allocation5] sm:$0xff]
      %v1761 = vld [vmem:[#allocation5 + $0x8] sm:$0xff]
      %v1762 = vld [vmem:[#allocation5 + $0x10] sm:$0xff]
      %v1763 = vld [vmem:[#allocation5 + $0x18] sm:$0xff]
      %v1764 = vld [vmem:[#allocation5 + $0x20] sm:$0xff]
      %v1765 = vld [vmem:[#allocation5 + $0x28] sm:$0xff]
      %v1766 = vld [vmem:[#allocation5 + $0x30] sm:$0xff]
      %v1767 = vld [vmem:[#allocation5 + $0x38] sm:$0xff]
      %v1768 = vld [vmem:[#allocation5 + $0x40] sm:$0xff]
      %v1769 = vld [vmem:[#allocation5 + $0x48] sm:$0xff]
      %v1770 = vld [vmem:[#allocation5 + $0x50] sm:$0xff]
      %v1771 = vld [vmem:[#allocation5 + $0x58] sm:$0xff]
      %v1772 = vld [vmem:[#allocation5 + $0x60] sm:$0xff]
      %v1773 = vld [vmem:[#allocation5 + $0x68] sm:$0xff]
      %v1774 = vld [vmem:[#allocation5 + $0x70] sm:$0xff]
      %v1775 = vld [vmem:[#allocation5 + $0x78] sm:$0xff]
      %v1776 = vld [vmem:[%s276] sm:$0x1]
      %v1778 = vlaneseq
      %v1779 = vshrl.u32 %v1778, 7
      %v1780 = vsub.s32 0, %v1779
      %v1781 = vrot.slane %v1776, %v1780
      %v1783 = vadd.f32 %v1760, %v1781
      %v1784 = vadd.f32 %v1761, %v1781
      %v1785 = vadd.f32 %v1762, %v1781
      %v1786 = vadd.f32 %v1763, %v1781
      %v1787 = vadd.f32 %v1764, %v1781
      %v1788 = vadd.f32 %v1765, %v1781
      %v1789 = vadd.f32 %v1766, %v1781
      %v1790 = vadd.f32 %v1767, %v1781
      %v1791 = vadd.f32 %v1768, %v1781
      %v1792 = vadd.f32 %v1769, %v1781
      %v1793 = vadd.f32 %v1770, %v1781
      %v1794 = vadd.f32 %v1771, %v1781
      %v1795 = vadd.f32 %v1772, %v1781
      %v1796 = vadd.f32 %v1773, %v1781
      %v1797 = vadd.f32 %v1774, %v1781
      %v1798 = vadd.f32 %v1775, %v1781
      %v1799 = vmax.f32 %v1783, 0.0
      %v1800 = vmax.f32 %v1784, 0.0
      %v1801 = vmax.f32 %v1785, 0.0
      %v1802 = vmax.f32 %v1786, 0.0
      %v1803 = vmax.f32 %v1787, 0.0
      %v1804 = vmax.f32 %v1788, 0.0
      %v1805 = vmax.f32 %v1789, 0.0
      %v1806 = vmax.f32 %v1790, 0.0
      %v1807 = vmax.f32 %v1791, 0.0
      %v1808 = vmax.f32 %v1792, 0.0
      %v1809 = vmax.f32 %v1793, 0.0
      %v1810 = vmax.f32 %v1794, 0.0
      %v1811 = vmax.f32 %v1795, 0.0
      %v1812 = vmax.f32 %v1796, 0.0
      %v1813 = vmax.f32 %v1797, 0.0
      %v1814 = vmax.f32 %v1798, 0.0
      %v1815 = vpack.c.bf16 %v1799, %v1799
      %v1816 = vpack.c.bf16 %v1800, %v1800
      %v1817 = vpack.c.bf16 %v1801, %v1801
      %v1818 = vpack.c.bf16 %v1802, %v1802
      %v1819 = vpack.c.bf16 %v1803, %v1803
      %v1820 = vpack.c.bf16 %v1804, %v1804
      %v1821 = vpack.c.bf16 %v1805, %v1805
      %v1822 = vpack.c.bf16 %v1806, %v1806
      %v1823 = vpack.c.bf16 %v1807, %v1807
      %v1824 = vpack.c.bf16 %v1808, %v1808
      %v1825 = vpack.c.bf16 %v1809, %v1809
      %v1826 = vpack.c.bf16 %v1810, %v1810
      %v1827 = vpack.c.bf16 %v1811, %v1811
      %v1828 = vpack.c.bf16 %v1812, %v1812
      %v1829 = vpack.c.bf16 %v1813, %v1813
      %v1830 = vpack.c.bf16 %v1814, %v1814
      %v1847 = vunpack.c.l.b16 %v1815
      %v1848 = vunpack.c.l.b16 %v1816
      %v1849 = vunpack.c.l.b16 %v1817
      %v1850 = vunpack.c.l.b16 %v1818
      %v1851 = vunpack.c.l.b16 %v1819
      %v1852 = vunpack.c.l.b16 %v1820
      %v1853 = vunpack.c.l.b16 %v1821
      %v1854 = vunpack.c.l.b16 %v1822
      %v1855 = vunpack.c.l.b16 %v1823
      %v1856 = vunpack.c.l.b16 %v1824
      %v1857 = vunpack.c.l.b16 %v1825
      %v1858 = vunpack.c.l.b16 %v1826
      %v1859 = vunpack.c.l.b16 %v1827
      %v1860 = vunpack.c.l.b16 %v1828
      %v1861 = vunpack.c.l.b16 %v1829
      %v1862 = vunpack.c.l.b16 %v1830
      %v1863 = vpack.c.b16 %v1847, %v1847
      %v1864 = vpack.c.b16 %v1848, %v1848
      %v1865 = vpack.c.b16 %v1849, %v1849
      %v1866 = vpack.c.b16 %v1850, %v1850
      %v1867 = vpack.c.b16 %v1851, %v1851
      %v1868 = vpack.c.b16 %v1852, %v1852
      %v1869 = vpack.c.b16 %v1853, %v1853
      %v1870 = vpack.c.b16 %v1854, %v1854
      %v1871 = vpack.c.b16 %v1855, %v1855
      %v1872 = vpack.c.b16 %v1856, %v1856
      %v1873 = vpack.c.b16 %v1857, %v1857
      %v1874 = vpack.c.b16 %v1858, %v1858
      %v1875 = vpack.c.b16 %v1859, %v1859
      %v1876 = vpack.c.b16 %v1860, %v1860
      %v1877 = vpack.c.b16 %v1861, %v1861
      %v1878 = vpack.c.b16 %v1862, %v1862
      %v1880 = vshrl.u32 %v1863, 16
      %v1882 = vrot.slane %v1880, 7
      %v1883 = vshll.u32 %v1863, 16
      %v1885 = vor.u32 %v1882, %v1883
      %v1886 = vrot.slane %v1882, 4
      %v1888 = vshrl.u32 %v1864, 16
      %v1890 = vrot.slane %v1888, 7
      %v1891 = vshll.u32 %v1864, 16
      %v1893 = vor.u32 %v1890, %v1891
      %v1894 = vrot.slane %v1890, 4
      %v1896 = vshrl.u32 %v1865, 16
      %v1898 = vrot.slane %v1896, 7
      %v1899 = vshll.u32 %v1865, 16
      %v1901 = vor.u32 %v1898, %v1899
      %v1902 = vrot.slane %v1898, 4
      %v1904 = vshrl.u32 %v1866, 16
      %v1906 = vrot.slane %v1904, 7
      %v1907 = vshll.u32 %v1866, 16
      %v1909 = vor.u32 %v1906, %v1907
      %v1910 = vrot.slane %v1906, 4
      %v1912 = vshrl.u32 %v1867, 16
      %v1914 = vrot.slane %v1912, 7
      %v1915 = vshll.u32 %v1867, 16
      %v1917 = vor.u32 %v1914, %v1915
      %v1918 = vrot.slane %v1914, 4
      %v1920 = vshrl.u32 %v1868, 16
      %v1922 = vrot.slane %v1920, 7
      %v1923 = vshll.u32 %v1868, 16
      %v1925 = vor.u32 %v1922, %v1923
      %v1926 = vrot.slane %v1922, 4
      %v1928 = vshrl.u32 %v1869, 16
      %v1930 = vrot.slane %v1928, 7
      %v1931 = vshll.u32 %v1869, 16
      %v1933 = vor.u32 %v1930, %v1931
      %v1934 = vrot.slane %v1930, 4
      %v1936 = vshrl.u32 %v1870, 16
      %v1938 = vrot.slane %v1936, 7
      %v1939 = vshll.u32 %v1870, 16
      %v1941 = vor.u32 %v1938, %v1939
      %v1942 = vrot.slane %v1938, 4
      %v1944 = vshrl.u32 %v1871, 16
      %v1946 = vrot.slane %v1944, 7
      %v1947 = vshll.u32 %v1871, 16
      %v1949 = vor.u32 %v1946, %v1947
      %v1950 = vrot.slane %v1946, 4
      %v1952 = vshrl.u32 %v1872, 16
      %v1954 = vrot.slane %v1952, 7
      %v1955 = vshll.u32 %v1872, 16
      %v1957 = vor.u32 %v1954, %v1955
      %v1958 = vrot.slane %v1954, 4
      %v1960 = vshrl.u32 %v1873, 16
      %v1962 = vrot.slane %v1960, 7
      %v1963 = vshll.u32 %v1873, 16
      %v1965 = vor.u32 %v1962, %v1963
      %v1966 = vrot.slane %v1962, 4
      %v1968 = vshrl.u32 %v1874, 16
      %v1970 = vrot.slane %v1968, 7
      %v1971 = vshll.u32 %v1874, 16
      %v1973 = vor.u32 %v1970, %v1971
      %v1974 = vrot.slane %v1970, 4
      %v1976 = vshrl.u32 %v1875, 16
      %v1978 = vrot.slane %v1976, 7
      %v1979 = vshll.u32 %v1875, 16
      %v1981 = vor.u32 %v1978, %v1979
      %v1982 = vrot.slane %v1978, 4
      %v1984 = vshrl.u32 %v1876, 16
      %v1986 = vrot.slane %v1984, 7
      %v1987 = vshll.u32 %v1876, 16
      %v1989 = vor.u32 %v1986, %v1987
      %v1990 = vrot.slane %v1986, 4
      %v1992 = vshrl.u32 %v1877, 16
      %v1994 = vrot.slane %v1992, 7
      %v1995 = vshll.u32 %v1877, 16
      %v1997 = vor.u32 %v1994, %v1995
      %v1998 = vrot.slane %v1994, 4
      %v2000 = vshrl.u32 %v1878, 16
      %v2002 = vrot.slane %v2000, 7
      %v2003 = vshll.u32 %v1878, 16
      %v2005 = vor.u32 %v2002, %v2003
      %v2006 = vrot.slane %v2002, 4
      %s2039 = scalar_lea.vmem [#allocation3], 8
      %vm2040 = vcmask 519168
      %vm2041 = vmand %vm2040, %vm409
      %v2042 = vld [vmem:[%s2039] sm:$0xf]
      %v2043 = vsel %vm2041, %v1885, %v2042
      %2044 = vst [vmem:[%s2039] sm:$0xf] %v2043
      %v2045 = vld [vmem:[%s2039 + $0x4] sm:$0x1]
      %v2046 = vsel %vm348, %v1886, %v2045
      %2047 = vst [vmem:[%s2039 + $0x4] sm:$0x1] %v2046
      %v2048 = vld [vmem:[%s2039 + $0x8] sm:$0xf]
      %v2049 = vsel %vm2041, %v1893, %v2048
      %2050 = vst [vmem:[%s2039 + $0x8] sm:$0xf] %v2049
      %v2051 = vld [vmem:[%s2039 + $0xc] sm:$0x1]
      %v2052 = vsel %vm348, %v1894, %v2051
      %2053 = vst [vmem:[%s2039 + $0xc] sm:$0x1] %v2052
      %v2054 = vld [vmem:[%s2039 + $0x10] sm:$0xf]
      %v2055 = vsel %vm2041, %v1901, %v2054
      %2056 = vst [vmem:[%s2039 + $0x10] sm:$0xf] %v2055
      %v2057 = vld [vmem:[%s2039 + $0x14] sm:$0x1]
      %v2058 = vsel %vm348, %v1902, %v2057
      %2059 = vst [vmem:[%s2039 + $0x14] sm:$0x1] %v2058
      %v2060 = vld [vmem:[%s2039 + $0x18] sm:$0xf]
      %v2061 = vsel %vm2041, %v1909, %v2060
      %2062 = vst [vmem:[%s2039 + $0x18] sm:$0xf] %v2061
      %v2063 = vld [vmem:[%s2039 + $0x1c] sm:$0x1]
      %v2064 = vsel %vm348, %v1910, %v2063
      %2065 = vst [vmem:[%s2039 + $0x1c] sm:$0x1] %v2064
      %v2066 = vld [vmem:[%s2039 + $0x20] sm:$0xf]
      %v2067 = vsel %vm2041, %v1917, %v2066
      %2068 = vst [vmem:[%s2039 + $0x20] sm:$0xf] %v2067
      %v2069 = vld [vmem:[%s2039 + $0x24] sm:$0x1]
      %v2070 = vsel %vm348, %v1918, %v2069
      %2071 = vst [vmem:[%s2039 + $0x24] sm:$0x1] %v2070
      %v2072 = vld [vmem:[%s2039 + $0x28] sm:$0xf]
      %v2073 = vsel %vm2041, %v1925, %v2072
      %2074 = vst [vmem:[%s2039 + $0x28] sm:$0xf] %v2073
      %v2075 = vld [vmem:[%s2039 + $0x2c] sm:$0x1]
      %v2076 = vsel %vm348, %v1926, %v2075
      %2077 = vst [vmem:[%s2039 + $0x2c] sm:$0x1] %v2076
      %v2078 = vld [vmem:[%s2039 + $0x30] sm:$0xf]
      %v2079 = vsel %vm2041, %v1933, %v2078
      %2080 = vst [vmem:[%s2039 + $0x30] sm:$0xf] %v2079
      %v2081 = vld [vmem:[%s2039 + $0x34] sm:$0x1]
      %v2082 = vsel %vm348, %v1934, %v2081
      %2083 = vst [vmem:[%s2039 + $0x34] sm:$0x1] %v2082
      %v2084 = vld [vmem:[%s2039 + $0x38] sm:$0xf]
      %v2085 = vsel %vm2041, %v1941, %v2084
      %2086 = vst [vmem:[%s2039 + $0x38] sm:$0xf] %v2085
      %v2087 = vld [vmem:[%s2039 + $0x3c] sm:$0x1]
      %v2088 = vsel %vm348, %v1942, %v2087
      %2089 = vst [vmem:[%s2039 + $0x3c] sm:$0x1] %v2088
      %v2090 = vld [vmem:[%s2039 + $0x50] sm:$0xf]
      %v2091 = vsel %vm2041, %v1949, %v2090
      %2092 = vst [vmem:[%s2039 + $0x50] sm:$0xf] %v2091
      %v2093 = vld [vmem:[%s2039 + $0x54] sm:$0x1]
      %v2094 = vsel %vm348, %v1950, %v2093
      %2095 = vst [vmem:[%s2039 + $0x54] sm:$0x1] %v2094
      %v2096 = vld [vmem:[%s2039 + $0x58] sm:$0xf]
      %v2097 = vsel %vm2041, %v1957, %v2096
      %2098 = vst [vmem:[%s2039 + $0x58] sm:$0xf] %v2097
      %v2099 = vld [vmem:[%s2039 + $0x5c] sm:$0x1]
      %v2100 = vsel %vm348, %v1958, %v2099
      %2101 = vst [vmem:[%s2039 + $0x5c] sm:$0x1] %v2100
      %v2102 = vld [vmem:[%s2039 + $0x60] sm:$0xf]
      %v2103 = vsel %vm2041, %v1965, %v2102
      %2104 = vst [vmem:[%s2039 + $0x60] sm:$0xf] %v2103
      %v2105 = vld [vmem:[%s2039 + $0x64] sm:$0x1]
      %v2106 = vsel %vm348, %v1966, %v2105
      %2107 = vst [vmem:[%s2039 + $0x64] sm:$0x1] %v2106
      %v2108 = vld [vmem:[%s2039 + $0x68] sm:$0xf]
      %v2109 = vsel %vm2041, %v1973, %v2108
      %2110 = vst [vmem:[%s2039 + $0x68] sm:$0xf] %v2109
      %v2111 = vld [vmem:[%s2039 + $0x6c] sm:$0x1]
      %v2112 = vsel %vm348, %v1974, %v2111
      %2113 = vst [vmem:[%s2039 + $0x6c] sm:$0x1] %v2112
      %v2114 = vld [vmem:[%s2039 + $0x70] sm:$0xf]
      %v2115 = vsel %vm2041, %v1981, %v2114
      %2116 = vst [vmem:[%s2039 + $0x70] sm:$0xf] %v2115
      %v2117 = vld [vmem:[%s2039 + $0x74] sm:$0x1]
      %v2118 = vsel %vm348, %v1982, %v2117
      %2119 = vst [vmem:[%s2039 + $0x74] sm:$0x1] %v2118
      %v2120 = vld [vmem:[%s2039 + $0x78] sm:$0xf]
      %v2121 = vsel %vm2041, %v1989, %v2120
      %2122 = vst [vmem:[%s2039 + $0x78] sm:$0xf] %v2121
      %v2123 = vld [vmem:[%s2039 + $0x7c] sm:$0x1]
      %v2124 = vsel %vm348, %v1990, %v2123
      %2125 = vst [vmem:[%s2039 + $0x7c] sm:$0x1] %v2124
      %v2126 = vld [vmem:[%s2039 + $0x80] sm:$0xf]
      %v2127 = vsel %vm2041, %v1997, %v2126
      %2128 = vst [vmem:[%s2039 + $0x80] sm:$0xf] %v2127
      %v2129 = vld [vmem:[%s2039 + $0x84] sm:$0x1]
      %v2130 = vsel %vm348, %v1998, %v2129
      %2131 = vst [vmem:[%s2039 + $0x84] sm:$0x1] %v2130
      %v2132 = vld [vmem:[%s2039 + $0x88] sm:$0xf]
      %v2133 = vsel %vm2041, %v2005, %v2132
      %2134 = vst [vmem:[%s2039 + $0x88] sm:$0xf] %v2133
      %v2135 = vld [vmem:[%s2039 + $0x8c] sm:$0x1]
      %v2136 = vsel %vm348, %v2006, %v2135
      %2137 = vst [vmem:[%s2039 + $0x8c] sm:$0x1] %v2136
      loop: start=0, step=1, limit=18
      $region41: #{tpu_custom_call.1} parent=39 // loop_pre_header
        _
      $region42: #{tpu_custom_call.1} parent=39 // loop_header
        %s2139 = sphi 0, %s2143
        %p2140 = scmp.ge.s32.totalorder %s2139, 18
      $region43: #{tpu_custom_call.1} parent=39 // loop_header_branch
        %2142 = sbr.rel (%p2140) target = $region47
      $region44: #{tpu_custom_call.1} parent=39 // loop_body
        %v2144 = vld [vmem:[#allocation3] sm:$0xf]
        %v2145 = vld [vmem:[#allocation3 + $0x8] sm:$0xf]
        %v2146 = vld [vmem:[#allocation3 + $0x10] sm:$0xf]
        %v2147 = vld [vmem:[#allocation3 + $0x18] sm:$0xf]
        %v2148 = vld [vmem:[#allocation3 + $0x20] sm:$0xf]
        %v2149 = vld [vmem:[#allocation3 + $0x28] sm:$0xf]
        %v2150 = vld [vmem:[#allocation3 + $0x30] sm:$0xf]
        %v2151 = vld [vmem:[#allocation3 + $0x38] sm:$0xf]
        %v2152 = vld [vmem:[#allocation3 + $0x40] sm:$0xf]
        %v2153 = vld [vmem:[#allocation3 + $0x48] sm:$0xf]
        %v2154 = vld [vmem:[#allocation3 + $0x50] sm:$0xf]
        %v2155 = vld [vmem:[#allocation3 + $0x58] sm:$0xf]
        %v2156 = vld [vmem:[#allocation3 + $0x60] sm:$0xf]
        %v2157 = vld [vmem:[#allocation3 + $0x68] sm:$0xf]
        %v2158 = vld [vmem:[#allocation3 + $0x70] sm:$0xf]
        %v2159 = vld [vmem:[#allocation3 + $0x78] sm:$0xf]
        %v2160 = vld [vmem:[#allocation3 + $0x80] sm:$0xf]
        %v2161 = vld [vmem:[#allocation3 + $0x88] sm:$0xf]
        %v2162 = vld [vmem:[#allocation3 + $0x90] sm:$0xf]
        %v2163 = vld [vmem:[#allocation3 + $0x98] sm:$0xf]
        %2164 = vst.msk [vmem:[#allocation4] sm:$0xf] %vm335, %v2144
        %2165 = vst.msk [vmem:[#allocation4 + $0x8] sm:$0xf] %vm335, %v2145
        %2166 = vst.msk [vmem:[#allocation4 + $0x10] sm:$0xf] %vm335, %v2146
        %2167 = vst.msk [vmem:[#allocation4 + $0x18] sm:$0xf] %vm335, %v2147
        %2168 = vst.msk [vmem:[#allocation4 + $0x20] sm:$0xf] %vm335, %v2148
        %2169 = vst.msk [vmem:[#allocation4 + $0x28] sm:$0xf] %vm335, %v2149
        %2170 = vst.msk [vmem:[#allocation4 + $0x30] sm:$0xf] %vm335, %v2150
        %2171 = vst.msk [vmem:[#allocation4 + $0x38] sm:$0xf] %vm335, %v2151
        %2172 = vst.msk [vmem:[#allocation4 + $0x40] sm:$0xf] %vm335, %v2152
        %2173 = vst.msk [vmem:[#allocation4 + $0x48] sm:$0xf] %vm335, %v2153
        %2174 = vst.msk [vmem:[#allocation4 + $0x50] sm:$0xf] %vm335, %v2154
        %2175 = vst.msk [vmem:[#allocation4 + $0x58] sm:$0xf] %vm335, %v2155
        %2176 = vst.msk [vmem:[#allocation4 + $0x60] sm:$0xf] %vm335, %v2156
        %2177 = vst.msk [vmem:[#allocation4 + $0x68] sm:$0xf] %vm335, %v2157
        %2178 = vst.msk [vmem:[#allocation4 + $0x70] sm:$0xf] %vm335, %v2158
        %2179 = vst.msk [vmem:[#allocation4 + $0x78] sm:$0xf] %vm335, %v2159
        %2180 = vst.msk [vmem:[#allocation4 + $0x80] sm:$0xf] %vm335, %v2160
        %2181 = vst.msk [vmem:[#allocation4 + $0x88] sm:$0xf] %vm335, %v2161
        %2182 = vst.msk [vmem:[#allocation4 + $0x90] sm:$0xf] %vm335, %v2162
        %2183 = vst.msk [vmem:[#allocation4 + $0x98] sm:$0xf] %vm335, %v2163
        %v2184 = vld [vmem:[#allocation3] sm:$0xf]
        %v2185 = vld [vmem:[#allocation3 + $0x4] sm:$0x1]
        %v2186 = vld [vmem:[#allocation3 + $0x8] sm:$0xf]
        %v2187 = vld [vmem:[#allocation3 + $0xc] sm:$0x1]
        %v2188 = vld [vmem:[#allocation3 + $0x10] sm:$0xf]
        %v2189 = vld [vmem:[#allocation3 + $0x14] sm:$0x1]
        %v2190 = vld [vmem:[#allocation3 + $0x18] sm:$0xf]
        %v2191 = vld [vmem:[#allocation3 + $0x1c] sm:$0x1]
        %v2192 = vld [vmem:[#allocation3 + $0x20] sm:$0xf]
        %v2193 = vld [vmem:[#allocation3 + $0x24] sm:$0x1]
        %v2194 = vld [vmem:[#allocation3 + $0x28] sm:$0xf]
        %v2195 = vld [vmem:[#allocation3 + $0x2c] sm:$0x1]
        %v2196 = vld [vmem:[#allocation3 + $0x30] sm:$0xf]
        %v2197 = vld [vmem:[#allocation3 + $0x34] sm:$0x1]
        %v2198 = vld [vmem:[#allocation3 + $0x38] sm:$0xf]
        %v2199 = vld [vmem:[#allocation3 + $0x3c] sm:$0x1]
        %v2200 = vld [vmem:[#allocation3 + $0x40] sm:$0xf]
        %v2201 = vld [vmem:[#allocation3 + $0x44] sm:$0x1]
        %v2202 = vld [vmem:[#allocation3 + $0x48] sm:$0xf]
        %v2203 = vld [vmem:[#allocation3 + $0x4c] sm:$0x1]
        %v2204 = vld [vmem:[#allocation3 + $0x50] sm:$0xf]
        %v2205 = vld [vmem:[#allocation3 + $0x54] sm:$0x1]
        %v2206 = vld [vmem:[#allocation3 + $0x58] sm:$0xf]
        %v2207 = vld [vmem:[#allocation3 + $0x5c] sm:$0x1]
        %v2208 = vld [vmem:[#allocation3 + $0x60] sm:$0xf]
        %v2209 = vld [vmem:[#allocation3 + $0x64] sm:$0x1]
        %v2210 = vld [vmem:[#allocation3 + $0x68] sm:$0xf]
        %v2211 = vld [vmem:[#allocation3 + $0x6c] sm:$0x1]
        %v2212 = vld [vmem:[#allocation3 + $0x70] sm:$0xf]
        %v2213 = vld [vmem:[#allocation3 + $0x74] sm:$0x1]
        %v2214 = vld [vmem:[#allocation3 + $0x78] sm:$0xf]
        %v2215 = vld [vmem:[#allocation3 + $0x7c] sm:$0x1]
        %v2216 = vld [vmem:[#allocation3 + $0x80] sm:$0xf]
        %v2217 = vld [vmem:[#allocation3 + $0x84] sm:$0x1]
        %v2218 = vld [vmem:[#allocation3 + $0x88] sm:$0xf]
        %v2219 = vld [vmem:[#allocation3 + $0x8c] sm:$0x1]
        %v2220 = vld [vmem:[#allocation3 + $0x90] sm:$0xf]
        %v2221 = vld [vmem:[#allocation3 + $0x94] sm:$0x1]
        %v2222 = vld [vmem:[#allocation3 + $0x98] sm:$0xf]
        %v2223 = vld [vmem:[#allocation3 + $0x9c] sm:$0x1]
        %vm2224 = vsmask.f32 3328
        %vm2225 = vsmask.f32 7440
        %vm2226 = vmor %vm2224, %vm2225
        %v2228 = vshrl.u32 %v2184, 16
        %v2230 = vrot.slane %v2228, 4
        %v2231 = vshll.u32 %v2184, 16
        %v2233 = vrot.slane %v2231, 5
        %v2234 = vor.u32 %v2230, %v2233
        %v2235 = vrot.slane %v2234, 4
        %v2237 = vshll.u32 %v2185, 16
        %v2239 = vrot.slane %v2237, 5
        %v2240 = vsel %vm2226, %v2235, %v2239
        %v2242 = vshrl.u32 %v2186, 16
        %v2244 = vrot.slane %v2242, 4
        %v2245 = vshll.u32 %v2186, 16
        %v2247 = vrot.slane %v2245, 5
        %v2248 = vor.u32 %v2244, %v2247
        %v2249 = vrot.slane %v2248, 4
        %v2251 = vshll.u32 %v2187, 16
        %v2253 = vrot.slane %v2251, 5
        %v2254 = vsel %vm2226, %v2249, %v2253
        %v2256 = vshrl.u32 %v2188, 16
        %v2258 = vrot.slane %v2256, 4
        %v2259 = vshll.u32 %v2188, 16
        %v2261 = vrot.slane %v2259, 5
        %v2262 = vor.u32 %v2258, %v2261
        %v2263 = vrot.slane %v2262, 4
        %v2265 = vshll.u32 %v2189, 16
        %v2267 = vrot.slane %v2265, 5
        %v2268 = vsel %vm2226, %v2263, %v2267
        %v2270 = vshrl.u32 %v2190, 16
        %v2272 = vrot.slane %v2270, 4
        %v2273 = vshll.u32 %v2190, 16
        %v2275 = vrot.slane %v2273, 5
        %v2276 = vor.u32 %v2272, %v2275
        %v2277 = vrot.slane %v2276, 4
        %v2279 = vshll.u32 %v2191, 16
        %v2281 = vrot.slane %v2279, 5
        %v2282 = vsel %vm2226, %v2277, %v2281
        %v2284 = vshrl.u32 %v2192, 16
        %v2286 = vrot.slane %v2284, 4
        %v2287 = vshll.u32 %v2192, 16
        %v2289 = vrot.slane %v2287, 5
        %v2290 = vor.u32 %v2286, %v2289
        %v2291 = vrot.slane %v2290, 4
        %v2293 = vshll.u32 %v2193, 16
        %v2295 = vrot.slane %v2293, 5
        %v2296 = vsel %vm2226, %v2291, %v2295
        %v2298 = vshrl.u32 %v2194, 16
        %v2300 = vrot.slane %v2298, 4
        %v2301 = vshll.u32 %v2194, 16
        %v2303 = vrot.slane %v2301, 5
        %v2304 = vor.u32 %v2300, %v2303
        %v2305 = vrot.slane %v2304, 4
        %v2307 = vshll.u32 %v2195, 16
        %v2309 = vrot.slane %v2307, 5
        %v2310 = vsel %vm2226, %v2305, %v2309
        %v2312 = vshrl.u32 %v2196, 16
        %v2314 = vrot.slane %v2312, 4
        %v2315 = vshll.u32 %v2196, 16
        %v2317 = vrot.slane %v2315, 5
        %v2318 = vor.u32 %v2314, %v2317
        %v2319 = vrot.slane %v2318, 4
        %v2321 = vshll.u32 %v2197, 16
        %v2323 = vrot.slane %v2321, 5
        %v2324 = vsel %vm2226, %v2319, %v2323
        %v2326 = vshrl.u32 %v2198, 16
        %v2328 = vrot.slane %v2326, 4
        %v2329 = vshll.u32 %v2198, 16
        %v2331 = vrot.slane %v2329, 5
        %v2332 = vor.u32 %v2328, %v2331
        %v2333 = vrot.slane %v2332, 4
        %v2335 = vshll.u32 %v2199, 16
        %v2337 = vrot.slane %v2335, 5
        %v2338 = vsel %vm2226, %v2333, %v2337
        %v2340 = vshrl.u32 %v2200, 16
        %v2342 = vrot.slane %v2340, 4
        %v2343 = vshll.u32 %v2200, 16
        %v2345 = vrot.slane %v2343, 5
        %v2346 = vor.u32 %v2342, %v2345
        %v2347 = vrot.slane %v2346, 4
        %v2349 = vshll.u32 %v2201, 16
        %v2351 = vrot.slane %v2349, 5
        %v2352 = vsel %vm2226, %v2347, %v2351
        %v2354 = vshrl.u32 %v2202, 16
        %v2356 = vrot.slane %v2354, 4
        %v2357 = vshll.u32 %v2202, 16
        %v2359 = vrot.slane %v2357, 5
        %v2360 = vor.u32 %v2356, %v2359
        %v2361 = vrot.slane %v2360, 4
        %v2363 = vshll.u32 %v2203, 16
        %v2365 = vrot.slane %v2363, 5
        %v2366 = vsel %vm2226, %v2361, %v2365
        %v2368 = vshrl.u32 %v2204, 16
        %v2370 = vrot.slane %v2368, 4
        %v2371 = vshll.u32 %v2204, 16
        %v2373 = vrot.slane %v2371, 5
        %v2374 = vor.u32 %v2370, %v2373
        %v2375 = vrot.slane %v2374, 4
        %v2377 = vshll.u32 %v2205, 16
        %v2379 = vrot.slane %v2377, 5
        %v2380 = vsel %vm2226, %v2375, %v2379
        %v2382 = vshrl.u32 %v2206, 16
        %v2384 = vrot.slane %v2382, 4
        %v2385 = vshll.u32 %v2206, 16
        %v2387 = vrot.slane %v2385, 5
        %v2388 = vor.u32 %v2384, %v2387
        %v2389 = vrot.slane %v2388, 4
        %v2391 = vshll.u32 %v2207, 16
        %v2393 = vrot.slane %v2391, 5
        %v2394 = vsel %vm2226, %v2389, %v2393
        %v2396 = vshrl.u32 %v2208, 16
        %v2398 = vrot.slane %v2396, 4
        %v2399 = vshll.u32 %v2208, 16
        %v2401 = vrot.slane %v2399, 5
        %v2402 = vor.u32 %v2398, %v2401
        %v2403 = vrot.slane %v2402, 4
        %v2405 = vshll.u32 %v2209, 16
        %v2407 = vrot.slane %v2405, 5
        %v2408 = vsel %vm2226, %v2403, %v2407
        %v2410 = vshrl.u32 %v2210, 16
        %v2412 = vrot.slane %v2410, 4
        %v2413 = vshll.u32 %v2210, 16
        %v2415 = vrot.slane %v2413, 5
        %v2416 = vor.u32 %v2412, %v2415
        %v2417 = vrot.slane %v2416, 4
        %v2419 = vshll.u32 %v2211, 16
        %v2421 = vrot.slane %v2419, 5
        %v2422 = vsel %vm2226, %v2417, %v2421
        %v2424 = vshrl.u32 %v2212, 16
        %v2426 = vrot.slane %v2424, 4
        %v2427 = vshll.u32 %v2212, 16
        %v2429 = vrot.slane %v2427, 5
        %v2430 = vor.u32 %v2426, %v2429
        %v2431 = vrot.slane %v2430, 4
        %v2433 = vshll.u32 %v2213, 16
        %v2435 = vrot.slane %v2433, 5
        %v2436 = vsel %vm2226, %v2431, %v2435
        %v2438 = vshrl.u32 %v2214, 16
        %v2440 = vrot.slane %v2438, 4
        %v2441 = vshll.u32 %v2214, 16
        %v2443 = vrot.slane %v2441, 5
        %v2444 = vor.u32 %v2440, %v2443
        %v2445 = vrot.slane %v2444, 4
        %v2447 = vshll.u32 %v2215, 16
        %v2449 = vrot.slane %v2447, 5
        %v2450 = vsel %vm2226, %v2445, %v2449
        %v2452 = vshrl.u32 %v2216, 16
        %v2454 = vrot.slane %v2452, 4
        %v2455 = vshll.u32 %v2216, 16
        %v2457 = vrot.slane %v2455, 5
        %v2458 = vor.u32 %v2454, %v2457
        %v2459 = vrot.slane %v2458, 4
        %v2461 = vshll.u32 %v2217, 16
        %v2463 = vrot.slane %v2461, 5
        %v2464 = vsel %vm2226, %v2459, %v2463
        %v2466 = vshrl.u32 %v2218, 16
        %v2468 = vrot.slane %v2466, 4
        %v2469 = vshll.u32 %v2218, 16
        %v2471 = vrot.slane %v2469, 5
        %v2472 = vor.u32 %v2468, %v2471
        %v2473 = vrot.slane %v2472, 4
        %v2475 = vshll.u32 %v2219, 16
        %v2477 = vrot.slane %v2475, 5
        %v2478 = vsel %vm2226, %v2473, %v2477
        %v2480 = vshrl.u32 %v2220, 16
        %v2482 = vrot.slane %v2480, 4
        %v2483 = vshll.u32 %v2220, 16
        %v2485 = vrot.slane %v2483, 5
        %v2486 = vor.u32 %v2482, %v2485
        %v2487 = vrot.slane %v2486, 4
        %v2489 = vshll.u32 %v2221, 16
        %v2491 = vrot.slane %v2489, 5
        %v2492 = vsel %vm2226, %v2487, %v2491
        %v2494 = vshrl.u32 %v2222, 16
        %v2496 = vrot.slane %v2494, 4
        %v2497 = vshll.u32 %v2222, 16
        %v2499 = vrot.slane %v2497, 5
        %v2500 = vor.u32 %v2496, %v2499
        %v2501 = vrot.slane %v2500, 4
        %v2503 = vshll.u32 %v2223, 16
        %v2505 = vrot.slane %v2503, 5
        %v2506 = vsel %vm2226, %v2501, %v2505
        %2507 = vrot.lane.b32.xlu0 %v2240, 64
        %v2508 = vpop.permute.xlu0 %2507
        %2509 = vrot.lane.b32.xlu0 %v2254, 64
        %v2510 = vpop.permute.xlu0 %2509
        %2511 = vrot.lane.b32.xlu0 %v2268, 64
        %v2512 = vpop.permute.xlu0 %2511
        %2513 = vrot.lane.b32.xlu0 %v2282, 64
        %v2514 = vpop.permute.xlu0 %2513
        %2515 = vrot.lane.b32.xlu0 %v2296, 64
        %v2516 = vpop.permute.xlu0 %2515
        %2517 = vrot.lane.b32.xlu0 %v2310, 64
        %v2518 = vpop.permute.xlu0 %2517
        %2519 = vrot.lane.b32.xlu0 %v2324, 64
        %v2520 = vpop.permute.xlu0 %2519
        %2521 = vrot.lane.b32.xlu0 %v2338, 64
        %v2522 = vpop.permute.xlu0 %2521
        %2523 = vrot.lane.b32.xlu0 %v2352, 64
        %v2524 = vpop.permute.xlu0 %2523
        %2525 = vrot.lane.b32.xlu0 %v2366, 64
        %v2526 = vpop.permute.xlu0 %2525
        %2527 = vrot.lane.b32.xlu0 %v2380, 64
        %v2528 = vpop.permute.xlu0 %2527
        %2529 = vrot.lane.b32.xlu0 %v2394, 64
        %v2530 = vpop.permute.xlu0 %2529
        %2531 = vrot.lane.b32.xlu0 %v2408, 64
        %v2532 = vpop.permute.xlu0 %2531
        %2533 = vrot.lane.b32.xlu0 %v2422, 64
        %v2534 = vpop.permute.xlu0 %2533
        %2535 = vrot.lane.b32.xlu0 %v2436, 64
        %v2536 = vpop.permute.xlu0 %2535
        %2537 = vrot.lane.b32.xlu0 %v2450, 64
        %v2538 = vpop.permute.xlu0 %2537
        %2539 = vrot.lane.b32.xlu0 %v2464, 64
        %v2540 = vpop.permute.xlu0 %2539
        %2541 = vrot.lane.b32.xlu0 %v2478, 64
        %v2542 = vpop.permute.xlu0 %2541
        %2543 = vrot.lane.b32.xlu0 %v2492, 64
        %v2544 = vpop.permute.xlu0 %2543
        %2545 = vrot.lane.b32.xlu0 %v2506, 64
        %v2546 = vpop.permute.xlu0 %2545
        %vm2567 = vcmask 1043968
        %2568 = vst.msk [vmem:[#allocation4] sm:$0xf] %vm2567, %v2508
        %2569 = vst.msk [vmem:[#allocation4 + $0x8] sm:$0xf] %vm2567, %v2510
        %2570 = vst.msk [vmem:[#allocation4 + $0x10] sm:$0xf] %vm2567, %v2512
        %2571 = vst.msk [vmem:[#allocation4 + $0x18] sm:$0xf] %vm2567, %v2514
        %2572 = vst.msk [vmem:[#allocation4 + $0x20] sm:$0xf] %vm2567, %v2516
        %2573 = vst.msk [vmem:[#allocation4 + $0x28] sm:$0xf] %vm2567, %v2518
        %2574 = vst.msk [vmem:[#allocation4 + $0x30] sm:$0xf] %vm2567, %v2520
        %2575 = vst.msk [vmem:[#allocation4 + $0x38] sm:$0xf] %vm2567, %v2522
        %2576 = vst.msk [vmem:[#allocation4 + $0x40] sm:$0xf] %vm2567, %v2524
        %2577 = vst.msk [vmem:[#allocation4 + $0x48] sm:$0xf] %vm2567, %v2526
        %2578 = vst.msk [vmem:[#allocation4 + $0x50] sm:$0xf] %vm2567, %v2528
        %2579 = vst.msk [vmem:[#allocation4 + $0x58] sm:$0xf] %vm2567, %v2530
        %2580 = vst.msk [vmem:[#allocation4 + $0x60] sm:$0xf] %vm2567, %v2532
        %2581 = vst.msk [vmem:[#allocation4 + $0x68] sm:$0xf] %vm2567, %v2534
        %2582 = vst.msk [vmem:[#allocation4 + $0x70] sm:$0xf] %vm2567, %v2536
        %2583 = vst.msk [vmem:[#allocation4 + $0x78] sm:$0xf] %vm2567, %v2538
        %2584 = vst.msk [vmem:[#allocation4 + $0x80] sm:$0xf] %vm2567, %v2540
        %2585 = vst.msk [vmem:[#allocation4 + $0x88] sm:$0xf] %vm2567, %v2542
        %2586 = vst.msk [vmem:[#allocation4 + $0x90] sm:$0xf] %vm2567, %v2544
        %2587 = vst.msk [vmem:[#allocation4 + $0x98] sm:$0xf] %vm2567, %v2546
        %v2588 = vld [vmem:[#allocation3] sm:$0xe]
        %v2589 = vld [vmem:[#allocation3 + $0x4] sm:$0x1]
        %v2590 = vld [vmem:[#allocation3 + $0x8] sm:$0xe]
        %v2591 = vld [vmem:[#allocation3 + $0xc] sm:$0x1]
        %v2592 = vld [vmem:[#allocation3 + $0x10] sm:$0xe]
        %v2593 = vld [vmem:[#allocation3 + $0x14] sm:$0x1]
        %v2594 = vld [vmem:[#allocation3 + $0x18] sm:$0xe]
        %v2595 = vld [vmem:[#allocation3 + $0x1c] sm:$0x1]
        %v2596 = vld [vmem:[#allocation3 + $0x20] sm:$0xe]
        %v2597 = vld [vmem:[#allocation3 + $0x24] sm:$0x1]
        %v2598 = vld [vmem:[#allocation3 + $0x28] sm:$0xe]
        %v2599 = vld [vmem:[#allocation3 + $0x2c] sm:$0x1]
        %v2600 = vld [vmem:[#allocation3 + $0x30] sm:$0xe]
        %v2601 = vld [vmem:[#allocation3 + $0x34] sm:$0x1]
        %v2602 = vld [vmem:[#allocation3 + $0x38] sm:$0xe]
        %v2603 = vld [vmem:[#allocation3 + $0x3c] sm:$0x1]
        %v2604 = vld [vmem:[#allocation3 + $0x40] sm:$0xe]
        %v2605 = vld [vmem:[#allocation3 + $0x44] sm:$0x1]
        %v2606 = vld [vmem:[#allocation3 + $0x48] sm:$0xe]
        %v2607 = vld [vmem:[#allocation3 + $0x4c] sm:$0x1]
        %v2608 = vld [vmem:[#allocation3 + $0x50] sm:$0xe]
        %v2609 = vld [vmem:[#allocation3 + $0x54] sm:$0x1]
        %v2610 = vld [vmem:[#allocation3 + $0x58] sm:$0xe]
        %v2611 = vld [vmem:[#allocation3 + $0x5c] sm:$0x1]
        %v2612 = vld [vmem:[#allocation3 + $0x60] sm:$0xe]
        %v2613 = vld [vmem:[#allocation3 + $0x64] sm:$0x1]
        %v2614 = vld [vmem:[#allocation3 + $0x68] sm:$0xe]
        %v2615 = vld [vmem:[#allocation3 + $0x6c] sm:$0x1]
        %v2616 = vld [vmem:[#allocation3 + $0x70] sm:$0xe]
        %v2617 = vld [vmem:[#allocation3 + $0x74] sm:$0x1]
        %v2618 = vld [vmem:[#allocation3 + $0x78] sm:$0xe]
        %v2619 = vld [vmem:[#allocation3 + $0x7c] sm:$0x1]
        %v2620 = vld [vmem:[#allocation3 + $0x80] sm:$0xe]
        %v2621 = vld [vmem:[#allocation3 + $0x84] sm:$0x1]
        %v2622 = vld [vmem:[#allocation3 + $0x88] sm:$0xe]
        %v2623 = vld [vmem:[#allocation3 + $0x8c] sm:$0x1]
        %v2624 = vld [vmem:[#allocation3 + $0x90] sm:$0xe]
        %v2625 = vld [vmem:[#allocation3 + $0x94] sm:$0x1]
        %v2626 = vld [vmem:[#allocation3 + $0x98] sm:$0xe]
        %v2627 = vld [vmem:[#allocation3 + $0x9c] sm:$0x1]
        %vm2668 = vcmask 1042432
        %vm2669 = vcmask 1046532
        %vm2670 = vmor %vm2668, %vm2669
        %v2671 = vrot.slane %v2588, 5
        %v2672 = vrot.slane %v2671, 4
        %v2673 = vrot.slane %v2589, 5
        %v2674 = vsel %vm2670, %v2672, %v2673
        %v2675 = vrot.slane %v2590, 5
        %v2676 = vrot.slane %v2675, 4
        %v2677 = vrot.slane %v2591, 5
        %v2678 = vsel %vm2670, %v2676, %v2677
        %v2679 = vrot.slane %v2592, 5
        %v2680 = vrot.slane %v2679, 4
        %v2681 = vrot.slane %v2593, 5
        %v2682 = vsel %vm2670, %v2680, %v2681
        %v2683 = vrot.slane %v2594, 5
        %v2684 = vrot.slane %v2683, 4
        %v2685 = vrot.slane %v2595, 5
        %v2686 = vsel %vm2670, %v2684, %v2685
        %v2687 = vrot.slane %v2596, 5
        %v2688 = vrot.slane %v2687, 4
        %v2689 = vrot.slane %v2597, 5
        %v2690 = vsel %vm2670, %v2688, %v2689
        %v2691 = vrot.slane %v2598, 5
        %v2692 = vrot.slane %v2691, 4
        %v2693 = vrot.slane %v2599, 5
        %v2694 = vsel %vm2670, %v2692, %v2693
        %v2695 = vrot.slane %v2600, 5
        %v2696 = vrot.slane %v2695, 4
        %v2697 = vrot.slane %v2601, 5
        %v2698 = vsel %vm2670, %v2696, %v2697
        %v2699 = vrot.slane %v2602, 5
        %v2700 = vrot.slane %v2699, 4
        %v2701 = vrot.slane %v2603, 5
        %v2702 = vsel %vm2670, %v2700, %v2701
        %v2703 = vrot.slane %v2604, 5
        %v2704 = vrot.slane %v2703, 4
        %v2705 = vrot.slane %v2605, 5
        %v2706 = vsel %vm2670, %v2704, %v2705
        %v2707 = vrot.slane %v2606, 5
        %v2708 = vrot.slane %v2707, 4
        %v2709 = vrot.slane %v2607, 5
        %v2710 = vsel %vm2670, %v2708, %v2709
        %v2711 = vrot.slane %v2608, 5
        %v2712 = vrot.slane %v2711, 4
        %v2713 = vrot.slane %v2609, 5
        %v2714 = vsel %vm2670, %v2712, %v2713
        %v2715 = vrot.slane %v2610, 5
        %v2716 = vrot.slane %v2715, 4
        %v2717 = vrot.slane %v2611, 5
        %v2718 = vsel %vm2670, %v2716, %v2717
        %v2719 = vrot.slane %v2612, 5
        %v2720 = vrot.slane %v2719, 4
        %v2721 = vrot.slane %v2613, 5
        %v2722 = vsel %vm2670, %v2720, %v2721
        %v2723 = vrot.slane %v2614, 5
        %v2724 = vrot.slane %v2723, 4
        %v2725 = vrot.slane %v2615, 5
        %v2726 = vsel %vm2670, %v2724, %v2725
        %v2727 = vrot.slane %v2616, 5
        %v2728 = vrot.slane %v2727, 4
        %v2729 = vrot.slane %v2617, 5
        %v2730 = vsel %vm2670, %v2728, %v2729
        %v2731 = vrot.slane %v2618, 5
        %v2732 = vrot.slane %v2731, 4
        %v2733 = vrot.slane %v2619, 5
        %v2734 = vsel %vm2670, %v2732, %v2733
        %v2735 = vrot.slane %v2620, 5
        %v2736 = vrot.slane %v2735, 4
        %v2737 = vrot.slane %v2621, 5
        %v2738 = vsel %vm2670, %v2736, %v2737
        %v2739 = vrot.slane %v2622, 5
        %v2740 = vrot.slane %v2739, 4
        %v2741 = vrot.slane %v2623, 5
        %v2742 = vsel %vm2670, %v2740, %v2741
        %v2743 = vrot.slane %v2624, 5
        %v2744 = vrot.slane %v2743, 4
        %v2745 = vrot.slane %v2625, 5
        %v2746 = vsel %vm2670, %v2744, %v2745
        %v2747 = vrot.slane %v2626, 5
        %v2748 = vrot.slane %v2747, 4
        %v2749 = vrot.slane %v2627, 5
        %v2750 = vsel %vm2670, %v2748, %v2749
        %2771 = vst.msk [vmem:[#allocation4 + $0x4] sm:$0xf] %vm335, %v2674
        %2772 = vst.msk [vmem:[#allocation4 + $0xc] sm:$0xf] %vm335, %v2678
        %2773 = vst.msk [vmem:[#allocation4 + $0x14] sm:$0xf] %vm335, %v2682
        %2774 = vst.msk [vmem:[#allocation4 + $0x1c] sm:$0xf] %vm335, %v2686
        %2775 = vst.msk [vmem:[#allocation4 + $0x24] sm:$0xf] %vm335, %v2690
        %2776 = vst.msk [vmem:[#allocation4 + $0x2c] sm:$0xf] %vm335, %v2694
        %2777 = vst.msk [vmem:[#allocation4 + $0x34] sm:$0xf] %vm335, %v2698
        %2778 = vst.msk [vmem:[#allocation4 + $0x3c] sm:$0xf] %vm335, %v2702
        %2779 = vst.msk [vmem:[#allocation4 + $0x44] sm:$0xf] %vm335, %v2706
        %2780 = vst.msk [vmem:[#allocation4 + $0x4c] sm:$0xf] %vm335, %v2710
        %2781 = vst.msk [vmem:[#allocation4 + $0x54] sm:$0xf] %vm335, %v2714
        %2782 = vst.msk [vmem:[#allocation4 + $0x5c] sm:$0xf] %vm335, %v2718
        %2783 = vst.msk [vmem:[#allocation4 + $0x64] sm:$0xf] %vm335, %v2722
        %2784 = vst.msk [vmem:[#allocation4 + $0x6c] sm:$0xf] %vm335, %v2726
        %2785 = vst.msk [vmem:[#allocation4 + $0x74] sm:$0xf] %vm335, %v2730
        %2786 = vst.msk [vmem:[#allocation4 + $0x7c] sm:$0xf] %vm335, %v2734
        %2787 = vst.msk [vmem:[#allocation4 + $0x84] sm:$0xf] %vm335, %v2738
        %2788 = vst.msk [vmem:[#allocation4 + $0x8c] sm:$0xf] %vm335, %v2742
        %2789 = vst.msk [vmem:[#allocation4 + $0x94] sm:$0xf] %vm335, %v2746
        %2790 = vst.msk [vmem:[#allocation4 + $0x9c] sm:$0xf] %vm335, %v2750
        %v2791 = vld [vmem:[#allocation4] sm:$0xff]
        %v2792 = vld [vmem:[#allocation4 + $0x8] sm:$0xff]
        %v2793 = vld [vmem:[#allocation4 + $0x10] sm:$0xff]
        %v2794 = vld [vmem:[#allocation4 + $0x18] sm:$0xff]
        %v2795 = vld [vmem:[#allocation4 + $0x20] sm:$0xff]
        %v2796 = vld [vmem:[#allocation4 + $0x28] sm:$0xff]
        %v2797 = vld [vmem:[#allocation4 + $0x30] sm:$0xff]
        %v2798 = vld [vmem:[#allocation4 + $0x38] sm:$0xff]
        %v2799 = vld [vmem:[#allocation4 + $0x50] sm:$0xff]
        %v2800 = vld [vmem:[#allocation4 + $0x58] sm:$0xff]
        %v2801 = vld [vmem:[#allocation4 + $0x60] sm:$0xff]
        %v2802 = vld [vmem:[#allocation4 + $0x68] sm:$0xff]
        %v2803 = vld [vmem:[#allocation4 + $0x70] sm:$0xff]
        %v2804 = vld [vmem:[#allocation4 + $0x78] sm:$0xff]
        %v2805 = vld [vmem:[#allocation4 + $0x80] sm:$0xff]
        %v2806 = vld [vmem:[#allocation4 + $0x88] sm:$0xff]
        %s2807 = smul.u32 %s2139, 3
        %s2808 = smul.u32 %s2807, 24
        %s2809 = smul.addr %s2808, 4
        %s2810 = scalar_lea.vmem %s267, %s2809
        %v2811 = vld [vmem:[%s2810] sm:$0xf]
        %v2812 = vld [vmem:[%s2810 + $0x4] sm:$0xf]
        %v2813 = vld [vmem:[%s2810 + $0x8] sm:$0xf]
        %v2814 = vld [vmem:[%s2810 + $0xc] sm:$0xf]
        %v2815 = vld [vmem:[%s2810 + $0x10] sm:$0xf]
        %v2816 = vld [vmem:[%s2810 + $0x14] sm:$0xf]
        %v2817 = vld [vmem:[%s2810 + $0x18] sm:$0xf]
        %v2818 = vld [vmem:[%s2810 + $0x1c] sm:$0xf]
        %v2819 = vld [vmem:[%s2810 + $0x20] sm:$0xf]
        %v2820 = vld [vmem:[%s2810 + $0x24] sm:$0xf]
        %v2821 = vld [vmem:[%s2810 + $0x28] sm:$0xf]
        %v2822 = vld [vmem:[%s2810 + $0x2c] sm:$0xf]
        %v2823 = vld [vmem:[%s2810 + $0x30] sm:$0xf]
        %v2824 = vld [vmem:[%s2810 + $0x34] sm:$0xf]
        %v2825 = vld [vmem:[%s2810 + $0x38] sm:$0xf]
        %v2826 = vld [vmem:[%s2810 + $0x3c] sm:$0xf]
        %v2827 = vld [vmem:[%s2810 + $0x40] sm:$0xf]
        %v2828 = vld [vmem:[%s2810 + $0x44] sm:$0xf]
        %v2829 = vld [vmem:[%s2810 + $0x48] sm:$0xf]
        %v2830 = vld [vmem:[%s2810 + $0x4c] sm:$0xf]
        %v2831 = vld [vmem:[%s2810 + $0x50] sm:$0xf]
        %v2832 = vld [vmem:[%s2810 + $0x54] sm:$0xf]
        %v2833 = vld [vmem:[%s2810 + $0x58] sm:$0xf]
        %v2834 = vld [vmem:[%s2810 + $0x5c] sm:$0xf]
        %v2851 = vunpack.c.l.b16 %v2791
        %v2852 = vunpack.c.h.b16 %v2791
        %v2853 = vunpack.c.l.b16 %v2792
        %v2854 = vunpack.c.h.b16 %v2792
        %v2855 = vunpack.c.l.b16 %v2793
        %v2856 = vunpack.c.h.b16 %v2793
        %v2857 = vunpack.c.l.b16 %v2794
        %v2858 = vunpack.c.h.b16 %v2794
        %v2859 = vunpack.c.l.b16 %v2795
        %v2860 = vunpack.c.h.b16 %v2795
        %v2861 = vunpack.c.l.b16 %v2796
        %v2862 = vunpack.c.h.b16 %v2796
        %v2863 = vunpack.c.l.b16 %v2797
        %v2864 = vunpack.c.h.b16 %v2797
        %v2865 = vunpack.c.l.b16 %v2798
        %v2866 = vunpack.c.h.b16 %v2798
        %v2867 = vunpack.c.l.b16 %v2799
        %v2868 = vunpack.c.h.b16 %v2799
        %v2869 = vunpack.c.l.b16 %v2800
        %v2870 = vunpack.c.h.b16 %v2800
        %v2871 = vunpack.c.l.b16 %v2801
        %v2872 = vunpack.c.h.b16 %v2801
        %v2873 = vunpack.c.l.b16 %v2802
        %v2874 = vunpack.c.h.b16 %v2802
        %v2875 = vunpack.c.l.b16 %v2803
        %v2876 = vunpack.c.h.b16 %v2803
        %v2877 = vunpack.c.l.b16 %v2804
        %v2878 = vunpack.c.h.b16 %v2804
        %v2879 = vunpack.c.l.b16 %v2805
        %v2880 = vunpack.c.h.b16 %v2805
        %v2881 = vunpack.c.l.b16 %v2806
        %v2882 = vunpack.c.h.b16 %v2806
        %v2883 = vpack.c.b16 %v2853, %v2851
        %v2884 = vpack.c.b16 %v2854, %v2852
        %v2885 = vpack.c.b16 %v2857, %v2855
        %v2886 = vpack.c.b16 %v2858, %v2856
        %v2887 = vpack.c.b16 %v2861, %v2859
        %v2888 = vpack.c.b16 %v2862, %v2860
        %v2889 = vpack.c.b16 %v2865, %v2863
        %v2890 = vpack.c.b16 %v2866, %v2864
        %v2891 = vpack.c.b16 %v2869, %v2867
        %v2892 = vpack.c.b16 %v2870, %v2868
        %v2893 = vpack.c.b16 %v2873, %v2871
        %v2894 = vpack.c.b16 %v2874, %v2872
        %v2895 = vpack.c.b16 %v2877, %v2875
        %v2896 = vpack.c.b16 %v2878, %v2876
        %v2897 = vpack.c.b16 %v2881, %v2879
        %v2898 = vpack.c.b16 %v2882, %v2880
        %v2931 = vunpack.c.l.b16 %v2811
        %v2932 = vunpack.c.l.b16 %v2812
        %v2933 = vunpack.c.l.b16 %v2813
        %v2934 = vunpack.c.l.b16 %v2814
        %v2935 = vunpack.c.l.b16 %v2815
        %v2936 = vunpack.c.l.b16 %v2816
        %v2937 = vunpack.c.l.b16 %v2817
        %v2938 = vunpack.c.l.b16 %v2818
        %v2939 = vunpack.c.l.b16 %v2819
        %v2940 = vunpack.c.l.b16 %v2820
        %v2941 = vunpack.c.l.b16 %v2821
        %v2942 = vunpack.c.l.b16 %v2822
        %v2943 = vunpack.c.l.b16 %v2823
        %v2944 = vunpack.c.l.b16 %v2824
        %v2945 = vunpack.c.l.b16 %v2825
        %v2946 = vunpack.c.l.b16 %v2826
        %v2947 = vunpack.c.l.b16 %v2827
        %v2948 = vunpack.c.l.b16 %v2828
        %v2949 = vunpack.c.l.b16 %v2829
        %v2950 = vunpack.c.l.b16 %v2830
        %v2951 = vunpack.c.l.b16 %v2831
        %v2952 = vunpack.c.l.b16 %v2832
        %v2953 = vunpack.c.l.b16 %v2833
        %v2954 = vunpack.c.l.b16 %v2834
        %v2955 = vpack.c.b16 %v2932, %v2931
        %v2956 = vpack.c.b16 %v2934, %v2933
        %v2957 = vpack.c.b16 %v2936, %v2935
        %v2958 = vpack.c.b16 %v2938, %v2937
        %v2959 = vpack.c.b16 %v2940, %v2939
        %v2960 = vpack.c.b16 %v2942, %v2941
        %v2961 = vpack.c.b16 %v2944, %v2943
        %v2962 = vpack.c.b16 %v2946, %v2945
        %v2963 = vpack.c.b16 %v2948, %v2947
        %v2964 = vpack.c.b16 %v2950, %v2949
        %v2965 = vpack.c.b16 %v2952, %v2951
        %v2966 = vpack.c.b16 %v2954, %v2953
        %v2980 = vsel %vm886, %v2884, 0
        %v2983 = vsel %vm886, %v2886, 0
        %v2986 = vsel %vm886, %v2888, 0
        %v2989 = vsel %vm886, %v2890, 0
        %v2992 = vsel %vm886, %v2892, 0
        %v2995 = vsel %vm886, %v2894, 0
        %v2998 = vsel %vm886, %v2896, 0
        %v3001 = vsel %vm886, %v2898, 0
        %3003 = vmatprep.subr.bf16.mxu0 0
        %3004 = vmatpush1.bf16.msra.mxu0 %v2962
        %3005 = vmatprep.subr.bf16.mxu0 0
        %3006 = vmatpush1.bf16.msra.mxu0 %v2961
        %3007 = vmatprep.subr.bf16.mxu0 0
        %3008 = vmatpush1.bf16.msra.mxu0 %v2960
        %3009 = vmatprep.subr.bf16.mxu0 0
        %3010 = vmatpush1.bf16.msra.mxu0 %v2959
        %3011 = vmatprep.subr.bf16.mxu0 0
        %3012 = vmatpush1.bf16.msra.mxu0 %v2958
        %3013 = vmatprep.subr.bf16.mxu0 0
        %3014 = vmatpush1.bf16.msra.mxu0 %v2957
        %3015 = vmatprep.subr.bf16.mxu0 0
        %3016 = vmatpush1.bf16.msra.mxu0 %v2956
        %3017 = vmatprep.subr.bf16.mxu0 0
        %3018 = vmatpush1.bf16.msra.mxu0 %v2955
        %3019 = vmatprep.subr.bf16.mxu0 0
        %3020 = vmatpush2.bf16.msra.mxu0 0
        %3021 = vmatprep.subr.bf16.mxu0 0
        %3022 = vmatpush2.bf16.msra.mxu0 0
        %3023 = vmatprep.subr.bf16.mxu0 0
        %3024 = vmatpush2.bf16.msra.mxu0 0
        %3025 = vmatprep.subr.bf16.mxu0 0
        %3026 = vmatpush2.bf16.msra.mxu0 0
        %3027 = vmatprep.subr.bf16.mxu0 0
        %3028 = vmatpush2.bf16.msra.mxu0 %v2966
        %3029 = vmatprep.subr.bf16.mxu0 0
        %3030 = vmatpush2.bf16.msra.mxu0 %v2965
        %3031 = vmatprep.subr.bf16.mxu0 0
        %3032 = vmatpush2.bf16.msra.mxu0 %v2964
        %3033 = vmatprep.subr.bf16.mxu0 0
        %3034 = vmatpush2.bf16.msra.mxu0 %v2963
        %3035 = vmatprep.mubr.bf16.mxu0 %v2980
        %3036 = vmatmul.mubr.bf16.gmra.mxu0 %v2883
        %v3037 = vpop.f32.mrf.mxu0
        %v3038 = vadd.f32 0.0, %v3037
        %v3039 = vpop.f32.mrf.mxu0
        %v3040 = vpop.f32.mrf.mxu0
        %v3041 = vadd.f32 0.0, %v3040
        %v3042 = vpop.f32.mrf.mxu0
        %3043 = vmatprep.mubr.bf16.mxu0 %v2983
        %3044 = vmatmul.mubr.bf16.gmra.mxu0 %v2885
        %v3045 = vpop.f32.mrf.mxu0
        %v3046 = vadd.f32 0.0, %v3045
        %v3047 = vpop.f32.mrf.mxu0
        %v3048 = vpop.f32.mrf.mxu0
        %v3049 = vadd.f32 0.0, %v3048
        %v3050 = vpop.f32.mrf.mxu0
        %3051 = vmatprep.mubr.bf16.mxu0 %v2986
        %3052 = vmatmul.mubr.bf16.gmra.mxu0 %v2887
        %v3053 = vpop.f32.mrf.mxu0
        %v3054 = vadd.f32 0.0, %v3053
        %v3055 = vpop.f32.mrf.mxu0
        %v3056 = vpop.f32.mrf.mxu0
        %v3057 = vadd.f32 0.0, %v3056
        %v3058 = vpop.f32.mrf.mxu0
        %3059 = vmatprep.mubr.bf16.mxu0 %v2989
        %3060 = vmatmul.mubr.bf16.gmra.mxu0 %v2889
        %v3061 = vpop.f32.mrf.mxu0
        %v3062 = vadd.f32 0.0, %v3061
        %v3063 = vpop.f32.mrf.mxu0
        %v3064 = vpop.f32.mrf.mxu0
        %v3065 = vadd.f32 0.0, %v3064
        %v3066 = vpop.f32.mrf.mxu0
        %3067 = vmatprep.mubr.bf16.mxu0 %v2992
        %3068 = vmatmul.mubr.bf16.gmra.mxu0 %v2891
        %v3069 = vpop.f32.mrf.mxu0
        %v3070 = vadd.f32 0.0, %v3069
        %v3071 = vpop.f32.mrf.mxu0
        %v3072 = vpop.f32.mrf.mxu0
        %v3073 = vadd.f32 0.0, %v3072
        %v3074 = vpop.f32.mrf.mxu0
        %3075 = vmatprep.mubr.bf16.mxu0 %v2995
        %3076 = vmatmul.mubr.bf16.gmra.mxu0 %v2893
        %v3077 = vpop.f32.mrf.mxu0
        %v3078 = vadd.f32 0.0, %v3077
        %v3079 = vpop.f32.mrf.mxu0
        %v3080 = vpop.f32.mrf.mxu0
        %v3081 = vadd.f32 0.0, %v3080
        %v3082 = vpop.f32.mrf.mxu0
        %3083 = vmatprep.mubr.bf16.mxu0 %v2998
        %3084 = vmatmul.mubr.bf16.gmra.mxu0 %v2895
        %v3085 = vpop.f32.mrf.mxu0
        %v3086 = vadd.f32 0.0, %v3085
        %v3087 = vpop.f32.mrf.mxu0
        %v3088 = vpop.f32.mrf.mxu0
        %v3089 = vadd.f32 0.0, %v3088
        %v3090 = vpop.f32.mrf.mxu0
        %3091 = vmatprep.mubr.bf16.mxu0 %v3001
        %3092 = vmatmul.mubr.bf16.gmra.mxu0 %v2897
        %v3093 = vpop.f32.mrf.mxu0
        %v3094 = vadd.f32 0.0, %v3093
        %v3095 = vpop.f32.mrf.mxu0
        %v3096 = vpop.f32.mrf.mxu0
        %v3097 = vadd.f32 0.0, %v3096
        %v3098 = vpop.f32.mrf.mxu0
        %3099 = vdwg.mxu0
        %3100 = vst.msk [vmem:[#allocation5] sm:$0xff] %vm886, %v3038
        %3101 = vst.msk [vmem:[#allocation5 + $0x8] sm:$0xff] %vm886, %v3041
        %3102 = vst.msk [vmem:[#allocation5 + $0x10] sm:$0xff] %vm886, %v3046
        %3103 = vst.msk [vmem:[#allocation5 + $0x18] sm:$0xff] %vm886, %v3049
        %3104 = vst.msk [vmem:[#allocation5 + $0x20] sm:$0xff] %vm886, %v3054
        %3105 = vst.msk [vmem:[#allocation5 + $0x28] sm:$0xff] %vm886, %v3057
        %3106 = vst.msk [vmem:[#allocation5 + $0x30] sm:$0xff] %vm886, %v3062
        %3107 = vst.msk [vmem:[#allocation5 + $0x38] sm:$0xff] %vm886, %v3065
        %3108 = vst.msk [vmem:[#allocation5 + $0x40] sm:$0xff] %vm886, %v3070
        %3109 = vst.msk [vmem:[#allocation5 + $0x48] sm:$0xff] %vm886, %v3073
        %3110 = vst.msk [vmem:[#allocation5 + $0x50] sm:$0xff] %vm886, %v3078
        %3111 = vst.msk [vmem:[#allocation5 + $0x58] sm:$0xff] %vm886, %v3081
        %3112 = vst.msk [vmem:[#allocation5 + $0x60] sm:$0xff] %vm886, %v3086
        %3113 = vst.msk [vmem:[#allocation5 + $0x68] sm:$0xff] %vm886, %v3089
        %3114 = vst.msk [vmem:[#allocation5 + $0x70] sm:$0xff] %vm886, %v3094
        %3115 = vst.msk [vmem:[#allocation5 + $0x78] sm:$0xff] %vm886, %v3097
        %s3116 = scalar_lea.vmem [#allocation4], 8
        %v3117 = vld [vmem:[%s3116] sm:$0xff]
        %v3118 = vld [vmem:[%s3116 + $0x8] sm:$0xff]
        %v3119 = vld [vmem:[%s3116 + $0x10] sm:$0xff]
        %v3120 = vld [vmem:[%s3116 + $0x18] sm:$0xff]
        %v3121 = vld [vmem:[%s3116 + $0x20] sm:$0xff]
        %v3122 = vld [vmem:[%s3116 + $0x28] sm:$0xff]
        %v3123 = vld [vmem:[%s3116 + $0x30] sm:$0xff]
        %v3124 = vld [vmem:[%s3116 + $0x38] sm:$0xff]
        %v3125 = vld [vmem:[%s3116 + $0x50] sm:$0xff]
        %v3126 = vld [vmem:[%s3116 + $0x58] sm:$0xff]
        %v3127 = vld [vmem:[%s3116 + $0x60] sm:$0xff]
        %v3128 = vld [vmem:[%s3116 + $0x68] sm:$0xff]
        %v3129 = vld [vmem:[%s3116 + $0x70] sm:$0xff]
        %v3130 = vld [vmem:[%s3116 + $0x78] sm:$0xff]
        %v3131 = vld [vmem:[%s3116 + $0x80] sm:$0xff]
        %v3132 = vld [vmem:[%s3116 + $0x88] sm:$0xff]
        %s3133 = sadd.s32 %s2807, 1
        %s3134 = smul.u32 %s3133, 24
        %s3135 = smul.addr %s3134, 4
        %s3136 = scalar_lea.vmem %s267, %s3135
        %v3137 = vld [vmem:[%s3136] sm:$0xf]
        %v3138 = vld [vmem:[%s3136 + $0x4] sm:$0xf]
        %v3139 = vld [vmem:[%s3136 + $0x8] sm:$0xf]
        %v3140 = vld [vmem:[%s3136 + $0xc] sm:$0xf]
        %v3141 = vld [vmem:[%s3136 + $0x10] sm:$0xf]
        %v3142 = vld [vmem:[%s3136 + $0x14] sm:$0xf]
        %v3143 = vld [vmem:[%s3136 + $0x18] sm:$0xf]
        %v3144 = vld [vmem:[%s3136 + $0x1c] sm:$0xf]
        %v3145 = vld [vmem:[%s3136 + $0x20] sm:$0xf]
        %v3146 = vld [vmem:[%s3136 + $0x24] sm:$0xf]
        %v3147 = vld [vmem:[%s3136 + $0x28] sm:$0xf]
        %v3148 = vld [vmem:[%s3136 + $0x2c] sm:$0xf]
        %v3149 = vld [vmem:[%s3136 + $0x30] sm:$0xf]
        %v3150 = vld [vmem:[%s3136 + $0x34] sm:$0xf]
        %v3151 = vld [vmem:[%s3136 + $0x38] sm:$0xf]
        %v3152 = vld [vmem:[%s3136 + $0x3c] sm:$0xf]
        %v3153 = vld [vmem:[%s3136 + $0x40] sm:$0xf]
        %v3154 = vld [vmem:[%s3136 + $0x44] sm:$0xf]
        %v3155 = vld [vmem:[%s3136 + $0x48] sm:$0xf]
        %v3156 = vld [vmem:[%s3136 + $0x4c] sm:$0xf]
        %v3157 = vld [vmem:[%s3136 + $0x50] sm:$0xf]
        %v3158 = vld [vmem:[%s3136 + $0x54] sm:$0xf]
        %v3159 = vld [vmem:[%s3136 + $0x58] sm:$0xf]
        %v3160 = vld [vmem:[%s3136 + $0x5c] sm:$0xf]
        %v3177 = vunpack.c.l.b16 %v3117
        %v3178 = vunpack.c.h.b16 %v3117
        %v3179 = vunpack.c.l.b16 %v3118
        %v3180 = vunpack.c.h.b16 %v3118
        %v3181 = vunpack.c.l.b16 %v3119
        %v3182 = vunpack.c.h.b16 %v3119
        %v3183 = vunpack.c.l.b16 %v3120
        %v3184 = vunpack.c.h.b16 %v3120
        %v3185 = vunpack.c.l.b16 %v3121
        %v3186 = vunpack.c.h.b16 %v3121
        %v3187 = vunpack.c.l.b16 %v3122
        %v3188 = vunpack.c.h.b16 %v3122
        %v3189 = vunpack.c.l.b16 %v3123
        %v3190 = vunpack.c.h.b16 %v3123
        %v3191 = vunpack.c.l.b16 %v3124
        %v3192 = vunpack.c.h.b16 %v3124
        %v3193 = vunpack.c.l.b16 %v3125
        %v3194 = vunpack.c.h.b16 %v3125
        %v3195 = vunpack.c.l.b16 %v3126
        %v3196 = vunpack.c.h.b16 %v3126
        %v3197 = vunpack.c.l.b16 %v3127
        %v3198 = vunpack.c.h.b16 %v3127
        %v3199 = vunpack.c.l.b16 %v3128
        %v3200 = vunpack.c.h.b16 %v3128
        %v3201 = vunpack.c.l.b16 %v3129
        %v3202 = vunpack.c.h.b16 %v3129
        %v3203 = vunpack.c.l.b16 %v3130
        %v3204 = vunpack.c.h.b16 %v3130
        %v3205 = vunpack.c.l.b16 %v3131
        %v3206 = vunpack.c.h.b16 %v3131
        %v3207 = vunpack.c.l.b16 %v3132
        %v3208 = vunpack.c.h.b16 %v3132
        %v3209 = vpack.c.b16 %v3179, %v3177
        %v3210 = vpack.c.b16 %v3180, %v3178
        %v3211 = vpack.c.b16 %v3183, %v3181
        %v3212 = vpack.c.b16 %v3184, %v3182
        %v3213 = vpack.c.b16 %v3187, %v3185
        %v3214 = vpack.c.b16 %v3188, %v3186
        %v3215 = vpack.c.b16 %v3191, %v3189
        %v3216 = vpack.c.b16 %v3192, %v3190
        %v3217 = vpack.c.b16 %v3195, %v3193
        %v3218 = vpack.c.b16 %v3196, %v3194
        %v3219 = vpack.c.b16 %v3199, %v3197
        %v3220 = vpack.c.b16 %v3200, %v3198
        %v3221 = vpack.c.b16 %v3203, %v3201
        %v3222 = vpack.c.b16 %v3204, %v3202
        %v3223 = vpack.c.b16 %v3207, %v3205
        %v3224 = vpack.c.b16 %v3208, %v3206
        %v3257 = vunpack.c.l.b16 %v3137
        %v3258 = vunpack.c.l.b16 %v3138
        %v3259 = vunpack.c.l.b16 %v3139
        %v3260 = vunpack.c.l.b16 %v3140
        %v3261 = vunpack.c.l.b16 %v3141
        %v3262 = vunpack.c.l.b16 %v3142
        %v3263 = vunpack.c.l.b16 %v3143
        %v3264 = vunpack.c.l.b16 %v3144
        %v3265 = vunpack.c.l.b16 %v3145
        %v3266 = vunpack.c.l.b16 %v3146
        %v3267 = vunpack.c.l.b16 %v3147
        %v3268 = vunpack.c.l.b16 %v3148
        %v3269 = vunpack.c.l.b16 %v3149
        %v3270 = vunpack.c.l.b16 %v3150
        %v3271 = vunpack.c.l.b16 %v3151
        %v3272 = vunpack.c.l.b16 %v3152
        %v3273 = vunpack.c.l.b16 %v3153
        %v3274 = vunpack.c.l.b16 %v3154
        %v3275 = vunpack.c.l.b16 %v3155
        %v3276 = vunpack.c.l.b16 %v3156
        %v3277 = vunpack.c.l.b16 %v3157
        %v3278 = vunpack.c.l.b16 %v3158
        %v3279 = vunpack.c.l.b16 %v3159
        %v3280 = vunpack.c.l.b16 %v3160
        %v3281 = vpack.c.b16 %v3258, %v3257
        %v3282 = vpack.c.b16 %v3260, %v3259
        %v3283 = vpack.c.b16 %v3262, %v3261
        %v3284 = vpack.c.b16 %v3264, %v3263
        %v3285 = vpack.c.b16 %v3266, %v3265
        %v3286 = vpack.c.b16 %v3268, %v3267
        %v3287 = vpack.c.b16 %v3270, %v3269
        %v3288 = vpack.c.b16 %v3272, %v3271
        %v3289 = vpack.c.b16 %v3274, %v3273
        %v3290 = vpack.c.b16 %v3276, %v3275
        %v3291 = vpack.c.b16 %v3278, %v3277
        %v3292 = vpack.c.b16 %v3280, %v3279
        %v3306 = vsel %vm886, %v3210, 0
        %v3309 = vsel %vm886, %v3212, 0
        %v3312 = vsel %vm886, %v3214, 0
        %v3315 = vsel %vm886, %v3216, 0
        %v3318 = vsel %vm886, %v3218, 0
        %v3321 = vsel %vm886, %v3220, 0
        %v3324 = vsel %vm886, %v3222, 0
        %v3327 = vsel %vm886, %v3224, 0
        %3329 = vmatprep.subr.bf16.mxu0 0
        %3330 = vmatpush1.bf16.msra.mxu0 %v3288
        %3331 = vmatprep.subr.bf16.mxu0 0
        %3332 = vmatpush1.bf16.msra.mxu0 %v3287
        %3333 = vmatprep.subr.bf16.mxu0 0
        %3334 = vmatpush1.bf16.msra.mxu0 %v3286
        %3335 = vmatprep.subr.bf16.mxu0 0
        %3336 = vmatpush1.bf16.msra.mxu0 %v3285
        %3337 = vmatprep.subr.bf16.mxu0 0
        %3338 = vmatpush1.bf16.msra.mxu0 %v3284
        %3339 = vmatprep.subr.bf16.mxu0 0
        %3340 = vmatpush1.bf16.msra.mxu0 %v3283
        %3341 = vmatprep.subr.bf16.mxu0 0
        %3342 = vmatpush1.bf16.msra.mxu0 %v3282
        %3343 = vmatprep.subr.bf16.mxu0 0
        %3344 = vmatpush1.bf16.msra.mxu0 %v3281
        %3345 = vmatprep.subr.bf16.mxu0 0
        %3346 = vmatpush2.bf16.msra.mxu0 0
        %3347 = vmatprep.subr.bf16.mxu0 0
        %3348 = vmatpush2.bf16.msra.mxu0 0
        %3349 = vmatprep.subr.bf16.mxu0 0
        %3350 = vmatpush2.bf16.msra.mxu0 0
        %3351 = vmatprep.subr.bf16.mxu0 0
        %3352 = vmatpush2.bf16.msra.mxu0 0
        %3353 = vmatprep.subr.bf16.mxu0 0
        %3354 = vmatpush2.bf16.msra.mxu0 %v3292
        %3355 = vmatprep.subr.bf16.mxu0 0
        %3356 = vmatpush2.bf16.msra.mxu0 %v3291
        %3357 = vmatprep.subr.bf16.mxu0 0
        %3358 = vmatpush2.bf16.msra.mxu0 %v3290
        %3359 = vmatprep.subr.bf16.mxu0 0
        %3360 = vmatpush2.bf16.msra.mxu0 %v3289
        %3361 = vmatprep.mubr.bf16.mxu0 %v3306
        %3362 = vmatmul.mubr.bf16.gmra.mxu0 %v3209
        %v3363 = vpop.f32.mrf.mxu0
        %v3364 = vadd.f32 0.0, %v3363
        %v3365 = vpop.f32.mrf.mxu0
        %v3366 = vpop.f32.mrf.mxu0
        %v3367 = vadd.f32 0.0, %v3366
        %v3368 = vpop.f32.mrf.mxu0
        %3369 = vmatprep.mubr.bf16.mxu0 %v3309
        %3370 = vmatmul.mubr.bf16.gmra.mxu0 %v3211
        %v3371 = vpop.f32.mrf.mxu0
        %v3372 = vadd.f32 0.0, %v3371
        %v3373 = vpop.f32.mrf.mxu0
        %v3374 = vpop.f32.mrf.mxu0
        %v3375 = vadd.f32 0.0, %v3374
        %v3376 = vpop.f32.mrf.mxu0
        %3377 = vmatprep.mubr.bf16.mxu0 %v3312
        %3378 = vmatmul.mubr.bf16.gmra.mxu0 %v3213
        %v3379 = vpop.f32.mrf.mxu0
        %v3380 = vadd.f32 0.0, %v3379
        %v3381 = vpop.f32.mrf.mxu0
        %v3382 = vpop.f32.mrf.mxu0
        %v3383 = vadd.f32 0.0, %v3382
        %v3384 = vpop.f32.mrf.mxu0
        %3385 = vmatprep.mubr.bf16.mxu0 %v3315
        %3386 = vmatmul.mubr.bf16.gmra.mxu0 %v3215
        %v3387 = vpop.f32.mrf.mxu0
        %v3388 = vadd.f32 0.0, %v3387
        %v3389 = vpop.f32.mrf.mxu0
        %v3390 = vpop.f32.mrf.mxu0
        %v3391 = vadd.f32 0.0, %v3390
        %v3392 = vpop.f32.mrf.mxu0
        %3393 = vmatprep.mubr.bf16.mxu0 %v3318
        %3394 = vmatmul.mubr.bf16.gmra.mxu0 %v3217
        %v3395 = vpop.f32.mrf.mxu0
        %v3396 = vadd.f32 0.0, %v3395
        %v3397 = vpop.f32.mrf.mxu0
        %v3398 = vpop.f32.mrf.mxu0
        %v3399 = vadd.f32 0.0, %v3398
        %v3400 = vpop.f32.mrf.mxu0
        %3401 = vmatprep.mubr.bf16.mxu0 %v3321
        %3402 = vmatmul.mubr.bf16.gmra.mxu0 %v3219
        %v3403 = vpop.f32.mrf.mxu0
        %v3404 = vadd.f32 0.0, %v3403
        %v3405 = vpop.f32.mrf.mxu0
        %v3406 = vpop.f32.mrf.mxu0
        %v3407 = vadd.f32 0.0, %v3406
        %v3408 = vpop.f32.mrf.mxu0
        %3409 = vmatprep.mubr.bf16.mxu0 %v3324
        %3410 = vmatmul.mubr.bf16.gmra.mxu0 %v3221
        %v3411 = vpop.f32.mrf.mxu0
        %v3412 = vadd.f32 0.0, %v3411
        %v3413 = vpop.f32.mrf.mxu0
        %v3414 = vpop.f32.mrf.mxu0
        %v3415 = vadd.f32 0.0, %v3414
        %v3416 = vpop.f32.mrf.mxu0
        %3417 = vmatprep.mubr.bf16.mxu0 %v3327
        %3418 = vmatmul.mubr.bf16.gmra.mxu0 %v3223
        %v3419 = vpop.f32.mrf.mxu0
        %v3420 = vadd.f32 0.0, %v3419
        %v3421 = vpop.f32.mrf.mxu0
        %v3422 = vpop.f32.mrf.mxu0
        %v3423 = vadd.f32 0.0, %v3422
        %v3424 = vpop.f32.mrf.mxu0
        %3425 = vdwg.mxu0
        %v3426 = vld [vmem:[#allocation5] sm:$0xff]
        %v3427 = vld [vmem:[#allocation5 + $0x8] sm:$0xff]
        %v3428 = vld [vmem:[#allocation5 + $0x10] sm:$0xff]
        %v3429 = vld [vmem:[#allocation5 + $0x18] sm:$0xff]
        %v3430 = vld [vmem:[#allocation5 + $0x20] sm:$0xff]
        %v3431 = vld [vmem:[#allocation5 + $0x28] sm:$0xff]
        %v3432 = vld [vmem:[#allocation5 + $0x30] sm:$0xff]
        %v3433 = vld [vmem:[#allocation5 + $0x38] sm:$0xff]
        %v3434 = vld [vmem:[#allocation5 + $0x40] sm:$0xff]
        %v3435 = vld [vmem:[#allocation5 + $0x48] sm:$0xff]
        %v3436 = vld [vmem:[#allocation5 + $0x50] sm:$0xff]
        %v3437 = vld [vmem:[#allocation5 + $0x58] sm:$0xff]
        %v3438 = vld [vmem:[#allocation5 + $0x60] sm:$0xff]
        %v3439 = vld [vmem:[#allocation5 + $0x68] sm:$0xff]
        %v3440 = vld [vmem:[#allocation5 + $0x70] sm:$0xff]
        %v3441 = vld [vmem:[#allocation5 + $0x78] sm:$0xff]
        %v3442 = vadd.f32 %v3426, %v3364
        %v3443 = vadd.f32 %v3427, %v3367
        %v3444 = vadd.f32 %v3428, %v3372
        %v3445 = vadd.f32 %v3429, %v3375
        %v3446 = vadd.f32 %v3430, %v3380
        %v3447 = vadd.f32 %v3431, %v3383
        %v3448 = vadd.f32 %v3432, %v3388
        %v3449 = vadd.f32 %v3433, %v3391
        %v3450 = vadd.f32 %v3434, %v3396
        %v3451 = vadd.f32 %v3435, %v3399
        %v3452 = vadd.f32 %v3436, %v3404
        %v3453 = vadd.f32 %v3437, %v3407
        %v3454 = vadd.f32 %v3438, %v3412
        %v3455 = vadd.f32 %v3439, %v3415
        %v3456 = vadd.f32 %v3440, %v3420
        %v3457 = vadd.f32 %v3441, %v3423
        %3458 = vst.msk [vmem:[#allocation5] sm:$0xff] %vm886, %v3442
        %3459 = vst.msk [vmem:[#allocation5 + $0x8] sm:$0xff] %vm886, %v3443
        %3460 = vst.msk [vmem:[#allocation5 + $0x10] sm:$0xff] %vm886, %v3444
        %3461 = vst.msk [vmem:[#allocation5 + $0x18] sm:$0xff] %vm886, %v3445
        %3462 = vst.msk [vmem:[#allocation5 + $0x20] sm:$0xff] %vm886, %v3446
        %3463 = vst.msk [vmem:[#allocation5 + $0x28] sm:$0xff] %vm886, %v3447
        %3464 = vst.msk [vmem:[#allocation5 + $0x30] sm:$0xff] %vm886, %v3448
        %3465 = vst.msk [vmem:[#allocation5 + $0x38] sm:$0xff] %vm886, %v3449
        %3466 = vst.msk [vmem:[#allocation5 + $0x40] sm:$0xff] %vm886, %v3450
        %3467 = vst.msk [vmem:[#allocation5 + $0x48] sm:$0xff] %vm886, %v3451
        %3468 = vst.msk [vmem:[#allocation5 + $0x50] sm:$0xff] %vm886, %v3452
        %3469 = vst.msk [vmem:[#allocation5 + $0x58] sm:$0xff] %vm886, %v3453
        %3470 = vst.msk [vmem:[#allocation5 + $0x60] sm:$0xff] %vm886, %v3454
        %3471 = vst.msk [vmem:[#allocation5 + $0x68] sm:$0xff] %vm886, %v3455
        %3472 = vst.msk [vmem:[#allocation5 + $0x70] sm:$0xff] %vm886, %v3456
        %3473 = vst.msk [vmem:[#allocation5 + $0x78] sm:$0xff] %vm886, %v3457
        %s3474 = scalar_lea.vmem [#allocation4], 16
        %v3475 = vld [vmem:[%s3474] sm:$0xff]
        %v3476 = vld [vmem:[%s3474 + $0x8] sm:$0xff]
        %v3477 = vld [vmem:[%s3474 + $0x10] sm:$0xff]
        %v3478 = vld [vmem:[%s3474 + $0x18] sm:$0xff]
        %v3479 = vld [vmem:[%s3474 + $0x20] sm:$0xff]
        %v3480 = vld [vmem:[%s3474 + $0x28] sm:$0xff]
        %v3481 = vld [vmem:[%s3474 + $0x30] sm:$0xff]
        %v3482 = vld [vmem:[%s3474 + $0x38] sm:$0xff]
        %v3483 = vld [vmem:[%s3474 + $0x50] sm:$0xff]
        %v3484 = vld [vmem:[%s3474 + $0x58] sm:$0xff]
        %v3485 = vld [vmem:[%s3474 + $0x60] sm:$0xff]
        %v3486 = vld [vmem:[%s3474 + $0x68] sm:$0xff]
        %v3487 = vld [vmem:[%s3474 + $0x70] sm:$0xff]
        %v3488 = vld [vmem:[%s3474 + $0x78] sm:$0xff]
        %v3489 = vld [vmem:[%s3474 + $0x80] sm:$0xff]
        %v3490 = vld [vmem:[%s3474 + $0x88] sm:$0xff]
        %s3491 = sadd.s32 %s2807, 2
        %s3492 = smul.u32 %s3491, 24
        %s3493 = smul.addr %s3492, 4
        %s3494 = scalar_lea.vmem %s267, %s3493
        %v3495 = vld [vmem:[%s3494] sm:$0xf]
        %v3496 = vld [vmem:[%s3494 + $0x4] sm:$0xf]
        %v3497 = vld [vmem:[%s3494 + $0x8] sm:$0xf]
        %v3498 = vld [vmem:[%s3494 + $0xc] sm:$0xf]
        %v3499 = vld [vmem:[%s3494 + $0x10] sm:$0xf]
        %v3500 = vld [vmem:[%s3494 + $0x14] sm:$0xf]
        %v3501 = vld [vmem:[%s3494 + $0x18] sm:$0xf]
        %v3502 = vld [vmem:[%s3494 + $0x1c] sm:$0xf]
        %v3503 = vld [vmem:[%s3494 + $0x20] sm:$0xf]
        %v3504 = vld [vmem:[%s3494 + $0x24] sm:$0xf]
        %v3505 = vld [vmem:[%s3494 + $0x28] sm:$0xf]
        %v3506 = vld [vmem:[%s3494 + $0x2c] sm:$0xf]
        %v3507 = vld [vmem:[%s3494 + $0x30] sm:$0xf]
        %v3508 = vld [vmem:[%s3494 + $0x34] sm:$0xf]
        %v3509 = vld [vmem:[%s3494 + $0x38] sm:$0xf]
        %v3510 = vld [vmem:[%s3494 + $0x3c] sm:$0xf]
        %v3511 = vld [vmem:[%s3494 + $0x40] sm:$0xf]
        %v3512 = vld [vmem:[%s3494 + $0x44] sm:$0xf]
        %v3513 = vld [vmem:[%s3494 + $0x48] sm:$0xf]
        %v3514 = vld [vmem:[%s3494 + $0x4c] sm:$0xf]
        %v3515 = vld [vmem:[%s3494 + $0x50] sm:$0xf]
        %v3516 = vld [vmem:[%s3494 + $0x54] sm:$0xf]
        %v3517 = vld [vmem:[%s3494 + $0x58] sm:$0xf]
        %v3518 = vld [vmem:[%s3494 + $0x5c] sm:$0xf]
        %v3535 = vunpack.c.l.b16 %v3475
        %v3536 = vunpack.c.h.b16 %v3475
        %v3537 = vunpack.c.l.b16 %v3476
        %v3538 = vunpack.c.h.b16 %v3476
        %v3539 = vunpack.c.l.b16 %v3477
        %v3540 = vunpack.c.h.b16 %v3477
        %v3541 = vunpack.c.l.b16 %v3478
        %v3542 = vunpack.c.h.b16 %v3478
        %v3543 = vunpack.c.l.b16 %v3479
        %v3544 = vunpack.c.h.b16 %v3479
        %v3545 = vunpack.c.l.b16 %v3480
        %v3546 = vunpack.c.h.b16 %v3480
        %v3547 = vunpack.c.l.b16 %v3481
        %v3548 = vunpack.c.h.b16 %v3481
        %v3549 = vunpack.c.l.b16 %v3482
        %v3550 = vunpack.c.h.b16 %v3482
        %v3551 = vunpack.c.l.b16 %v3483
        %v3552 = vunpack.c.h.b16 %v3483
        %v3553 = vunpack.c.l.b16 %v3484
        %v3554 = vunpack.c.h.b16 %v3484
        %v3555 = vunpack.c.l.b16 %v3485
        %v3556 = vunpack.c.h.b16 %v3485
        %v3557 = vunpack.c.l.b16 %v3486
        %v3558 = vunpack.c.h.b16 %v3486
        %v3559 = vunpack.c.l.b16 %v3487
        %v3560 = vunpack.c.h.b16 %v3487
        %v3561 = vunpack.c.l.b16 %v3488
        %v3562 = vunpack.c.h.b16 %v3488
        %v3563 = vunpack.c.l.b16 %v3489
        %v3564 = vunpack.c.h.b16 %v3489
        %v3565 = vunpack.c.l.b16 %v3490
        %v3566 = vunpack.c.h.b16 %v3490
        %v3567 = vpack.c.b16 %v3537, %v3535
        %v3568 = vpack.c.b16 %v3538, %v3536
        %v3569 = vpack.c.b16 %v3541, %v3539
        %v3570 = vpack.c.b16 %v3542, %v3540
        %v3571 = vpack.c.b16 %v3545, %v3543
        %v3572 = vpack.c.b16 %v3546, %v3544
        %v3573 = vpack.c.b16 %v3549, %v3547
        %v3574 = vpack.c.b16 %v3550, %v3548
        %v3575 = vpack.c.b16 %v3553, %v3551
        %v3576 = vpack.c.b16 %v3554, %v3552
        %v3577 = vpack.c.b16 %v3557, %v3555
        %v3578 = vpack.c.b16 %v3558, %v3556
        %v3579 = vpack.c.b16 %v3561, %v3559
        %v3580 = vpack.c.b16 %v3562, %v3560
        %v3581 = vpack.c.b16 %v3565, %v3563
        %v3582 = vpack.c.b16 %v3566, %v3564
        %v3615 = vunpack.c.l.b16 %v3495
        %v3616 = vunpack.c.l.b16 %v3496
        %v3617 = vunpack.c.l.b16 %v3497
        %v3618 = vunpack.c.l.b16 %v3498
        %v3619 = vunpack.c.l.b16 %v3499
        %v3620 = vunpack.c.l.b16 %v3500
        %v3621 = vunpack.c.l.b16 %v3501
        %v3622 = vunpack.c.l.b16 %v3502
        %v3623 = vunpack.c.l.b16 %v3503
        %v3624 = vunpack.c.l.b16 %v3504
        %v3625 = vunpack.c.l.b16 %v3505
        %v3626 = vunpack.c.l.b16 %v3506
        %v3627 = vunpack.c.l.b16 %v3507
        %v3628 = vunpack.c.l.b16 %v3508
        %v3629 = vunpack.c.l.b16 %v3509
        %v3630 = vunpack.c.l.b16 %v3510
        %v3631 = vunpack.c.l.b16 %v3511
        %v3632 = vunpack.c.l.b16 %v3512
        %v3633 = vunpack.c.l.b16 %v3513
        %v3634 = vunpack.c.l.b16 %v3514
        %v3635 = vunpack.c.l.b16 %v3515
        %v3636 = vunpack.c.l.b16 %v3516
        %v3637 = vunpack.c.l.b16 %v3517
        %v3638 = vunpack.c.l.b16 %v3518
        %v3639 = vpack.c.b16 %v3616, %v3615
        %v3640 = vpack.c.b16 %v3618, %v3617
        %v3641 = vpack.c.b16 %v3620, %v3619
        %v3642 = vpack.c.b16 %v3622, %v3621
        %v3643 = vpack.c.b16 %v3624, %v3623
        %v3644 = vpack.c.b16 %v3626, %v3625
        %v3645 = vpack.c.b16 %v3628, %v3627
        %v3646 = vpack.c.b16 %v3630, %v3629
        %v3647 = vpack.c.b16 %v3632, %v3631
        %v3648 = vpack.c.b16 %v3634, %v3633
        %v3649 = vpack.c.b16 %v3636, %v3635
        %v3650 = vpack.c.b16 %v3638, %v3637
        %v3664 = vsel %vm886, %v3568, 0
        %v3667 = vsel %vm886, %v3570, 0
        %v3670 = vsel %vm886, %v3572, 0
        %v3673 = vsel %vm886, %v3574, 0
        %v3676 = vsel %vm886, %v3576, 0
        %v3679 = vsel %vm886, %v3578, 0
        %v3682 = vsel %vm886, %v3580, 0
        %v3685 = vsel %vm886, %v3582, 0
        %3687 = vmatprep.subr.bf16.mxu0 0
        %3688 = vmatpush1.bf16.msra.mxu0 %v3646
        %3689 = vmatprep.subr.bf16.mxu0 0
        %3690 = vmatpush1.bf16.msra.mxu0 %v3645
        %3691 = vmatprep.subr.bf16.mxu0 0
        %3692 = vmatpush1.bf16.msra.mxu0 %v3644
        %3693 = vmatprep.subr.bf16.mxu0 0
        %3694 = vmatpush1.bf16.msra.mxu0 %v3643
        %3695 = vmatprep.subr.bf16.mxu0 0
        %3696 = vmatpush1.bf16.msra.mxu0 %v3642
        %3697 = vmatprep.subr.bf16.mxu0 0
        %3698 = vmatpush1.bf16.msra.mxu0 %v3641
        %3699 = vmatprep.subr.bf16.mxu0 0
        %3700 = vmatpush1.bf16.msra.mxu0 %v3640
        %3701 = vmatprep.subr.bf16.mxu0 0
        %3702 = vmatpush1.bf16.msra.mxu0 %v3639
        %3703 = vmatprep.subr.bf16.mxu0 0
        %3704 = vmatpush2.bf16.msra.mxu0 0
        %3705 = vmatprep.subr.bf16.mxu0 0
        %3706 = vmatpush2.bf16.msra.mxu0 0
        %3707 = vmatprep.subr.bf16.mxu0 0
        %3708 = vmatpush2.bf16.msra.mxu0 0
        %3709 = vmatprep.subr.bf16.mxu0 0
        %3710 = vmatpush2.bf16.msra.mxu0 0
        %3711 = vmatprep.subr.bf16.mxu0 0
        %3712 = vmatpush2.bf16.msra.mxu0 %v3650
        %3713 = vmatprep.subr.bf16.mxu0 0
        %3714 = vmatpush2.bf16.msra.mxu0 %v3649
        %3715 = vmatprep.subr.bf16.mxu0 0
        %3716 = vmatpush2.bf16.msra.mxu0 %v3648
        %3717 = vmatprep.subr.bf16.mxu0 0
        %3718 = vmatpush2.bf16.msra.mxu0 %v3647
        %3719 = vmatprep.mubr.bf16.mxu0 %v3664
        %3720 = vmatmul.mubr.bf16.gmra.mxu0 %v3567
        %v3721 = vpop.f32.mrf.mxu0
        %v3722 = vadd.f32 0.0, %v3721
        %v3723 = vpop.f32.mrf.mxu0
        %v3724 = vpop.f32.mrf.mxu0
        %v3725 = vadd.f32 0.0, %v3724
        %v3726 = vpop.f32.mrf.mxu0
        %3727 = vmatprep.mubr.bf16.mxu0 %v3667
        %3728 = vmatmul.mubr.bf16.gmra.mxu0 %v3569
        %v3729 = vpop.f32.mrf.mxu0
        %v3730 = vadd.f32 0.0, %v3729
        %v3731 = vpop.f32.mrf.mxu0
        %v3732 = vpop.f32.mrf.mxu0
        %v3733 = vadd.f32 0.0, %v3732
        %v3734 = vpop.f32.mrf.mxu0
        %3735 = vmatprep.mubr.bf16.mxu0 %v3670
        %3736 = vmatmul.mubr.bf16.gmra.mxu0 %v3571
        %v3737 = vpop.f32.mrf.mxu0
        %v3738 = vadd.f32 0.0, %v3737
        %v3739 = vpop.f32.mrf.mxu0
        %v3740 = vpop.f32.mrf.mxu0
        %v3741 = vadd.f32 0.0, %v3740
        %v3742 = vpop.f32.mrf.mxu0
        %3743 = vmatprep.mubr.bf16.mxu0 %v3673
        %3744 = vmatmul.mubr.bf16.gmra.mxu0 %v3573
        %v3745 = vpop.f32.mrf.mxu0
        %v3746 = vadd.f32 0.0, %v3745
        %v3747 = vpop.f32.mrf.mxu0
        %v3748 = vpop.f32.mrf.mxu0
        %v3749 = vadd.f32 0.0, %v3748
        %v3750 = vpop.f32.mrf.mxu0
        %3751 = vmatprep.mubr.bf16.mxu0 %v3676
        %3752 = vmatmul.mubr.bf16.gmra.mxu0 %v3575
        %v3753 = vpop.f32.mrf.mxu0
        %v3754 = vadd.f32 0.0, %v3753
        %v3755 = vpop.f32.mrf.mxu0
        %v3756 = vpop.f32.mrf.mxu0
        %v3757 = vadd.f32 0.0, %v3756
        %v3758 = vpop.f32.mrf.mxu0
        %3759 = vmatprep.mubr.bf16.mxu0 %v3679
        %3760 = vmatmul.mubr.bf16.gmra.mxu0 %v3577
        %v3761 = vpop.f32.mrf.mxu0
        %v3762 = vadd.f32 0.0, %v3761
        %v3763 = vpop.f32.mrf.mxu0
        %v3764 = vpop.f32.mrf.mxu0
        %v3765 = vadd.f32 0.0, %v3764
        %v3766 = vpop.f32.mrf.mxu0
        %3767 = vmatprep.mubr.bf16.mxu0 %v3682
        %3768 = vmatmul.mubr.bf16.gmra.mxu0 %v3579
        %v3769 = vpop.f32.mrf.mxu0
        %v3770 = vadd.f32 0.0, %v3769
        %v3771 = vpop.f32.mrf.mxu0
        %v3772 = vpop.f32.mrf.mxu0
        %v3773 = vadd.f32 0.0, %v3772
        %v3774 = vpop.f32.mrf.mxu0
        %3775 = vmatprep.mubr.bf16.mxu0 %v3685
        %3776 = vmatmul.mubr.bf16.gmra.mxu0 %v3581
        %v3777 = vpop.f32.mrf.mxu0
        %v3778 = vadd.f32 0.0, %v3777
        %v3779 = vpop.f32.mrf.mxu0
        %v3780 = vpop.f32.mrf.mxu0
        %v3781 = vadd.f32 0.0, %v3780
        %v3782 = vpop.f32.mrf.mxu0
        %3783 = vdwg.mxu0
        %v3784 = vld [vmem:[#allocation5] sm:$0xff]
        %v3785 = vld [vmem:[#allocation5 + $0x8] sm:$0xff]
        %v3786 = vld [vmem:[#allocation5 + $0x10] sm:$0xff]
        %v3787 = vld [vmem:[#allocation5 + $0x18] sm:$0xff]
        %v3788 = vld [vmem:[#allocation5 + $0x20] sm:$0xff]
        %v3789 = vld [vmem:[#allocation5 + $0x28] sm:$0xff]
        %v3790 = vld [vmem:[#allocation5 + $0x30] sm:$0xff]
        %v3791 = vld [vmem:[#allocation5 + $0x38] sm:$0xff]
        %v3792 = vld [vmem:[#allocation5 + $0x40] sm:$0xff]
        %v3793 = vld [vmem:[#allocation5 + $0x48] sm:$0xff]
        %v3794 = vld [vmem:[#allocation5 + $0x50] sm:$0xff]
        %v3795 = vld [vmem:[#allocation5 + $0x58] sm:$0xff]
        %v3796 = vld [vmem:[#allocation5 + $0x60] sm:$0xff]
        %v3797 = vld [vmem:[#allocation5 + $0x68] sm:$0xff]
        %v3798 = vld [vmem:[#allocation5 + $0x70] sm:$0xff]
        %v3799 = vld [vmem:[#allocation5 + $0x78] sm:$0xff]
        %v3800 = vadd.f32 %v3784, %v3722
        %v3801 = vadd.f32 %v3785, %v3725
        %v3802 = vadd.f32 %v3786, %v3730
        %v3803 = vadd.f32 %v3787, %v3733
        %v3804 = vadd.f32 %v3788, %v3738
        %v3805 = vadd.f32 %v3789, %v3741
        %v3806 = vadd.f32 %v3790, %v3746
        %v3807 = vadd.f32 %v3791, %v3749
        %v3808 = vadd.f32 %v3792, %v3754
        %v3809 = vadd.f32 %v3793, %v3757
        %v3810 = vadd.f32 %v3794, %v3762
        %v3811 = vadd.f32 %v3795, %v3765
        %v3812 = vadd.f32 %v3796, %v3770
        %v3813 = vadd.f32 %v3797, %v3773
        %v3814 = vadd.f32 %v3798, %v3778
        %v3815 = vadd.f32 %v3799, %v3781
        %3816 = vst.msk [vmem:[#allocation5] sm:$0xff] %vm886, %v3800
        %3817 = vst.msk [vmem:[#allocation5 + $0x8] sm:$0xff] %vm886, %v3801
        %3818 = vst.msk [vmem:[#allocation5 + $0x10] sm:$0xff] %vm886, %v3802
        %3819 = vst.msk [vmem:[#allocation5 + $0x18] sm:$0xff] %vm886, %v3803
        %3820 = vst.msk [vmem:[#allocation5 + $0x20] sm:$0xff] %vm886, %v3804
        %3821 = vst.msk [vmem:[#allocation5 + $0x28] sm:$0xff] %vm886, %v3805
        %3822 = vst.msk [vmem:[#allocation5 + $0x30] sm:$0xff] %vm886, %v3806
        %3823 = vst.msk [vmem:[#allocation5 + $0x38] sm:$0xff] %vm886, %v3807
        %3824 = vst.msk [vmem:[#allocation5 + $0x40] sm:$0xff] %vm886, %v3808
        %3825 = vst.msk [vmem:[#allocation5 + $0x48] sm:$0xff] %vm886, %v3809
        %3826 = vst.msk [vmem:[#allocation5 + $0x50] sm:$0xff] %vm886, %v3810
        %3827 = vst.msk [vmem:[#allocation5 + $0x58] sm:$0xff] %vm886, %v3811
        %3828 = vst.msk [vmem:[#allocation5 + $0x60] sm:$0xff] %vm886, %v3812
        %3829 = vst.msk [vmem:[#allocation5 + $0x68] sm:$0xff] %vm886, %v3813
        %3830 = vst.msk [vmem:[#allocation5 + $0x70] sm:$0xff] %vm886, %v3814
        %3831 = vst.msk [vmem:[#allocation5 + $0x78] sm:$0xff] %vm886, %v3815
        %v3832 = vld [vmem:[#allocation5] sm:$0xff]
        %v3833 = vld [vmem:[#allocation5 + $0x8] sm:$0xff]
        %v3834 = vld [vmem:[#allocation5 + $0x10] sm:$0xff]
        %v3835 = vld [vmem:[#allocation5 + $0x18] sm:$0xff]
        %v3836 = vld [vmem:[#allocation5 + $0x20] sm:$0xff]
        %v3837 = vld [vmem:[#allocation5 + $0x28] sm:$0xff]
        %v3838 = vld [vmem:[#allocation5 + $0x30] sm:$0xff]
        %v3839 = vld [vmem:[#allocation5 + $0x38] sm:$0xff]
        %v3840 = vld [vmem:[#allocation5 + $0x40] sm:$0xff]
        %v3841 = vld [vmem:[#allocation5 + $0x48] sm:$0xff]
        %v3842 = vld [vmem:[#allocation5 + $0x50] sm:$0xff]
        %v3843 = vld [vmem:[#allocation5 + $0x58] sm:$0xff]
        %v3844 = vld [vmem:[#allocation5 + $0x60] sm:$0xff]
        %v3845 = vld [vmem:[#allocation5 + $0x68] sm:$0xff]
        %v3846 = vld [vmem:[#allocation5 + $0x70] sm:$0xff]
        %v3847 = vld [vmem:[#allocation5 + $0x78] sm:$0xff]
        %s3848 = sadd.s32 %s2139, 1
        %s3849 = scalar_lea.vmem %s276, %s3848
        %v3850 = vld [vmem:[%s3849] sm:$0x1]
        %v3852 = vlaneseq
        %v3853 = vshrl.u32 %v3852, 7
        %v3854 = vsub.s32 0, %v3853
        %v3855 = vrot.slane %v3850, %v3854
        %v3857 = vadd.f32 %v3832, %v3855
        %v3858 = vadd.f32 %v3833, %v3855
        %v3859 = vadd.f32 %v3834, %v3855
        %v3860 = vadd.f32 %v3835, %v3855
        %v3861 = vadd.f32 %v3836, %v3855
        %v3862 = vadd.f32 %v3837, %v3855
        %v3863 = vadd.f32 %v3838, %v3855
        %v3864 = vadd.f32 %v3839, %v3855
        %v3865 = vadd.f32 %v3840, %v3855
        %v3866 = vadd.f32 %v3841, %v3855
        %v3867 = vadd.f32 %v3842, %v3855
        %v3868 = vadd.f32 %v3843, %v3855
        %v3869 = vadd.f32 %v3844, %v3855
        %v3870 = vadd.f32 %v3845, %v3855
        %v3871 = vadd.f32 %v3846, %v3855
        %v3872 = vadd.f32 %v3847, %v3855
        %v3873 = vmax.f32 %v3857, 0.0
        %v3874 = vmax.f32 %v3858, 0.0
        %v3875 = vmax.f32 %v3859, 0.0
        %v3876 = vmax.f32 %v3860, 0.0
        %v3877 = vmax.f32 %v3861, 0.0
        %v3878 = vmax.f32 %v3862, 0.0
        %v3879 = vmax.f32 %v3863, 0.0
        %v3880 = vmax.f32 %v3864, 0.0
        %v3881 = vmax.f32 %v3865, 0.0
        %v3882 = vmax.f32 %v3866, 0.0
        %v3883 = vmax.f32 %v3867, 0.0
        %v3884 = vmax.f32 %v3868, 0.0
        %v3885 = vmax.f32 %v3869, 0.0
        %v3886 = vmax.f32 %v3870, 0.0
        %v3887 = vmax.f32 %v3871, 0.0
        %v3888 = vmax.f32 %v3872, 0.0
        %v3889 = vpack.c.bf16 %v3873, %v3873
        %v3890 = vpack.c.bf16 %v3874, %v3874
        %v3891 = vpack.c.bf16 %v3875, %v3875
        %v3892 = vpack.c.bf16 %v3876, %v3876
        %v3893 = vpack.c.bf16 %v3877, %v3877
        %v3894 = vpack.c.bf16 %v3878, %v3878
        %v3895 = vpack.c.bf16 %v3879, %v3879
        %v3896 = vpack.c.bf16 %v3880, %v3880
        %v3897 = vpack.c.bf16 %v3881, %v3881
        %v3898 = vpack.c.bf16 %v3882, %v3882
        %v3899 = vpack.c.bf16 %v3883, %v3883
        %v3900 = vpack.c.bf16 %v3884, %v3884
        %v3901 = vpack.c.bf16 %v3885, %v3885
        %v3902 = vpack.c.bf16 %v3886, %v3886
        %v3903 = vpack.c.bf16 %v3887, %v3887
        %v3904 = vpack.c.bf16 %v3888, %v3888
        %v3921 = vunpack.c.l.b16 %v3889
        %v3922 = vunpack.c.l.b16 %v3890
        %v3923 = vunpack.c.l.b16 %v3891
        %v3924 = vunpack.c.l.b16 %v3892
        %v3925 = vunpack.c.l.b16 %v3893
        %v3926 = vunpack.c.l.b16 %v3894
        %v3927 = vunpack.c.l.b16 %v3895
        %v3928 = vunpack.c.l.b16 %v3896
        %v3929 = vunpack.c.l.b16 %v3897
        %v3930 = vunpack.c.l.b16 %v3898
        %v3931 = vunpack.c.l.b16 %v3899
        %v3932 = vunpack.c.l.b16 %v3900
        %v3933 = vunpack.c.l.b16 %v3901
        %v3934 = vunpack.c.l.b16 %v3902
        %v3935 = vunpack.c.l.b16 %v3903
        %v3936 = vunpack.c.l.b16 %v3904
        %v3937 = vpack.c.b16 %v3921, %v3921
        %v3938 = vpack.c.b16 %v3922, %v3922
        %v3939 = vpack.c.b16 %v3923, %v3923
        %v3940 = vpack.c.b16 %v3924, %v3924
        %v3941 = vpack.c.b16 %v3925, %v3925
        %v3942 = vpack.c.b16 %v3926, %v3926
        %v3943 = vpack.c.b16 %v3927, %v3927
        %v3944 = vpack.c.b16 %v3928, %v3928
        %v3945 = vpack.c.b16 %v3929, %v3929
        %v3946 = vpack.c.b16 %v3930, %v3930
        %v3947 = vpack.c.b16 %v3931, %v3931
        %v3948 = vpack.c.b16 %v3932, %v3932
        %v3949 = vpack.c.b16 %v3933, %v3933
        %v3950 = vpack.c.b16 %v3934, %v3934
        %v3951 = vpack.c.b16 %v3935, %v3935
        %v3952 = vpack.c.b16 %v3936, %v3936
        %v3954 = vshrl.u32 %v3937, 16
        %v3956 = vrot.slane %v3954, 7
        %v3957 = vshll.u32 %v3937, 16
        %v3959 = vor.u32 %v3956, %v3957
        %v3960 = vrot.slane %v3956, 4
        %v3962 = vshrl.u32 %v3938, 16
        %v3964 = vrot.slane %v3962, 7
        %v3965 = vshll.u32 %v3938, 16
        %v3967 = vor.u32 %v3964, %v3965
        %v3968 = vrot.slane %v3964, 4
        %v3970 = vshrl.u32 %v3939, 16
        %v3972 = vrot.slane %v3970, 7
        %v3973 = vshll.u32 %v3939, 16
        %v3975 = vor.u32 %v3972, %v3973
        %v3976 = vrot.slane %v3972, 4
        %v3978 = vshrl.u32 %v3940, 16
        %v3980 = vrot.slane %v3978, 7
        %v3981 = vshll.u32 %v3940, 16
        %v3983 = vor.u32 %v3980, %v3981
        %v3984 = vrot.slane %v3980, 4
        %v3986 = vshrl.u32 %v3941, 16
        %v3988 = vrot.slane %v3986, 7
        %v3989 = vshll.u32 %v3941, 16
        %v3991 = vor.u32 %v3988, %v3989
        %v3992 = vrot.slane %v3988, 4
        %v3994 = vshrl.u32 %v3942, 16
        %v3996 = vrot.slane %v3994, 7
        %v3997 = vshll.u32 %v3942, 16
        %v3999 = vor.u32 %v3996, %v3997
        %v4000 = vrot.slane %v3996, 4
        %v4002 = vshrl.u32 %v3943, 16
        %v4004 = vrot.slane %v4002, 7
        %v4005 = vshll.u32 %v3943, 16
        %v4007 = vor.u32 %v4004, %v4005
        %v4008 = vrot.slane %v4004, 4
        %v4010 = vshrl.u32 %v3944, 16
        %v4012 = vrot.slane %v4010, 7
        %v4013 = vshll.u32 %v3944, 16
        %v4015 = vor.u32 %v4012, %v4013
        %v4016 = vrot.slane %v4012, 4
        %v4018 = vshrl.u32 %v3945, 16
        %v4020 = vrot.slane %v4018, 7
        %v4021 = vshll.u32 %v3945, 16
        %v4023 = vor.u32 %v4020, %v4021
        %v4024 = vrot.slane %v4020, 4
        %v4026 = vshrl.u32 %v3946, 16
        %v4028 = vrot.slane %v4026, 7
        %v4029 = vshll.u32 %v3946, 16
        %v4031 = vor.u32 %v4028, %v4029
        %v4032 = vrot.slane %v4028, 4
        %v4034 = vshrl.u32 %v3947, 16
        %v4036 = vrot.slane %v4034, 7
        %v4037 = vshll.u32 %v3947, 16
        %v4039 = vor.u32 %v4036, %v4037
        %v4040 = vrot.slane %v4036, 4
        %v4042 = vshrl.u32 %v3948, 16
        %v4044 = vrot.slane %v4042, 7
        %v4045 = vshll.u32 %v3948, 16
        %v4047 = vor.u32 %v4044, %v4045
        %v4048 = vrot.slane %v4044, 4
        %v4050 = vshrl.u32 %v3949, 16
        %v4052 = vrot.slane %v4050, 7
        %v4053 = vshll.u32 %v3949, 16
        %v4055 = vor.u32 %v4052, %v4053
        %v4056 = vrot.slane %v4052, 4
        %v4058 = vshrl.u32 %v3950, 16
        %v4060 = vrot.slane %v4058, 7
        %v4061 = vshll.u32 %v3950, 16
        %v4063 = vor.u32 %v4060, %v4061
        %v4064 = vrot.slane %v4060, 4
        %v4066 = vshrl.u32 %v3951, 16
        %v4068 = vrot.slane %v4066, 7
        %v4069 = vshll.u32 %v3951, 16
        %v4071 = vor.u32 %v4068, %v4069
        %v4072 = vrot.slane %v4068, 4
        %v4074 = vshrl.u32 %v3952, 16
        %v4076 = vrot.slane %v4074, 7
        %v4077 = vshll.u32 %v3952, 16
        %v4079 = vor.u32 %v4076, %v4077
        %v4080 = vrot.slane %v4076, 4
        %v4113 = vld [vmem:[%s2039] sm:$0xf]
        %v4114 = vsel %vm2041, %v3959, %v4113
        %4115 = vst [vmem:[%s2039] sm:$0xf] %v4114
        %v4116 = vld [vmem:[%s2039 + $0x4] sm:$0x1]
        %v4117 = vsel %vm348, %v3960, %v4116
        %4118 = vst [vmem:[%s2039 + $0x4] sm:$0x1] %v4117
        %v4119 = vld [vmem:[%s2039 + $0x8] sm:$0xf]
        %v4120 = vsel %vm2041, %v3967, %v4119
        %4121 = vst [vmem:[%s2039 + $0x8] sm:$0xf] %v4120
        %v4122 = vld [vmem:[%s2039 + $0xc] sm:$0x1]
        %v4123 = vsel %vm348, %v3968, %v4122
        %4124 = vst [vmem:[%s2039 + $0xc] sm:$0x1] %v4123
        %v4125 = vld [vmem:[%s2039 + $0x10] sm:$0xf]
        %v4126 = vsel %vm2041, %v3975, %v4125
        %4127 = vst [vmem:[%s2039 + $0x10] sm:$0xf] %v4126
        %v4128 = vld [vmem:[%s2039 + $0x14] sm:$0x1]
        %v4129 = vsel %vm348, %v3976, %v4128
        %4130 = vst [vmem:[%s2039 + $0x14] sm:$0x1] %v4129
        %v4131 = vld [vmem:[%s2039 + $0x18] sm:$0xf]
        %v4132 = vsel %vm2041, %v3983, %v4131
        %4133 = vst [vmem:[%s2039 + $0x18] sm:$0xf] %v4132
        %v4134 = vld [vmem:[%s2039 + $0x1c] sm:$0x1]
        %v4135 = vsel %vm348, %v3984, %v4134
        %4136 = vst [vmem:[%s2039 + $0x1c] sm:$0x1] %v4135
        %v4137 = vld [vmem:[%s2039 + $0x20] sm:$0xf]
        %v4138 = vsel %vm2041, %v3991, %v4137
        %4139 = vst [vmem:[%s2039 + $0x20] sm:$0xf] %v4138
        %v4140 = vld [vmem:[%s2039 + $0x24] sm:$0x1]
        %v4141 = vsel %vm348, %v3992, %v4140
        %4142 = vst [vmem:[%s2039 + $0x24] sm:$0x1] %v4141
        %v4143 = vld [vmem:[%s2039 + $0x28] sm:$0xf]
        %v4144 = vsel %vm2041, %v3999, %v4143
        %4145 = vst [vmem:[%s2039 + $0x28] sm:$0xf] %v4144
        %v4146 = vld [vmem:[%s2039 + $0x2c] sm:$0x1]
        %v4147 = vsel %vm348, %v4000, %v4146
        %4148 = vst [vmem:[%s2039 + $0x2c] sm:$0x1] %v4147
        %v4149 = vld [vmem:[%s2039 + $0x30] sm:$0xf]
        %v4150 = vsel %vm2041, %v4007, %v4149
        %4151 = vst [vmem:[%s2039 + $0x30] sm:$0xf] %v4150
        %v4152 = vld [vmem:[%s2039 + $0x34] sm:$0x1]
        %v4153 = vsel %vm348, %v4008, %v4152
        %4154 = vst [vmem:[%s2039 + $0x34] sm:$0x1] %v4153
        %v4155 = vld [vmem:[%s2039 + $0x38] sm:$0xf]
        %v4156 = vsel %vm2041, %v4015, %v4155
        %4157 = vst [vmem:[%s2039 + $0x38] sm:$0xf] %v4156
        %v4158 = vld [vmem:[%s2039 + $0x3c] sm:$0x1]
        %v4159 = vsel %vm348, %v4016, %v4158
        %4160 = vst [vmem:[%s2039 + $0x3c] sm:$0x1] %v4159
        %v4161 = vld [vmem:[%s2039 + $0x50] sm:$0xf]
        %v4162 = vsel %vm2041, %v4023, %v4161
        %4163 = vst [vmem:[%s2039 + $0x50] sm:$0xf] %v4162
        %v4164 = vld [vmem:[%s2039 + $0x54] sm:$0x1]
        %v4165 = vsel %vm348, %v4024, %v4164
        %4166 = vst [vmem:[%s2039 + $0x54] sm:$0x1] %v4165
        %v4167 = vld [vmem:[%s2039 + $0x58] sm:$0xf]
        %v4168 = vsel %vm2041, %v4031, %v4167
        %4169 = vst [vmem:[%s2039 + $0x58] sm:$0xf] %v4168
        %v4170 = vld [vmem:[%s2039 + $0x5c] sm:$0x1]
        %v4171 = vsel %vm348, %v4032, %v4170
        %4172 = vst [vmem:[%s2039 + $0x5c] sm:$0x1] %v4171
        %v4173 = vld [vmem:[%s2039 + $0x60] sm:$0xf]
        %v4174 = vsel %vm2041, %v4039, %v4173
        %4175 = vst [vmem:[%s2039 + $0x60] sm:$0xf] %v4174
        %v4176 = vld [vmem:[%s2039 + $0x64] sm:$0x1]
        %v4177 = vsel %vm348, %v4040, %v4176
        %4178 = vst [vmem:[%s2039 + $0x64] sm:$0x1] %v4177
        %v4179 = vld [vmem:[%s2039 + $0x68] sm:$0xf]
        %v4180 = vsel %vm2041, %v4047, %v4179
        %4181 = vst [vmem:[%s2039 + $0x68] sm:$0xf] %v4180
        %v4182 = vld [vmem:[%s2039 + $0x6c] sm:$0x1]
        %v4183 = vsel %vm348, %v4048, %v4182
        %4184 = vst [vmem:[%s2039 + $0x6c] sm:$0x1] %v4183
        %v4185 = vld [vmem:[%s2039 + $0x70] sm:$0xf]
        %v4186 = vsel %vm2041, %v4055, %v4185
        %4187 = vst [vmem:[%s2039 + $0x70] sm:$0xf] %v4186
        %v4188 = vld [vmem:[%s2039 + $0x74] sm:$0x1]
        %v4189 = vsel %vm348, %v4056, %v4188
        %4190 = vst [vmem:[%s2039 + $0x74] sm:$0x1] %v4189
        %v4191 = vld [vmem:[%s2039 + $0x78] sm:$0xf]
        %v4192 = vsel %vm2041, %v4063, %v4191
        %4193 = vst [vmem:[%s2039 + $0x78] sm:$0xf] %v4192
        %v4194 = vld [vmem:[%s2039 + $0x7c] sm:$0x1]
        %v4195 = vsel %vm348, %v4064, %v4194
        %4196 = vst [vmem:[%s2039 + $0x7c] sm:$0x1] %v4195
        %v4197 = vld [vmem:[%s2039 + $0x80] sm:$0xf]
        %v4198 = vsel %vm2041, %v4071, %v4197
        %4199 = vst [vmem:[%s2039 + $0x80] sm:$0xf] %v4198
        %v4200 = vld [vmem:[%s2039 + $0x84] sm:$0x1]
        %v4201 = vsel %vm348, %v4072, %v4200
        %4202 = vst [vmem:[%s2039 + $0x84] sm:$0x1] %v4201
        %v4203 = vld [vmem:[%s2039 + $0x88] sm:$0xf]
        %v4204 = vsel %vm2041, %v4079, %v4203
        %4205 = vst [vmem:[%s2039 + $0x88] sm:$0xf] %v4204
        %v4206 = vld [vmem:[%s2039 + $0x8c] sm:$0x1]
        %v4207 = vsel %vm348, %v4080, %v4206
        %4208 = vst [vmem:[%s2039 + $0x8c] sm:$0x1] %v4207
      $region45: #{tpu_custom_call.1} parent=39 // loop_footer
        %s2143 = sadd.s32 1, %s2139
      $region46: #{tpu_custom_call.1} parent=39 // loop_footer_branch
        %2138 = sbr.rel target = $region42
      $region47: #{tpu_custom_call.1} parent=39 // loop_exit
        _
      %v4209 = vld [vmem:[#allocation3] sm:$0xf]
      %v4210 = vld [vmem:[#allocation3 + $0x8] sm:$0xf]
      %v4211 = vld [vmem:[#allocation3 + $0x10] sm:$0xf]
      %v4212 = vld [vmem:[#allocation3 + $0x18] sm:$0xf]
      %v4213 = vld [vmem:[#allocation3 + $0x20] sm:$0xf]
      %v4214 = vld [vmem:[#allocation3 + $0x28] sm:$0xf]
      %v4215 = vld [vmem:[#allocation3 + $0x30] sm:$0xf]
      %v4216 = vld [vmem:[#allocation3 + $0x38] sm:$0xf]
      %v4217 = vld [vmem:[#allocation3 + $0x40] sm:$0xf]
      %v4218 = vld [vmem:[#allocation3 + $0x48] sm:$0xf]
      %v4219 = vld [vmem:[#allocation3 + $0x50] sm:$0xf]
      %v4220 = vld [vmem:[#allocation3 + $0x58] sm:$0xf]
      %v4221 = vld [vmem:[#allocation3 + $0x60] sm:$0xf]
      %v4222 = vld [vmem:[#allocation3 + $0x68] sm:$0xf]
      %v4223 = vld [vmem:[#allocation3 + $0x70] sm:$0xf]
      %v4224 = vld [vmem:[#allocation3 + $0x78] sm:$0xf]
      %v4225 = vld [vmem:[#allocation3 + $0x80] sm:$0xf]
      %v4226 = vld [vmem:[#allocation3 + $0x88] sm:$0xf]
      %v4227 = vld [vmem:[#allocation3 + $0x90] sm:$0xf]
      %v4228 = vld [vmem:[#allocation3 + $0x98] sm:$0xf]
      %4229 = vst.msk [vmem:[#allocation4] sm:$0xf] %vm335, %v4209
      %4230 = vst.msk [vmem:[#allocation4 + $0x8] sm:$0xf] %vm335, %v4210
      %4231 = vst.msk [vmem:[#allocation4 + $0x10] sm:$0xf] %vm335, %v4211
      %4232 = vst.msk [vmem:[#allocation4 + $0x18] sm:$0xf] %vm335, %v4212
      %4233 = vst.msk [vmem:[#allocation4 + $0x20] sm:$0xf] %vm335, %v4213
      %4234 = vst.msk [vmem:[#allocation4 + $0x28] sm:$0xf] %vm335, %v4214
      %4235 = vst.msk [vmem:[#allocation4 + $0x30] sm:$0xf] %vm335, %v4215
      %4236 = vst.msk [vmem:[#allocation4 + $0x38] sm:$0xf] %vm335, %v4216
      %4237 = vst.msk [vmem:[#allocation4 + $0x40] sm:$0xf] %vm335, %v4217
      %4238 = vst.msk [vmem:[#allocation4 + $0x48] sm:$0xf] %vm335, %v4218
      %4239 = vst.msk [vmem:[#allocation4 + $0x50] sm:$0xf] %vm335, %v4219
      %4240 = vst.msk [vmem:[#allocation4 + $0x58] sm:$0xf] %vm335, %v4220
      %4241 = vst.msk [vmem:[#allocation4 + $0x60] sm:$0xf] %vm335, %v4221
      %4242 = vst.msk [vmem:[#allocation4 + $0x68] sm:$0xf] %vm335, %v4222
      %4243 = vst.msk [vmem:[#allocation4 + $0x70] sm:$0xf] %vm335, %v4223
      %4244 = vst.msk [vmem:[#allocation4 + $0x78] sm:$0xf] %vm335, %v4224
      %4245 = vst.msk [vmem:[#allocation4 + $0x80] sm:$0xf] %vm335, %v4225
      %4246 = vst.msk [vmem:[#allocation4 + $0x88] sm:$0xf] %vm335, %v4226
      %4247 = vst.msk [vmem:[#allocation4 + $0x90] sm:$0xf] %vm335, %v4227
      %4248 = vst.msk [vmem:[#allocation4 + $0x98] sm:$0xf] %vm335, %v4228
      %v4249 = vld [vmem:[#allocation3] sm:$0xf]
      %v4250 = vld [vmem:[#allocation3 + $0x4] sm:$0x1]
      %v4251 = vld [vmem:[#allocation3 + $0x8] sm:$0xf]
      %v4252 = vld [vmem:[#allocation3 + $0xc] sm:$0x1]
      %v4253 = vld [vmem:[#allocation3 + $0x10] sm:$0xf]
      %v4254 = vld [vmem:[#allocation3 + $0x14] sm:$0x1]
      %v4255 = vld [vmem:[#allocation3 + $0x18] sm:$0xf]
      %v4256 = vld [vmem:[#allocation3 + $0x1c] sm:$0x1]
      %v4257 = vld [vmem:[#allocation3 + $0x20] sm:$0xf]
      %v4258 = vld [vmem:[#allocation3 + $0x24] sm:$0x1]
      %v4259 = vld [vmem:[#allocation3 + $0x28] sm:$0xf]
      %v4260 = vld [vmem:[#allocation3 + $0x2c] sm:$0x1]
      %v4261 = vld [vmem:[#allocation3 + $0x30] sm:$0xf]
      %v4262 = vld [vmem:[#allocation3 + $0x34] sm:$0x1]
      %v4263 = vld [vmem:[#allocation3 + $0x38] sm:$0xf]
      %v4264 = vld [vmem:[#allocation3 + $0x3c] sm:$0x1]
      %v4265 = vld [vmem:[#allocation3 + $0x40] sm:$0xf]
      %v4266 = vld [vmem:[#allocation3 + $0x44] sm:$0x1]
      %v4267 = vld [vmem:[#allocation3 + $0x48] sm:$0xf]
      %v4268 = vld [vmem:[#allocation3 + $0x4c] sm:$0x1]
      %v4269 = vld [vmem:[#allocation3 + $0x50] sm:$0xf]
      %v4270 = vld [vmem:[#allocation3 + $0x54] sm:$0x1]
      %v4271 = vld [vmem:[#allocation3 + $0x58] sm:$0xf]
      %v4272 = vld [vmem:[#allocation3 + $0x5c] sm:$0x1]
      %v4273 = vld [vmem:[#allocation3 + $0x60] sm:$0xf]
      %v4274 = vld [vmem:[#allocation3 + $0x64] sm:$0x1]
      %v4275 = vld [vmem:[#allocation3 + $0x68] sm:$0xf]
      %v4276 = vld [vmem:[#allocation3 + $0x6c] sm:$0x1]
      %v4277 = vld [vmem:[#allocation3 + $0x70] sm:$0xf]
      %v4278 = vld [vmem:[#allocation3 + $0x74] sm:$0x1]
      %v4279 = vld [vmem:[#allocation3 + $0x78] sm:$0xf]
      %v4280 = vld [vmem:[#allocation3 + $0x7c] sm:$0x1]
      %v4281 = vld [vmem:[#allocation3 + $0x80] sm:$0xf]
      %v4282 = vld [vmem:[#allocation3 + $0x84] sm:$0x1]
      %v4283 = vld [vmem:[#allocation3 + $0x88] sm:$0xf]
      %v4284 = vld [vmem:[#allocation3 + $0x8c] sm:$0x1]
      %v4285 = vld [vmem:[#allocation3 + $0x90] sm:$0xf]
      %v4286 = vld [vmem:[#allocation3 + $0x94] sm:$0x1]
      %v4287 = vld [vmem:[#allocation3 + $0x98] sm:$0xf]
      %v4288 = vld [vmem:[#allocation3 + $0x9c] sm:$0x1]
      %vm4289 = vsmask.f32 3328
      %vm4290 = vsmask.f32 7440
      %vm4291 = vmor %vm4289, %vm4290
      %v4293 = vshrl.u32 %v4249, 16
      %v4295 = vrot.slane %v4293, 4
      %v4296 = vshll.u32 %v4249, 16
      %v4298 = vrot.slane %v4296, 5
      %v4299 = vor.u32 %v4295, %v4298
      %v4300 = vrot.slane %v4299, 4
      %v4302 = vshll.u32 %v4250, 16
      %v4304 = vrot.slane %v4302, 5
      %v4305 = vsel %vm4291, %v4300, %v4304
      %v4307 = vshrl.u32 %v4251, 16
      %v4309 = vrot.slane %v4307, 4
      %v4310 = vshll.u32 %v4251, 16
      %v4312 = vrot.slane %v4310, 5
      %v4313 = vor.u32 %v4309, %v4312
      %v4314 = vrot.slane %v4313, 4
      %v4316 = vshll.u32 %v4252, 16
      %v4318 = vrot.slane %v4316, 5
      %v4319 = vsel %vm4291, %v4314, %v4318
      %v4321 = vshrl.u32 %v4253, 16
      %v4323 = vrot.slane %v4321, 4
      %v4324 = vshll.u32 %v4253, 16
      %v4326 = vrot.slane %v4324, 5
      %v4327 = vor.u32 %v4323, %v4326
      %v4328 = vrot.slane %v4327, 4
      %v4330 = vshll.u32 %v4254, 16
      %v4332 = vrot.slane %v4330, 5
      %v4333 = vsel %vm4291, %v4328, %v4332
      %v4335 = vshrl.u32 %v4255, 16
      %v4337 = vrot.slane %v4335, 4
      %v4338 = vshll.u32 %v4255, 16
      %v4340 = vrot.slane %v4338, 5
      %v4341 = vor.u32 %v4337, %v4340
      %v4342 = vrot.slane %v4341, 4
      %v4344 = vshll.u32 %v4256, 16
      %v4346 = vrot.slane %v4344, 5
      %v4347 = vsel %vm4291, %v4342, %v4346
      %v4349 = vshrl.u32 %v4257, 16
      %v4351 = vrot.slane %v4349, 4
      %v4352 = vshll.u32 %v4257, 16
      %v4354 = vrot.slane %v4352, 5
      %v4355 = vor.u32 %v4351, %v4354
      %v4356 = vrot.slane %v4355, 4
      %v4358 = vshll.u32 %v4258, 16
      %v4360 = vrot.slane %v4358, 5
      %v4361 = vsel %vm4291, %v4356, %v4360
      %v4363 = vshrl.u32 %v4259, 16
      %v4365 = vrot.slane %v4363, 4
      %v4366 = vshll.u32 %v4259, 16
      %v4368 = vrot.slane %v4366, 5
      %v4369 = vor.u32 %v4365, %v4368
      %v4370 = vrot.slane %v4369, 4
      %v4372 = vshll.u32 %v4260, 16
      %v4374 = vrot.slane %v4372, 5
      %v4375 = vsel %vm4291, %v4370, %v4374
      %v4377 = vshrl.u32 %v4261, 16
      %v4379 = vrot.slane %v4377, 4
      %v4380 = vshll.u32 %v4261, 16
      %v4382 = vrot.slane %v4380, 5
      %v4383 = vor.u32 %v4379, %v4382
      %v4384 = vrot.slane %v4383, 4
      %v4386 = vshll.u32 %v4262, 16
      %v4388 = vrot.slane %v4386, 5
      %v4389 = vsel %vm4291, %v4384, %v4388
      %v4391 = vshrl.u32 %v4263, 16
      %v4393 = vrot.slane %v4391, 4
      %v4394 = vshll.u32 %v4263, 16
      %v4396 = vrot.slane %v4394, 5
      %v4397 = vor.u32 %v4393, %v4396
      %v4398 = vrot.slane %v4397, 4
      %v4400 = vshll.u32 %v4264, 16
      %v4402 = vrot.slane %v4400, 5
      %v4403 = vsel %vm4291, %v4398, %v4402
      %v4405 = vshrl.u32 %v4265, 16
      %v4407 = vrot.slane %v4405, 4
      %v4408 = vshll.u32 %v4265, 16
      %v4410 = vrot.slane %v4408, 5
      %v4411 = vor.u32 %v4407, %v4410
      %v4412 = vrot.slane %v4411, 4
      %v4414 = vshll.u32 %v4266, 16
      %v4416 = vrot.slane %v4414, 5
      %v4417 = vsel %vm4291, %v4412, %v4416
      %v4419 = vshrl.u32 %v4267, 16
      %v4421 = vrot.slane %v4419, 4
      %v4422 = vshll.u32 %v4267, 16
      %v4424 = vrot.slane %v4422, 5
      %v4425 = vor.u32 %v4421, %v4424
      %v4426 = vrot.slane %v4425, 4
      %v4428 = vshll.u32 %v4268, 16
      %v4430 = vrot.slane %v4428, 5
      %v4431 = vsel %vm4291, %v4426, %v4430
      %v4433 = vshrl.u32 %v4269, 16
      %v4435 = vrot.slane %v4433, 4
      %v4436 = vshll.u32 %v4269, 16
      %v4438 = vrot.slane %v4436, 5
      %v4439 = vor.u32 %v4435, %v4438
      %v4440 = vrot.slane %v4439, 4
      %v4442 = vshll.u32 %v4270, 16
      %v4444 = vrot.slane %v4442, 5
      %v4445 = vsel %vm4291, %v4440, %v4444
      %v4447 = vshrl.u32 %v4271, 16
      %v4449 = vrot.slane %v4447, 4
      %v4450 = vshll.u32 %v4271, 16
      %v4452 = vrot.slane %v4450, 5
      %v4453 = vor.u32 %v4449, %v4452
      %v4454 = vrot.slane %v4453, 4
      %v4456 = vshll.u32 %v4272, 16
      %v4458 = vrot.slane %v4456, 5
      %v4459 = vsel %vm4291, %v4454, %v4458
      %v4461 = vshrl.u32 %v4273, 16
      %v4463 = vrot.slane %v4461, 4
      %v4464 = vshll.u32 %v4273, 16
      %v4466 = vrot.slane %v4464, 5
      %v4467 = vor.u32 %v4463, %v4466
      %v4468 = vrot.slane %v4467, 4
      %v4470 = vshll.u32 %v4274, 16
      %v4472 = vrot.slane %v4470, 5
      %v4473 = vsel %vm4291, %v4468, %v4472
      %v4475 = vshrl.u32 %v4275, 16
      %v4477 = vrot.slane %v4475, 4
      %v4478 = vshll.u32 %v4275, 16
      %v4480 = vrot.slane %v4478, 5
      %v4481 = vor.u32 %v4477, %v4480
      %v4482 = vrot.slane %v4481, 4
      %v4484 = vshll.u32 %v4276, 16
      %v4486 = vrot.slane %v4484, 5
      %v4487 = vsel %vm4291, %v4482, %v4486
      %v4489 = vshrl.u32 %v4277, 16
      %v4491 = vrot.slane %v4489, 4
      %v4492 = vshll.u32 %v4277, 16
      %v4494 = vrot.slane %v4492, 5
      %v4495 = vor.u32 %v4491, %v4494
      %v4496 = vrot.slane %v4495, 4
      %v4498 = vshll.u32 %v4278, 16
      %v4500 = vrot.slane %v4498, 5
      %v4501 = vsel %vm4291, %v4496, %v4500
      %v4503 = vshrl.u32 %v4279, 16
      %v4505 = vrot.slane %v4503, 4
      %v4506 = vshll.u32 %v4279, 16
      %v4508 = vrot.slane %v4506, 5
      %v4509 = vor.u32 %v4505, %v4508
      %v4510 = vrot.slane %v4509, 4
      %v4512 = vshll.u32 %v4280, 16
      %v4514 = vrot.slane %v4512, 5
      %v4515 = vsel %vm4291, %v4510, %v4514
      %v4517 = vshrl.u32 %v4281, 16
      %v4519 = vrot.slane %v4517, 4
      %v4520 = vshll.u32 %v4281, 16
      %v4522 = vrot.slane %v4520, 5
      %v4523 = vor.u32 %v4519, %v4522
      %v4524 = vrot.slane %v4523, 4
      %v4526 = vshll.u32 %v4282, 16
      %v4528 = vrot.slane %v4526, 5
      %v4529 = vsel %vm4291, %v4524, %v4528
      %v4531 = vshrl.u32 %v4283, 16
      %v4533 = vrot.slane %v4531, 4
      %v4534 = vshll.u32 %v4283, 16
      %v4536 = vrot.slane %v4534, 5
      %v4537 = vor.u32 %v4533, %v4536
      %v4538 = vrot.slane %v4537, 4
      %v4540 = vshll.u32 %v4284, 16
      %v4542 = vrot.slane %v4540, 5
      %v4543 = vsel %vm4291, %v4538, %v4542
      %v4545 = vshrl.u32 %v4285, 16
      %v4547 = vrot.slane %v4545, 4
      %v4548 = vshll.u32 %v4285, 16
      %v4550 = vrot.slane %v4548, 5
      %v4551 = vor.u32 %v4547, %v4550
      %v4552 = vrot.slane %v4551, 4
      %v4554 = vshll.u32 %v4286, 16
      %v4556 = vrot.slane %v4554, 5
      %v4557 = vsel %vm4291, %v4552, %v4556
      %v4559 = vshrl.u32 %v4287, 16
      %v4561 = vrot.slane %v4559, 4
      %v4562 = vshll.u32 %v4287, 16
      %v4564 = vrot.slane %v4562, 5
      %v4565 = vor.u32 %v4561, %v4564
      %v4566 = vrot.slane %v4565, 4
      %v4568 = vshll.u32 %v4288, 16
      %v4570 = vrot.slane %v4568, 5
      %v4571 = vsel %vm4291, %v4566, %v4570
      %4572 = vrot.lane.b32.xlu0 %v4305, 64
      %v4573 = vpop.permute.xlu0 %4572
      %4574 = vrot.lane.b32.xlu0 %v4319, 64
      %v4575 = vpop.permute.xlu0 %4574
      %4576 = vrot.lane.b32.xlu0 %v4333, 64
      %v4577 = vpop.permute.xlu0 %4576
      %4578 = vrot.lane.b32.xlu0 %v4347, 64
      %v4579 = vpop.permute.xlu0 %4578
      %4580 = vrot.lane.b32.xlu0 %v4361, 64
      %v4581 = vpop.permute.xlu0 %4580
      %4582 = vrot.lane.b32.xlu0 %v4375, 64
      %v4583 = vpop.permute.xlu0 %4582
      %4584 = vrot.lane.b32.xlu0 %v4389, 64
      %v4585 = vpop.permute.xlu0 %4584
      %4586 = vrot.lane.b32.xlu0 %v4403, 64
      %v4587 = vpop.permute.xlu0 %4586
      %4588 = vrot.lane.b32.xlu0 %v4417, 64
      %v4589 = vpop.permute.xlu0 %4588
      %4590 = vrot.lane.b32.xlu0 %v4431, 64
      %v4591 = vpop.permute.xlu0 %4590
      %4592 = vrot.lane.b32.xlu0 %v4445, 64
      %v4593 = vpop.permute.xlu0 %4592
      %4594 = vrot.lane.b32.xlu0 %v4459, 64
      %v4595 = vpop.permute.xlu0 %4594
      %4596 = vrot.lane.b32.xlu0 %v4473, 64
      %v4597 = vpop.permute.xlu0 %4596
      %4598 = vrot.lane.b32.xlu0 %v4487, 64
      %v4599 = vpop.permute.xlu0 %4598
      %4600 = vrot.lane.b32.xlu0 %v4501, 64
      %v4601 = vpop.permute.xlu0 %4600
      %4602 = vrot.lane.b32.xlu0 %v4515, 64
      %v4603 = vpop.permute.xlu0 %4602
      %4604 = vrot.lane.b32.xlu0 %v4529, 64
      %v4605 = vpop.permute.xlu0 %4604
      %4606 = vrot.lane.b32.xlu0 %v4543, 64
      %v4607 = vpop.permute.xlu0 %4606
      %4608 = vrot.lane.b32.xlu0 %v4557, 64
      %v4609 = vpop.permute.xlu0 %4608
      %4610 = vrot.lane.b32.xlu0 %v4571, 64
      %v4611 = vpop.permute.xlu0 %4610
      %vm4632 = vcmask 1043968
      %4633 = vst.msk [vmem:[#allocation4] sm:$0xf] %vm4632, %v4573
      %4634 = vst.msk [vmem:[#allocation4 + $0x8] sm:$0xf] %vm4632, %v4575
      %4635 = vst.msk [vmem:[#allocation4 + $0x10] sm:$0xf] %vm4632, %v4577
      %4636 = vst.msk [vmem:[#allocation4 + $0x18] sm:$0xf] %vm4632, %v4579
      %4637 = vst.msk [vmem:[#allocation4 + $0x20] sm:$0xf] %vm4632, %v4581
      %4638 = vst.msk [vmem:[#allocation4 + $0x28] sm:$0xf] %vm4632, %v4583
      %4639 = vst.msk [vmem:[#allocation4 + $0x30] sm:$0xf] %vm4632, %v4585
      %4640 = vst.msk [vmem:[#allocation4 + $0x38] sm:$0xf] %vm4632, %v4587
      %4641 = vst.msk [vmem:[#allocation4 + $0x40] sm:$0xf] %vm4632, %v4589
      %4642 = vst.msk [vmem:[#allocation4 + $0x48] sm:$0xf] %vm4632, %v4591
      %4643 = vst.msk [vmem:[#allocation4 + $0x50] sm:$0xf] %vm4632, %v4593
      %4644 = vst.msk [vmem:[#allocation4 + $0x58] sm:$0xf] %vm4632, %v4595
      %4645 = vst.msk [vmem:[#allocation4 + $0x60] sm:$0xf] %vm4632, %v4597
      %4646 = vst.msk [vmem:[#allocation4 + $0x68] sm:$0xf] %vm4632, %v4599
      %4647 = vst.msk [vmem:[#allocation4 + $0x70] sm:$0xf] %vm4632, %v4601
      %4648 = vst.msk [vmem:[#allocation4 + $0x78] sm:$0xf] %vm4632, %v4603
      %4649 = vst.msk [vmem:[#allocation4 + $0x80] sm:$0xf] %vm4632, %v4605
      %4650 = vst.msk [vmem:[#allocation4 + $0x88] sm:$0xf] %vm4632, %v4607
      %4651 = vst.msk [vmem:[#allocation4 + $0x90] sm:$0xf] %vm4632, %v4609
      %4652 = vst.msk [vmem:[#allocation4 + $0x98] sm:$0xf] %vm4632, %v4611
      %v4653 = vld [vmem:[#allocation3] sm:$0xe]
      %v4654 = vld [vmem:[#allocation3 + $0x4] sm:$0x1]
      %v4655 = vld [vmem:[#allocation3 + $0x8] sm:$0xe]
      %v4656 = vld [vmem:[#allocation3 + $0xc] sm:$0x1]
      %v4657 = vld [vmem:[#allocation3 + $0x10] sm:$0xe]
      %v4658 = vld [vmem:[#allocation3 + $0x14] sm:$0x1]
      %v4659 = vld [vmem:[#allocation3 + $0x18] sm:$0xe]
      %v4660 = vld [vmem:[#allocation3 + $0x1c] sm:$0x1]
      %v4661 = vld [vmem:[#allocation3 + $0x20] sm:$0xe]
      %v4662 = vld [vmem:[#allocation3 + $0x24] sm:$0x1]
      %v4663 = vld [vmem:[#allocation3 + $0x28] sm:$0xe]
      %v4664 = vld [vmem:[#allocation3 + $0x2c] sm:$0x1]
      %v4665 = vld [vmem:[#allocation3 + $0x30] sm:$0xe]
      %v4666 = vld [vmem:[#allocation3 + $0x34] sm:$0x1]
      %v4667 = vld [vmem:[#allocation3 + $0x38] sm:$0xe]
      %v4668 = vld [vmem:[#allocation3 + $0x3c] sm:$0x1]
      %v4669 = vld [vmem:[#allocation3 + $0x40] sm:$0xe]
      %v4670 = vld [vmem:[#allocation3 + $0x44] sm:$0x1]
      %v4671 = vld [vmem:[#allocation3 + $0x48] sm:$0xe]
      %v4672 = vld [vmem:[#allocation3 + $0x4c] sm:$0x1]
      %v4673 = vld [vmem:[#allocation3 + $0x50] sm:$0xe]
      %v4674 = vld [vmem:[#allocation3 + $0x54] sm:$0x1]
      %v4675 = vld [vmem:[#allocation3 + $0x58] sm:$0xe]
      %v4676 = vld [vmem:[#allocation3 + $0x5c] sm:$0x1]
      %v4677 = vld [vmem:[#allocation3 + $0x60] sm:$0xe]
      %v4678 = vld [vmem:[#allocation3 + $0x64] sm:$0x1]
      %v4679 = vld [vmem:[#allocation3 + $0x68] sm:$0xe]
      %v4680 = vld [vmem:[#allocation3 + $0x6c] sm:$0x1]
      %v4681 = vld [vmem:[#allocation3 + $0x70] sm:$0xe]
      %v4682 = vld [vmem:[#allocation3 + $0x74] sm:$0x1]
      %v4683 = vld [vmem:[#allocation3 + $0x78] sm:$0xe]
      %v4684 = vld [vmem:[#allocation3 + $0x7c] sm:$0x1]
      %v4685 = vld [vmem:[#allocation3 + $0x80] sm:$0xe]
      %v4686 = vld [vmem:[#allocation3 + $0x84] sm:$0x1]
      %v4687 = vld [vmem:[#allocation3 + $0x88] sm:$0xe]
      %v4688 = vld [vmem:[#allocation3 + $0x8c] sm:$0x1]
      %v4689 = vld [vmem:[#allocation3 + $0x90] sm:$0xe]
      %v4690 = vld [vmem:[#allocation3 + $0x94] sm:$0x1]
      %v4691 = vld [vmem:[#allocation3 + $0x98] sm:$0xe]
      %v4692 = vld [vmem:[#allocation3 + $0x9c] sm:$0x1]
      %vm4733 = vcmask 1042432
      %vm4734 = vcmask 1046532
      %vm4735 = vmor %vm4733, %vm4734
      %v4736 = vrot.slane %v4653, 5
      %v4737 = vrot.slane %v4736, 4
      %v4738 = vrot.slane %v4654, 5
      %v4739 = vsel %vm4735, %v4737, %v4738
      %v4740 = vrot.slane %v4655, 5
      %v4741 = vrot.slane %v4740, 4
      %v4742 = vrot.slane %v4656, 5
      %v4743 = vsel %vm4735, %v4741, %v4742
      %v4744 = vrot.slane %v4657, 5
      %v4745 = vrot.slane %v4744, 4
      %v4746 = vrot.slane %v4658, 5
      %v4747 = vsel %vm4735, %v4745, %v4746
      %v4748 = vrot.slane %v4659, 5
      %v4749 = vrot.slane %v4748, 4
      %v4750 = vrot.slane %v4660, 5
      %v4751 = vsel %vm4735, %v4749, %v4750
      %v4752 = vrot.slane %v4661, 5
      %v4753 = vrot.slane %v4752, 4
      %v4754 = vrot.slane %v4662, 5
      %v4755 = vsel %vm4735, %v4753, %v4754
      %v4756 = vrot.slane %v4663, 5
      %v4757 = vrot.slane %v4756, 4
      %v4758 = vrot.slane %v4664, 5
      %v4759 = vsel %vm4735, %v4757, %v4758
      %v4760 = vrot.slane %v4665, 5
      %v4761 = vrot.slane %v4760, 4
      %v4762 = vrot.slane %v4666, 5
      %v4763 = vsel %vm4735, %v4761, %v4762
      %v4764 = vrot.slane %v4667, 5
      %v4765 = vrot.slane %v4764, 4
      %v4766 = vrot.slane %v4668, 5
      %v4767 = vsel %vm4735, %v4765, %v4766
      %v4768 = vrot.slane %v4669, 5
      %v4769 = vrot.slane %v4768, 4
      %v4770 = vrot.slane %v4670, 5
      %v4771 = vsel %vm4735, %v4769, %v4770
      %v4772 = vrot.slane %v4671, 5
      %v4773 = vrot.slane %v4772, 4
      %v4774 = vrot.slane %v4672, 5
      %v4775 = vsel %vm4735, %v4773, %v4774
      %v4776 = vrot.slane %v4673, 5
      %v4777 = vrot.slane %v4776, 4
      %v4778 = vrot.slane %v4674, 5
      %v4779 = vsel %vm4735, %v4777, %v4778
      %v4780 = vrot.slane %v4675, 5
      %v4781 = vrot.slane %v4780, 4
      %v4782 = vrot.slane %v4676, 5
      %v4783 = vsel %vm4735, %v4781, %v4782
      %v4784 = vrot.slane %v4677, 5
      %v4785 = vrot.slane %v4784, 4
      %v4786 = vrot.slane %v4678, 5
      %v4787 = vsel %vm4735, %v4785, %v4786
      %v4788 = vrot.slane %v4679, 5
      %v4789 = vrot.slane %v4788, 4
      %v4790 = vrot.slane %v4680, 5
      %v4791 = vsel %vm4735, %v4789, %v4790
      %v4792 = vrot.slane %v4681, 5
      %v4793 = vrot.slane %v4792, 4
      %v4794 = vrot.slane %v4682, 5
      %v4795 = vsel %vm4735, %v4793, %v4794
      %v4796 = vrot.slane %v4683, 5
      %v4797 = vrot.slane %v4796, 4
      %v4798 = vrot.slane %v4684, 5
      %v4799 = vsel %vm4735, %v4797, %v4798
      %v4800 = vrot.slane %v4685, 5
      %v4801 = vrot.slane %v4800, 4
      %v4802 = vrot.slane %v4686, 5
      %v4803 = vsel %vm4735, %v4801, %v4802
      %v4804 = vrot.slane %v4687, 5
      %v4805 = vrot.slane %v4804, 4
      %v4806 = vrot.slane %v4688, 5
      %v4807 = vsel %vm4735, %v4805, %v4806
      %v4808 = vrot.slane %v4689, 5
      %v4809 = vrot.slane %v4808, 4
      %v4810 = vrot.slane %v4690, 5
      %v4811 = vsel %vm4735, %v4809, %v4810
      %v4812 = vrot.slane %v4691, 5
      %v4813 = vrot.slane %v4812, 4
      %v4814 = vrot.slane %v4692, 5
      %v4815 = vsel %vm4735, %v4813, %v4814
      %4836 = vst.msk [vmem:[#allocation4 + $0x4] sm:$0xf] %vm335, %v4739
      %4837 = vst.msk [vmem:[#allocation4 + $0xc] sm:$0xf] %vm335, %v4743
      %4838 = vst.msk [vmem:[#allocation4 + $0x14] sm:$0xf] %vm335, %v4747
      %4839 = vst.msk [vmem:[#allocation4 + $0x1c] sm:$0xf] %vm335, %v4751
      %4840 = vst.msk [vmem:[#allocation4 + $0x24] sm:$0xf] %vm335, %v4755
      %4841 = vst.msk [vmem:[#allocation4 + $0x2c] sm:$0xf] %vm335, %v4759
      %4842 = vst.msk [vmem:[#allocation4 + $0x34] sm:$0xf] %vm335, %v4763
      %4843 = vst.msk [vmem:[#allocation4 + $0x3c] sm:$0xf] %vm335, %v4767
      %4844 = vst.msk [vmem:[#allocation4 + $0x44] sm:$0xf] %vm335, %v4771
      %4845 = vst.msk [vmem:[#allocation4 + $0x4c] sm:$0xf] %vm335, %v4775
      %4846 = vst.msk [vmem:[#allocation4 + $0x54] sm:$0xf] %vm335, %v4779
      %4847 = vst.msk [vmem:[#allocation4 + $0x5c] sm:$0xf] %vm335, %v4783
      %4848 = vst.msk [vmem:[#allocation4 + $0x64] sm:$0xf] %vm335, %v4787
      %4849 = vst.msk [vmem:[#allocation4 + $0x6c] sm:$0xf] %vm335, %v4791
      %4850 = vst.msk [vmem:[#allocation4 + $0x74] sm:$0xf] %vm335, %v4795
      %4851 = vst.msk [vmem:[#allocation4 + $0x7c] sm:$0xf] %vm335, %v4799
      %4852 = vst.msk [vmem:[#allocation4 + $0x84] sm:$0xf] %vm335, %v4803
      %4853 = vst.msk [vmem:[#allocation4 + $0x8c] sm:$0xf] %vm335, %v4807
      %4854 = vst.msk [vmem:[#allocation4 + $0x94] sm:$0xf] %vm335, %v4811
      %4855 = vst.msk [vmem:[#allocation4 + $0x9c] sm:$0xf] %vm335, %v4815
      %v4856 = vld [vmem:[#allocation4] sm:$0xff]
      %v4857 = vld [vmem:[#allocation4 + $0x8] sm:$0xff]
      %v4858 = vld [vmem:[#allocation4 + $0x10] sm:$0xff]
      %v4859 = vld [vmem:[#allocation4 + $0x18] sm:$0xff]
      %v4860 = vld [vmem:[#allocation4 + $0x20] sm:$0xff]
      %v4861 = vld [vmem:[#allocation4 + $0x28] sm:$0xff]
      %v4862 = vld [vmem:[#allocation4 + $0x30] sm:$0xff]
      %v4863 = vld [vmem:[#allocation4 + $0x38] sm:$0xff]
      %v4864 = vld [vmem:[#allocation4 + $0x50] sm:$0xff]
      %v4865 = vld [vmem:[#allocation4 + $0x58] sm:$0xff]
      %v4866 = vld [vmem:[#allocation4 + $0x60] sm:$0xff]
      %v4867 = vld [vmem:[#allocation4 + $0x68] sm:$0xff]
      %v4868 = vld [vmem:[#allocation4 + $0x70] sm:$0xff]
      %v4869 = vld [vmem:[#allocation4 + $0x78] sm:$0xff]
      %v4870 = vld [vmem:[#allocation4 + $0x80] sm:$0xff]
      %v4871 = vld [vmem:[#allocation4 + $0x88] sm:$0xff]
      %v4872 = vunpack.c.l.bf16 %v4856
      %v4873 = vunpack.c.h.bf16 %v4856
      %v4874 = vunpack.c.l.bf16 %v4857
      %v4875 = vunpack.c.h.bf16 %v4857
      %v4876 = vunpack.c.l.bf16 %v4858
      %v4877 = vunpack.c.h.bf16 %v4858
      %v4878 = vunpack.c.l.bf16 %v4859
      %v4879 = vunpack.c.h.bf16 %v4859
      %v4880 = vunpack.c.l.bf16 %v4860
      %v4881 = vunpack.c.h.bf16 %v4860
      %v4882 = vunpack.c.l.bf16 %v4861
      %v4883 = vunpack.c.h.bf16 %v4861
      %v4884 = vunpack.c.l.bf16 %v4862
      %v4885 = vunpack.c.h.bf16 %v4862
      %v4886 = vunpack.c.l.bf16 %v4863
      %v4887 = vunpack.c.h.bf16 %v4863
      %v4888 = vunpack.c.l.bf16 %v4864
      %v4889 = vunpack.c.h.bf16 %v4864
      %v4890 = vunpack.c.l.bf16 %v4865
      %v4891 = vunpack.c.h.bf16 %v4865
      %v4892 = vunpack.c.l.bf16 %v4866
      %v4893 = vunpack.c.h.bf16 %v4866
      %v4894 = vunpack.c.l.bf16 %v4867
      %v4895 = vunpack.c.h.bf16 %v4867
      %v4896 = vunpack.c.l.bf16 %v4868
      %v4897 = vunpack.c.h.bf16 %v4868
      %v4898 = vunpack.c.l.bf16 %v4869
      %v4899 = vunpack.c.h.bf16 %v4869
      %v4900 = vunpack.c.l.bf16 %v4870
      %v4901 = vunpack.c.h.bf16 %v4870
      %v4902 = vunpack.c.l.bf16 %v4871
      %v4903 = vunpack.c.h.bf16 %v4871
      %v4904 = vld [vmem:[%s272] ss:$4 sm:$0x3]
      %v4906 = vlaneseq
      %v4907 = vshrl.u32 %v4906, 7
      %v4908 = vsub.s32 0, %v4907
      %v4909 = vrot.slane %v4904, %v4908
      %v4910 = vlaneseq
      %v4911 = vshrl.u32 %v4910, 7
      %v4912 = vsub.s32 1, %v4911
      %v4913 = vrot.slane %v4904, %v4912
      %v4916 = vmul.f32 %v4872, %v4909
      %v4917 = vmul.f32 %v4873, %v4913
      %v4918 = vmul.f32 %v4874, %v4909
      %v4919 = vmul.f32 %v4875, %v4913
      %v4920 = vmul.f32 %v4876, %v4909
      %v4921 = vmul.f32 %v4877, %v4913
      %v4922 = vmul.f32 %v4878, %v4909
      %v4923 = vmul.f32 %v4879, %v4913
      %v4924 = vmul.f32 %v4880, %v4909
      %v4925 = vmul.f32 %v4881, %v4913
      %v4926 = vmul.f32 %v4882, %v4909
      %v4927 = vmul.f32 %v4883, %v4913
      %v4928 = vmul.f32 %v4884, %v4909
      %v4929 = vmul.f32 %v4885, %v4913
      %v4930 = vmul.f32 %v4886, %v4909
      %v4931 = vmul.f32 %v4887, %v4913
      %v4932 = vmul.f32 %v4888, %v4909
      %v4933 = vmul.f32 %v4889, %v4913
      %v4934 = vmul.f32 %v4890, %v4909
      %v4935 = vmul.f32 %v4891, %v4913
      %v4936 = vmul.f32 %v4892, %v4909
      %v4937 = vmul.f32 %v4893, %v4913
      %v4938 = vmul.f32 %v4894, %v4909
      %v4939 = vmul.f32 %v4895, %v4913
      %v4940 = vmul.f32 %v4896, %v4909
      %v4941 = vmul.f32 %v4897, %v4913
      %v4942 = vmul.f32 %v4898, %v4909
      %v4943 = vmul.f32 %v4899, %v4913
      %v4944 = vmul.f32 %v4900, %v4909
      %v4945 = vmul.f32 %v4901, %v4913
      %v4946 = vmul.f32 %v4902, %v4909
      %v4947 = vmul.f32 %v4903, %v4913
      %v4948 = vsel %vm886, %v4917, 0.0
      %v4949 = vadd.f32 %v4916, %v4948
      %4950 = vadd.xlane.f32.xlu0 %v4949
      %v4951 = vpop.xlane.xlu0 %4950
      %v4952 = vsel %vm886, %v4919, 0.0
      %v4953 = vadd.f32 %v4918, %v4952
      %4954 = vadd.xlane.f32.xlu0 %v4953
      %v4955 = vpop.xlane.xlu0 %4954
      %v4956 = vsel %vm886, %v4921, 0.0
      %v4957 = vadd.f32 %v4920, %v4956
      %4958 = vadd.xlane.f32.xlu0 %v4957
      %v4959 = vpop.xlane.xlu0 %4958
      %v4960 = vsel %vm886, %v4923, 0.0
      %v4961 = vadd.f32 %v4922, %v4960
      %4962 = vadd.xlane.f32.xlu0 %v4961
      %v4963 = vpop.xlane.xlu0 %4962
      %v4964 = vsel %vm886, %v4925, 0.0
      %v4965 = vadd.f32 %v4924, %v4964
      %4966 = vadd.xlane.f32.xlu0 %v4965
      %v4967 = vpop.xlane.xlu0 %4966
      %v4968 = vsel %vm886, %v4927, 0.0
      %v4969 = vadd.f32 %v4926, %v4968
      %4970 = vadd.xlane.f32.xlu0 %v4969
      %v4971 = vpop.xlane.xlu0 %4970
      %v4972 = vsel %vm886, %v4929, 0.0
      %v4973 = vadd.f32 %v4928, %v4972
      %4974 = vadd.xlane.f32.xlu0 %v4973
      %v4975 = vpop.xlane.xlu0 %4974
      %v4976 = vsel %vm886, %v4931, 0.0
      %v4977 = vadd.f32 %v4930, %v4976
      %4978 = vadd.xlane.f32.xlu0 %v4977
      %v4979 = vpop.xlane.xlu0 %4978
      %v4980 = vsel %vm886, %v4933, 0.0
      %v4981 = vadd.f32 %v4932, %v4980
      %4982 = vadd.xlane.f32.xlu0 %v4981
      %v4983 = vpop.xlane.xlu0 %4982
      %v4984 = vsel %vm886, %v4935, 0.0
      %v4985 = vadd.f32 %v4934, %v4984
      %4986 = vadd.xlane.f32.xlu0 %v4985
      %v4987 = vpop.xlane.xlu0 %4986
      %v4988 = vsel %vm886, %v4937, 0.0
      %v4989 = vadd.f32 %v4936, %v4988
      %4990 = vadd.xlane.f32.xlu0 %v4989
      %v4991 = vpop.xlane.xlu0 %4990
      %v4992 = vsel %vm886, %v4939, 0.0
      %v4993 = vadd.f32 %v4938, %v4992
      %4994 = vadd.xlane.f32.xlu0 %v4993
      %v4995 = vpop.xlane.xlu0 %4994
      %v4996 = vsel %vm886, %v4941, 0.0
      %v4997 = vadd.f32 %v4940, %v4996
      %4998 = vadd.xlane.f32.xlu0 %v4997
      %v4999 = vpop.xlane.xlu0 %4998
      %v5000 = vsel %vm886, %v4943, 0.0
      %v5001 = vadd.f32 %v4942, %v5000
      %5002 = vadd.xlane.f32.xlu0 %v5001
      %v5003 = vpop.xlane.xlu0 %5002
      %v5004 = vsel %vm886, %v4945, 0.0
      %v5005 = vadd.f32 %v4944, %v5004
      %5006 = vadd.xlane.f32.xlu0 %v5005
      %v5007 = vpop.xlane.xlu0 %5006
      %v5008 = vsel %vm886, %v4947, 0.0
      %v5009 = vadd.f32 %v4946, %v5008
      %5010 = vadd.xlane.f32.xlu0 %v5009
      %v5011 = vpop.xlane.xlu0 %5010
      %v5012 = vadd.f32 %v4951, 0.0
      %v5013 = vadd.f32 %v4955, 0.0
      %v5014 = vadd.f32 %v4959, 0.0
      %v5015 = vadd.f32 %v4963, 0.0
      %v5016 = vadd.f32 %v4967, 0.0
      %v5017 = vadd.f32 %v4971, 0.0
      %v5018 = vadd.f32 %v4975, 0.0
      %v5019 = vadd.f32 %v4979, 0.0
      %v5020 = vadd.f32 %v4983, 0.0
      %v5021 = vadd.f32 %v4987, 0.0
      %v5022 = vadd.f32 %v4991, 0.0
      %v5023 = vadd.f32 %v4995, 0.0
      %v5024 = vadd.f32 %v4999, 0.0
      %v5025 = vadd.f32 %v5003, 0.0
      %v5026 = vadd.f32 %v5007, 0.0
      %v5027 = vadd.f32 %v5011, 0.0
      %s5028 = scalar_lea.vmem [#allocation4], 8
      %v5029 = vld [vmem:[%s5028] sm:$0xff]
      %v5030 = vld [vmem:[%s5028 + $0x8] sm:$0xff]
      %v5031 = vld [vmem:[%s5028 + $0x10] sm:$0xff]
      %v5032 = vld [vmem:[%s5028 + $0x18] sm:$0xff]
      %v5033 = vld [vmem:[%s5028 + $0x20] sm:$0xff]
      %v5034 = vld [vmem:[%s5028 + $0x28] sm:$0xff]
      %v5035 = vld [vmem:[%s5028 + $0x30] sm:$0xff]
      %v5036 = vld [vmem:[%s5028 + $0x38] sm:$0xff]
      %v5037 = vld [vmem:[%s5028 + $0x50] sm:$0xff]
      %v5038 = vld [vmem:[%s5028 + $0x58] sm:$0xff]
      %v5039 = vld [vmem:[%s5028 + $0x60] sm:$0xff]
      %v5040 = vld [vmem:[%s5028 + $0x68] sm:$0xff]
      %v5041 = vld [vmem:[%s5028 + $0x70] sm:$0xff]
      %v5042 = vld [vmem:[%s5028 + $0x78] sm:$0xff]
      %v5043 = vld [vmem:[%s5028 + $0x80] sm:$0xff]
      %v5044 = vld [vmem:[%s5028 + $0x88] sm:$0xff]
      %v5045 = vunpack.c.l.bf16 %v5029
      %v5046 = vunpack.c.h.bf16 %v5029
      %v5047 = vunpack.c.l.bf16 %v5030
      %v5048 = vunpack.c.h.bf16 %v5030
      %v5049 = vunpack.c.l.bf16 %v5031
      %v5050 = vunpack.c.h.bf16 %v5031
      %v5051 = vunpack.c.l.bf16 %v5032
      %v5052 = vunpack.c.h.bf16 %v5032
      %v5053 = vunpack.c.l.bf16 %v5033
      %v5054 = vunpack.c.h.bf16 %v5033
      %v5055 = vunpack.c.l.bf16 %v5034
      %v5056 = vunpack.c.h.bf16 %v5034
      %v5057 = vunpack.c.l.bf16 %v5035
      %v5058 = vunpack.c.h.bf16 %v5035
      %v5059 = vunpack.c.l.bf16 %v5036
      %v5060 = vunpack.c.h.bf16 %v5036
      %v5061 = vunpack.c.l.bf16 %v5037
      %v5062 = vunpack.c.h.bf16 %v5037
      %v5063 = vunpack.c.l.bf16 %v5038
      %v5064 = vunpack.c.h.bf16 %v5038
      %v5065 = vunpack.c.l.bf16 %v5039
      %v5066 = vunpack.c.h.bf16 %v5039
      %v5067 = vunpack.c.l.bf16 %v5040
      %v5068 = vunpack.c.h.bf16 %v5040
      %v5069 = vunpack.c.l.bf16 %v5041
      %v5070 = vunpack.c.h.bf16 %v5041
      %v5071 = vunpack.c.l.bf16 %v5042
      %v5072 = vunpack.c.h.bf16 %v5042
      %v5073 = vunpack.c.l.bf16 %v5043
      %v5074 = vunpack.c.h.bf16 %v5043
      %v5075 = vunpack.c.l.bf16 %v5044
      %v5076 = vunpack.c.h.bf16 %v5044
      %s5077 = scalar_lea.vmem %s272, 1
      %v5078 = vld [vmem:[%s5077] ss:$4 sm:$0x3]
      %v5080 = vlaneseq
      %v5081 = vshrl.u32 %v5080, 7
      %v5082 = vsub.s32 0, %v5081
      %v5083 = vrot.slane %v5078, %v5082
      %v5084 = vlaneseq
      %v5085 = vshrl.u32 %v5084, 7
      %v5086 = vsub.s32 1, %v5085
      %v5087 = vrot.slane %v5078, %v5086
      %v5090 = vmul.f32 %v5045, %v5083
      %v5091 = vmul.f32 %v5046, %v5087
      %v5092 = vmul.f32 %v5047, %v5083
      %v5093 = vmul.f32 %v5048, %v5087
      %v5094 = vmul.f32 %v5049, %v5083
      %v5095 = vmul.f32 %v5050, %v5087
      %v5096 = vmul.f32 %v5051, %v5083
      %v5097 = vmul.f32 %v5052, %v5087
      %v5098 = vmul.f32 %v5053, %v5083
      %v5099 = vmul.f32 %v5054, %v5087
      %v5100 = vmul.f32 %v5055, %v5083
      %v5101 = vmul.f32 %v5056, %v5087
      %v5102 = vmul.f32 %v5057, %v5083
      %v5103 = vmul.f32 %v5058, %v5087
      %v5104 = vmul.f32 %v5059, %v5083
      %v5105 = vmul.f32 %v5060, %v5087
      %v5106 = vmul.f32 %v5061, %v5083
      %v5107 = vmul.f32 %v5062, %v5087
      %v5108 = vmul.f32 %v5063, %v5083
      %v5109 = vmul.f32 %v5064, %v5087
      %v5110 = vmul.f32 %v5065, %v5083
      %v5111 = vmul.f32 %v5066, %v5087
      %v5112 = vmul.f32 %v5067, %v5083
      %v5113 = vmul.f32 %v5068, %v5087
      %v5114 = vmul.f32 %v5069, %v5083
      %v5115 = vmul.f32 %v5070, %v5087
      %v5116 = vmul.f32 %v5071, %v5083
      %v5117 = vmul.f32 %v5072, %v5087
      %v5118 = vmul.f32 %v5073, %v5083
      %v5119 = vmul.f32 %v5074, %v5087
      %v5120 = vmul.f32 %v5075, %v5083
      %v5121 = vmul.f32 %v5076, %v5087
      %v5122 = vsel %vm886, %v5091, 0.0
      %v5123 = vadd.f32 %v5090, %v5122
      %5124 = vadd.xlane.f32.xlu0 %v5123
      %v5125 = vpop.xlane.xlu0 %5124
      %v5126 = vsel %vm886, %v5093, 0.0
      %v5127 = vadd.f32 %v5092, %v5126
      %5128 = vadd.xlane.f32.xlu0 %v5127
      %v5129 = vpop.xlane.xlu0 %5128
      %v5130 = vsel %vm886, %v5095, 0.0
      %v5131 = vadd.f32 %v5094, %v5130
      %5132 = vadd.xlane.f32.xlu0 %v5131
      %v5133 = vpop.xlane.xlu0 %5132
      %v5134 = vsel %vm886, %v5097, 0.0
      %v5135 = vadd.f32 %v5096, %v5134
      %5136 = vadd.xlane.f32.xlu0 %v5135
      %v5137 = vpop.xlane.xlu0 %5136
      %v5138 = vsel %vm886, %v5099, 0.0
      %v5139 = vadd.f32 %v5098, %v5138
      %5140 = vadd.xlane.f32.xlu0 %v5139
      %v5141 = vpop.xlane.xlu0 %5140
      %v5142 = vsel %vm886, %v5101, 0.0
      %v5143 = vadd.f32 %v5100, %v5142
      %5144 = vadd.xlane.f32.xlu0 %v5143
      %v5145 = vpop.xlane.xlu0 %5144
      %v5146 = vsel %vm886, %v5103, 0.0
      %v5147 = vadd.f32 %v5102, %v5146
      %5148 = vadd.xlane.f32.xlu0 %v5147
      %v5149 = vpop.xlane.xlu0 %5148
      %v5150 = vsel %vm886, %v5105, 0.0
      %v5151 = vadd.f32 %v5104, %v5150
      %5152 = vadd.xlane.f32.xlu0 %v5151
      %v5153 = vpop.xlane.xlu0 %5152
      %v5154 = vsel %vm886, %v5107, 0.0
      %v5155 = vadd.f32 %v5106, %v5154
      %5156 = vadd.xlane.f32.xlu0 %v5155
      %v5157 = vpop.xlane.xlu0 %5156
      %v5158 = vsel %vm886, %v5109, 0.0
      %v5159 = vadd.f32 %v5108, %v5158
      %5160 = vadd.xlane.f32.xlu0 %v5159
      %v5161 = vpop.xlane.xlu0 %5160
      %v5162 = vsel %vm886, %v5111, 0.0
      %v5163 = vadd.f32 %v5110, %v5162
      %5164 = vadd.xlane.f32.xlu0 %v5163
      %v5165 = vpop.xlane.xlu0 %5164
      %v5166 = vsel %vm886, %v5113, 0.0
      %v5167 = vadd.f32 %v5112, %v5166
      %5168 = vadd.xlane.f32.xlu0 %v5167
      %v5169 = vpop.xlane.xlu0 %5168
      %v5170 = vsel %vm886, %v5115, 0.0
      %v5171 = vadd.f32 %v5114, %v5170
      %5172 = vadd.xlane.f32.xlu0 %v5171
      %v5173 = vpop.xlane.xlu0 %5172
      %v5174 = vsel %vm886, %v5117, 0.0
      %v5175 = vadd.f32 %v5116, %v5174
      %5176 = vadd.xlane.f32.xlu0 %v5175
      %v5177 = vpop.xlane.xlu0 %5176
      %v5178 = vsel %vm886, %v5119, 0.0
      %v5179 = vadd.f32 %v5118, %v5178
      %5180 = vadd.xlane.f32.xlu0 %v5179
      %v5181 = vpop.xlane.xlu0 %5180
      %v5182 = vsel %vm886, %v5121, 0.0
      %v5183 = vadd.f32 %v5120, %v5182
      %5184 = vadd.xlane.f32.xlu0 %v5183
      %v5185 = vpop.xlane.xlu0 %5184
      %v5186 = vadd.f32 %v5012, %v5125
      %v5187 = vadd.f32 %v5013, %v5129
      %v5188 = vadd.f32 %v5014, %v5133
      %v5189 = vadd.f32 %v5015, %v5137
      %v5190 = vadd.f32 %v5016, %v5141
      %v5191 = vadd.f32 %v5017, %v5145
      %v5192 = vadd.f32 %v5018, %v5149
      %v5193 = vadd.f32 %v5019, %v5153
      %v5194 = vadd.f32 %v5020, %v5157
      %v5195 = vadd.f32 %v5021, %v5161
      %v5196 = vadd.f32 %v5022, %v5165
      %v5197 = vadd.f32 %v5023, %v5169
      %v5198 = vadd.f32 %v5024, %v5173
      %v5199 = vadd.f32 %v5025, %v5177
      %v5200 = vadd.f32 %v5026, %v5181
      %v5201 = vadd.f32 %v5027, %v5185
      %s5202 = scalar_lea.vmem [#allocation4], 16
      %v5203 = vld [vmem:[%s5202] sm:$0xff]
      %v5204 = vld [vmem:[%s5202 + $0x8] sm:$0xff]
      %v5205 = vld [vmem:[%s5202 + $0x10] sm:$0xff]
      %v5206 = vld [vmem:[%s5202 + $0x18] sm:$0xff]
      %v5207 = vld [vmem:[%s5202 + $0x20] sm:$0xff]
      %v5208 = vld [vmem:[%s5202 + $0x28] sm:$0xff]
      %v5209 = vld [vmem:[%s5202 + $0x30] sm:$0xff]
      %v5210 = vld [vmem:[%s5202 + $0x38] sm:$0xff]
      %v5211 = vld [vmem:[%s5202 + $0x50] sm:$0xff]
      %v5212 = vld [vmem:[%s5202 + $0x58] sm:$0xff]
      %v5213 = vld [vmem:[%s5202 + $0x60] sm:$0xff]
      %v5214 = vld [vmem:[%s5202 + $0x68] sm:$0xff]
      %v5215 = vld [vmem:[%s5202 + $0x70] sm:$0xff]
      %v5216 = vld [vmem:[%s5202 + $0x78] sm:$0xff]
      %v5217 = vld [vmem:[%s5202 + $0x80] sm:$0xff]
      %v5218 = vld [vmem:[%s5202 + $0x88] sm:$0xff]
      %v5219 = vunpack.c.l.bf16 %v5203
      %v5220 = vunpack.c.h.bf16 %v5203
      %v5221 = vunpack.c.l.bf16 %v5204
      %v5222 = vunpack.c.h.bf16 %v5204
      %v5223 = vunpack.c.l.bf16 %v5205
      %v5224 = vunpack.c.h.bf16 %v5205
      %v5225 = vunpack.c.l.bf16 %v5206
      %v5226 = vunpack.c.h.bf16 %v5206
      %v5227 = vunpack.c.l.bf16 %v5207
      %v5228 = vunpack.c.h.bf16 %v5207
      %v5229 = vunpack.c.l.bf16 %v5208
      %v5230 = vunpack.c.h.bf16 %v5208
      %v5231 = vunpack.c.l.bf16 %v5209
      %v5232 = vunpack.c.h.bf16 %v5209
      %v5233 = vunpack.c.l.bf16 %v5210
      %v5234 = vunpack.c.h.bf16 %v5210
      %v5235 = vunpack.c.l.bf16 %v5211
      %v5236 = vunpack.c.h.bf16 %v5211
      %v5237 = vunpack.c.l.bf16 %v5212
      %v5238 = vunpack.c.h.bf16 %v5212
      %v5239 = vunpack.c.l.bf16 %v5213
      %v5240 = vunpack.c.h.bf16 %v5213
      %v5241 = vunpack.c.l.bf16 %v5214
      %v5242 = vunpack.c.h.bf16 %v5214
      %v5243 = vunpack.c.l.bf16 %v5215
      %v5244 = vunpack.c.h.bf16 %v5215
      %v5245 = vunpack.c.l.bf16 %v5216
      %v5246 = vunpack.c.h.bf16 %v5216
      %v5247 = vunpack.c.l.bf16 %v5217
      %v5248 = vunpack.c.h.bf16 %v5217
      %v5249 = vunpack.c.l.bf16 %v5218
      %v5250 = vunpack.c.h.bf16 %v5218
      %s5251 = scalar_lea.vmem %s272, 2
      %v5252 = vld [vmem:[%s5251] ss:$4 sm:$0x3]
      %v5254 = vlaneseq
      %v5255 = vshrl.u32 %v5254, 7
      %v5256 = vsub.s32 0, %v5255
      %v5257 = vrot.slane %v5252, %v5256
      %v5258 = vlaneseq
      %v5259 = vshrl.u32 %v5258, 7
      %v5260 = vsub.s32 1, %v5259
      %v5261 = vrot.slane %v5252, %v5260
      %v5264 = vmul.f32 %v5219, %v5257
      %v5265 = vmul.f32 %v5220, %v5261
      %v5266 = vmul.f32 %v5221, %v5257
      %v5267 = vmul.f32 %v5222, %v5261
      %v5268 = vmul.f32 %v5223, %v5257
      %v5269 = vmul.f32 %v5224, %v5261
      %v5270 = vmul.f32 %v5225, %v5257
      %v5271 = vmul.f32 %v5226, %v5261
      %v5272 = vmul.f32 %v5227, %v5257
      %v5273 = vmul.f32 %v5228, %v5261
      %v5274 = vmul.f32 %v5229, %v5257
      %v5275 = vmul.f32 %v5230, %v5261
      %v5276 = vmul.f32 %v5231, %v5257
      %v5277 = vmul.f32 %v5232, %v5261
      %v5278 = vmul.f32 %v5233, %v5257
      %v5279 = vmul.f32 %v5234, %v5261
      %v5280 = vmul.f32 %v5235, %v5257
      %v5281 = vmul.f32 %v5236, %v5261
      %v5282 = vmul.f32 %v5237, %v5257
      %v5283 = vmul.f32 %v5238, %v5261
      %v5284 = vmul.f32 %v5239, %v5257
      %v5285 = vmul.f32 %v5240, %v5261
      %v5286 = vmul.f32 %v5241, %v5257
      %v5287 = vmul.f32 %v5242, %v5261
      %v5288 = vmul.f32 %v5243, %v5257
      %v5289 = vmul.f32 %v5244, %v5261
      %v5290 = vmul.f32 %v5245, %v5257
      %v5291 = vmul.f32 %v5246, %v5261
      %v5292 = vmul.f32 %v5247, %v5257
      %v5293 = vmul.f32 %v5248, %v5261
      %v5294 = vmul.f32 %v5249, %v5257
      %v5295 = vmul.f32 %v5250, %v5261
      %v5296 = vsel %vm886, %v5265, 0.0
      %v5297 = vadd.f32 %v5264, %v5296
      %5298 = vadd.xlane.f32.xlu0 %v5297
      %v5299 = vpop.xlane.xlu0 %5298
      %v5300 = vsel %vm886, %v5267, 0.0
      %v5301 = vadd.f32 %v5266, %v5300
      %5302 = vadd.xlane.f32.xlu0 %v5301
      %v5303 = vpop.xlane.xlu0 %5302
      %v5304 = vsel %vm886, %v5269, 0.0
      %v5305 = vadd.f32 %v5268, %v5304
      %5306 = vadd.xlane.f32.xlu0 %v5305
      %v5307 = vpop.xlane.xlu0 %5306
      %v5308 = vsel %vm886, %v5271, 0.0
      %v5309 = vadd.f32 %v5270, %v5308
      %5310 = vadd.xlane.f32.xlu0 %v5309
      %v5311 = vpop.xlane.xlu0 %5310
      %v5312 = vsel %vm886, %v5273, 0.0
      %v5313 = vadd.f32 %v5272, %v5312
      %5314 = vadd.xlane.f32.xlu0 %v5313
      %v5315 = vpop.xlane.xlu0 %5314
      %v5316 = vsel %vm886, %v5275, 0.0
      %v5317 = vadd.f32 %v5274, %v5316
      %5318 = vadd.xlane.f32.xlu0 %v5317
      %v5319 = vpop.xlane.xlu0 %5318
      %v5320 = vsel %vm886, %v5277, 0.0
      %v5321 = vadd.f32 %v5276, %v5320
      %5322 = vadd.xlane.f32.xlu0 %v5321
      %v5323 = vpop.xlane.xlu0 %5322
      %v5324 = vsel %vm886, %v5279, 0.0
      %v5325 = vadd.f32 %v5278, %v5324
      %5326 = vadd.xlane.f32.xlu0 %v5325
      %v5327 = vpop.xlane.xlu0 %5326
      %v5328 = vsel %vm886, %v5281, 0.0
      %v5329 = vadd.f32 %v5280, %v5328
      %5330 = vadd.xlane.f32.xlu0 %v5329
      %v5331 = vpop.xlane.xlu0 %5330
      %v5332 = vsel %vm886, %v5283, 0.0
      %v5333 = vadd.f32 %v5282, %v5332
      %5334 = vadd.xlane.f32.xlu0 %v5333
      %v5335 = vpop.xlane.xlu0 %5334
      %v5336 = vsel %vm886, %v5285, 0.0
      %v5337 = vadd.f32 %v5284, %v5336
      %5338 = vadd.xlane.f32.xlu0 %v5337
      %v5339 = vpop.xlane.xlu0 %5338
      %v5340 = vsel %vm886, %v5287, 0.0
      %v5341 = vadd.f32 %v5286, %v5340
      %5342 = vadd.xlane.f32.xlu0 %v5341
      %v5343 = vpop.xlane.xlu0 %5342
      %v5344 = vsel %vm886, %v5289, 0.0
      %v5345 = vadd.f32 %v5288, %v5344
      %5346 = vadd.xlane.f32.xlu0 %v5345
      %v5347 = vpop.xlane.xlu0 %5346
      %v5348 = vsel %vm886, %v5291, 0.0
      %v5349 = vadd.f32 %v5290, %v5348
      %5350 = vadd.xlane.f32.xlu0 %v5349
      %v5351 = vpop.xlane.xlu0 %5350
      %v5352 = vsel %vm886, %v5293, 0.0
      %v5353 = vadd.f32 %v5292, %v5352
      %5354 = vadd.xlane.f32.xlu0 %v5353
      %v5355 = vpop.xlane.xlu0 %5354
      %v5356 = vsel %vm886, %v5295, 0.0
      %v5357 = vadd.f32 %v5294, %v5356
      %5358 = vadd.xlane.f32.xlu0 %v5357
      %v5359 = vpop.xlane.xlu0 %5358
      %v5360 = vadd.f32 %v5186, %v5299
      %v5361 = vadd.f32 %v5187, %v5303
      %v5362 = vadd.f32 %v5188, %v5307
      %v5363 = vadd.f32 %v5189, %v5311
      %v5364 = vadd.f32 %v5190, %v5315
      %v5365 = vadd.f32 %v5191, %v5319
      %v5366 = vadd.f32 %v5192, %v5323
      %v5367 = vadd.f32 %v5193, %v5327
      %v5368 = vadd.f32 %v5194, %v5331
      %v5369 = vadd.f32 %v5195, %v5335
      %v5370 = vadd.f32 %v5196, %v5339
      %v5371 = vadd.f32 %v5197, %v5343
      %v5372 = vadd.f32 %v5198, %v5347
      %v5373 = vadd.f32 %v5199, %v5351
      %v5374 = vadd.f32 %v5200, %v5355
      %v5375 = vadd.f32 %v5201, %v5359
      %s5376 = scalar_lea.vmem %s276, 19
      %v5377 = vld [vmem:[%s5376] sm:$0x1]
      %v5379 = vlaneseq
      %v5380 = vshrl.u32 %v5379, 7
      %v5381 = vsub.s32 0, %v5380
      %v5382 = vrot.slane %v5377, %v5381
      %v5384 = vadd.f32 %v5360, %v5382
      %v5385 = vadd.f32 %v5361, %v5382
      %v5386 = vadd.f32 %v5362, %v5382
      %v5387 = vadd.f32 %v5363, %v5382
      %v5388 = vadd.f32 %v5364, %v5382
      %v5389 = vadd.f32 %v5365, %v5382
      %v5390 = vadd.f32 %v5366, %v5382
      %v5391 = vadd.f32 %v5367, %v5382
      %v5392 = vadd.f32 %v5368, %v5382
      %v5393 = vadd.f32 %v5369, %v5382
      %v5394 = vadd.f32 %v5370, %v5382
      %v5395 = vadd.f32 %v5371, %v5382
      %v5396 = vadd.f32 %v5372, %v5382
      %v5397 = vadd.f32 %v5373, %v5382
      %v5398 = vadd.f32 %v5374, %v5382
      %v5399 = vadd.f32 %v5375, %v5382
      %v5400 = vld [vmem:[%s0] sm:$0xff]
      %v5401 = vld [vmem:[%s0 + $0x8] sm:$0xff]
      %v5402 = vld [vmem:[%s0 + $0x10] sm:$0xff]
      %v5403 = vld [vmem:[%s0 + $0x18] sm:$0xff]
      %v5404 = vld [vmem:[%s0 + $0x20] sm:$0xff]
      %v5405 = vld [vmem:[%s0 + $0x28] sm:$0xff]
      %v5406 = vld [vmem:[%s0 + $0x30] sm:$0xff]
      %v5407 = vld [vmem:[%s0 + $0x38] sm:$0xff]
      %v5408 = vld [vmem:[%s0 + $0x40] sm:$0xff]
      %v5409 = vld [vmem:[%s0 + $0x48] sm:$0xff]
      %v5410 = vld [vmem:[%s0 + $0x50] sm:$0xff]
      %v5411 = vld [vmem:[%s0 + $0x58] sm:$0xff]
      %v5412 = vld [vmem:[%s0 + $0x60] sm:$0xff]
      %v5413 = vld [vmem:[%s0 + $0x68] sm:$0xff]
      %v5414 = vld [vmem:[%s0 + $0x70] sm:$0xff]
      %v5415 = vld [vmem:[%s0 + $0x78] sm:$0xff]
      %v5416 = vadd.f32 %v5384, %v5400
      %v5417 = vadd.f32 %v5385, %v5401
      %v5418 = vadd.f32 %v5386, %v5402
      %v5419 = vadd.f32 %v5387, %v5403
      %v5420 = vadd.f32 %v5388, %v5404
      %v5421 = vadd.f32 %v5389, %v5405
      %v5422 = vadd.f32 %v5390, %v5406
      %v5423 = vadd.f32 %v5391, %v5407
      %v5424 = vadd.f32 %v5392, %v5408
      %v5425 = vadd.f32 %v5393, %v5409
      %v5426 = vadd.f32 %v5394, %v5410
      %v5427 = vadd.f32 %v5395, %v5411
      %v5428 = vadd.f32 %v5396, %v5412
      %v5429 = vadd.f32 %v5397, %v5413
      %v5430 = vadd.f32 %v5398, %v5414
      %v5431 = vadd.f32 %v5399, %v5415
      %5432 = vst.msk [vmem:[%s281] sm:$0xff] %vm283, %v5416
      %5433 = vst.msk [vmem:[%s281 + $0x8] sm:$0xff] %vm283, %v5417
      %5434 = vst.msk [vmem:[%s281 + $0x10] sm:$0xff] %vm283, %v5418
      %5435 = vst.msk [vmem:[%s281 + $0x18] sm:$0xff] %vm283, %v5419
      %5436 = vst.msk [vmem:[%s281 + $0x20] sm:$0xff] %vm283, %v5420
      %5437 = vst.msk [vmem:[%s281 + $0x28] sm:$0xff] %vm283, %v5421
      %5438 = vst.msk [vmem:[%s281 + $0x30] sm:$0xff] %vm283, %v5422
      %5439 = vst.msk [vmem:[%s281 + $0x38] sm:$0xff] %vm283, %v5423
      %5440 = vst.msk [vmem:[%s281 + $0x40] sm:$0xff] %vm283, %v5424
      %5441 = vst.msk [vmem:[%s281 + $0x48] sm:$0xff] %vm283, %v5425
      %5442 = vst.msk [vmem:[%s281 + $0x50] sm:$0xff] %vm283, %v5426
      %5443 = vst.msk [vmem:[%s281 + $0x58] sm:$0xff] %vm283, %v5427
      %5444 = vst.msk [vmem:[%s281 + $0x60] sm:$0xff] %vm283, %v5428
      %5445 = vst.msk [vmem:[%s281 + $0x68] sm:$0xff] %vm283, %v5429
      %5446 = vst.msk [vmem:[%s281 + $0x70] sm:$0xff] %vm283, %v5430
      %5447 = vst.msk [vmem:[%s281 + $0x78] sm:$0xff] %vm283, %v5431
      %p5448 = scmp.lt.s32.totalorder %s16, 1
      %s5449 = scalar_select %p5448, %s16, 1
      %s5450 = smul.addr %s5449, 16
      %s5451 = smul.addr %s5450, 8
      %s5452 = scalar_lea.vmem %s5, %s5451
      // Predicated region
      $region48: #{tpu_custom_call.1} parent=39 // pred_check
        %p5453 = pneg %p159
      $region49: #{tpu_custom_call.1} parent=39 // pred_check_branch
        %5455 = sbr.rel (%p5453) target = $region51
      $region50: #{tpu_custom_call.1} parent=39 // pred_region
        _
      $region51: #{tpu_custom_call.1} parent=39 // pred_fallthru
        _
    $region40: #{tpu_custom_call.1} parent=5 // pred_fallthru
      _
    %p5456 = scmp.le.s32.totalorder 2, %s11
    // Predicated region
    $region52: #{tpu_custom_call.1} parent=5 // pred_check
      %p5457 = pneg %p5456
    $region53: #{tpu_custom_call.1} parent=5 // pred_check_branch
      %5459 = sbr.rel (%p5457) target = $region55
    $region54: #{tpu_custom_call.1} parent=5 // pred_region
      %s5460 = ssub.s32 %s11, 2
      // Predicated region
      $region56: #{tpu_custom_call.1} parent=54 // pred_check
        %p5461 = pneg %p165
      $region57: #{tpu_custom_call.1} parent=54 // pred_check_branch
        %5463 = sbr.rel (%p5461) target = $region59
      $region58: #{tpu_custom_call.1} parent=54 // pred_region
        %p5464 = scmp.lt.s32.totalorder %s17, 1
        %s5465 = scalar_select %p5464, %s17, 1
        %s5466 = smul.addr %s5465, 16
        %s5467 = smul.addr %s5466, 8
        %s5468 = scalar_lea.vmem %s5, %s5467
      $region59: #{tpu_custom_call.1} parent=54 // pred_fallthru
        _
    $region55: #{tpu_custom_call.1} parent=5 // pred_fallthru
      _
  $region6: #{tpu_custom_call.1} parent=0 // loop_footer
    %s15 = sadd.s32 1, %s11
  $region7: #{tpu_custom_call.1} parent=0 // loop_footer_branch
    %10 = sbr.rel target = $region3
  $region8: #{tpu_custom_call.1} parent=0 // loop_exit
    _

</llo_original>
